<compile_context>
chip_gen: v6e
topology: v6e:2x2x1
jax: 0.10.0
libtpu: 0.0.40
codegen_flags: <defaults>
</compile_context>

<pallas_src>
import functools

import jax
import jax.numpy as jnp
import numpy as np
from jax.experimental import pallas as pl
from jax.experimental.pallas import tpu as pltpu

EPS = 1e-5                 # PyTorch BatchNorm2d default
LANE = 128                 # TPU lane width
MXU_DTYPE = jnp.bfloat16   # MXU input dtype (accumulation stays f32)


def _round_up(x, m):
    return (x + m - 1) // m * m


def _pad_last(a, cols):
    if a.shape[-1] == cols:
        return a
    return jnp.pad(a, [(0, 0)] * (a.ndim - 1) + [(0, cols - a.shape[-1])])


# ----------------------------------------------------------------------------
# Pallas kernel: fused 3x3 conv (in-kernel patch taps, BN folded into weights)
#                + bias + (identity | fused 1x1 projection) residual + ReLU
# ----------------------------------------------------------------------------
def _fused_conv3x3_kernel(*refs, taps, ho, wo, residual_mode, apply_relu,
                          out_padded_nhwc):
    if residual_mode == "none":
        x_ref, w_ref, b_ref, o_ref = refs
    elif residual_mode == "add":
        x_ref, w_ref, b_ref, r_ref, o_ref = refs
    else:  # "proj"
        x_ref, w_ref, b_ref, rx_ref, rw_ref, rb_ref, o_ref = refs

    c_tap = w_ref.shape[1]
    cp = w_ref.shape[2]

    # Implicit-GEMM conv: 9 static tap slices of the (padded, phase-split)
    # image block, each matmul'd on the MXU and accumulated in f32.
    acc = jnp.zeros((ho * wo, cp), jnp.float32)
    for t, (dr, dc, ch) in enumerate(taps):
        slab = x_ref[0, pl.ds(dr, ho), pl.ds(dc, wo), pl.ds(ch, c_tap)]
        acc = acc + jnp.dot(slab.reshape(ho * wo, c_tap), w_ref[t],
                            preferred_element_type=jnp.float32)
    acc = acc + b_ref[...]                              # folded BN bias

    if residual_mode == "add":                          # identity shortcut
        acc = acc + r_ref[0].astype(jnp.float32)        # bf16 stream -> f32 add
    elif residual_mode == "proj":                       # fused 1x1 conv + BN
        acc = acc + jnp.dot(rx_ref[0], rw_ref[...],
                            preferred_element_type=jnp.float32)
        acc = acc + rb_ref[...]

    if apply_relu:
        acc = jnp.maximum(acc, 0.0)

    if out_padded_nhwc:
        # Emit a zero-halo padded NHWC image so the next conv consumes this
        # array directly (no wrapper-side pad / cast / im2col round trip).
        o_ref[...] = jnp.zeros(o_ref.shape, o_ref.dtype)
        o_ref[0, pl.ds(1, ho), pl.ds(1, wo), :] = (
            acc.reshape(ho, wo, cp).astype(o_ref.dtype))
    else:
        o_ref[0] = acc.astype(o_ref.dtype)


def fused_conv3x3(xview, w_taps, bias, taps, ho, wo, *, residual=None,
                  residual_proj=None, apply_relu, out_padded_nhwc, out_dtype):
    """One fused 3x3 conv (+BN bias, +residual, +ReLU), grid over the batch.

    xview:  [N, Hv, Wv, Cv]  padded (and phase-split if strided) NHWC input
    w_taps: [9, Ct, Cp]      BN-scale-folded weights, one [Ct, Cp] slab per tap
    bias:   [1, Cp]          folded BN bias (f32)
    taps:   9 static (row_off, col_off, chan_off) slice descriptors
    residual:      [N, Ho*Wo, Cp] identity shortcut (streamed bf16), or None
    residual_proj: (xs [N, Ho*Wo, Cs], ws [Cs, Cp], bs [1, Cp]) fused 1x1
                   projection shortcut, or None
    Output: [N, Ho+2, Wo+2, Cp] zero-halo padded NHWC (out_padded_nhwc=True)
            or [N, Ho*Wo, Cp]   (out_padded_nhwc=False)
    """
    n, hv, wv, cv = xview.shape
    _, c_tap, cp = w_taps.shape

    args = [xview.astype(MXU_DTYPE), w_taps.astype(MXU_DTYPE),
            bias.astype(jnp.float32)]
    in_specs = [
        pl.BlockSpec((1, hv, wv, cv), lambda i: (i, 0, 0, 0)),
        pl.BlockSpec((9, c_tap, cp), lambda i: (0, 0, 0)),   # grid-invariant
        pl.BlockSpec((1, cp), lambda i: (0, 0)),             # grid-invariant
    ]

    if residual is not None:
        mode = "add"
        args.append(residual.astype(MXU_DTYPE))
        in_specs.append(pl.BlockSpec((1, ho * wo, cp), lambda i: (i, 0, 0)))
    elif residual_proj is not None:
        mode = "proj"
        xs, ws, bs = residual_proj
        cs = xs.shape[-1]
        args += [xs.astype(MXU_DTYPE), ws.astype(MXU_DTYPE),
                 bs.astype(jnp.float32)]
        in_specs += [pl.BlockSpec((1, ho * wo, cs), lambda i: (i, 0, 0)),
                     pl.BlockSpec((cs, cp), lambda i: (0, 0)),
                     pl.BlockSpec((1, cp), lambda i: (0, 0))]
    else:
        mode = "none"

    if out_padded_nhwc:
        out_shape = jax.ShapeDtypeStruct((n, ho + 2, wo + 2, cp), out_dtype)
        out_spec = pl.BlockSpec((1, ho + 2, wo + 2, cp), lambda i: (i, 0, 0, 0))
    else:
        out_shape = jax.ShapeDtypeStruct((n, ho * wo, cp), out_dtype)
        out_spec = pl.BlockSpec((1, ho * wo, cp), lambda i: (i, 0, 0))

    kernel = functools.partial(
        _fused_conv3x3_kernel, taps=tuple(taps), ho=ho, wo=wo,
        residual_mode=mode, apply_relu=apply_relu,
        out_padded_nhwc=out_padded_nhwc)

    return pl.pallas_call(
        kernel,
        out_shape=out_shape,
        grid_spec=pltpu.PrefetchScalarGridSpec(
            num_scalar_prefetch=0,
            grid=(n,),
            in_specs=in_specs,
            out_specs=out_spec,
        ),
        compiler_params=pltpu.CompilerParams(
            dimension_semantics=("parallel",)),
    )(*args)


# ----------------------------------------------------------------------------
# Plain-JAX glue: padded/phase-split views, BN folding, weight stacking
# ----------------------------------------------------------------------------
def make_input_view(x_nhwc, stride):
    """Pad (and phase-split if stride==2) so every conv tap is a contiguous
    static slice of the returned view.  Returns (view, taps, Ho, Wo)."""
    n, h, w, c = x_nhwc.shape
    ho = (h - 1) // stride + 1
    wo = (w - 1) // stride + 1
    x = x_nhwc.astype(MXU_DTYPE)
    if stride == 1:
        view = jnp.pad(x, ((0, 0), (1, 1), (1, 1), (0, 0)))
        taps = tuple((kh, kw, 0) for kh in range(3) for kw in range(3))
        return view, taps, ho, wo
    if stride != 2:
        raise NotImplementedError("BasicBlock uses stride 1 or 2")
    # Space-to-depth phase split: padded pixel (2i+a, 2j+b, cc) lives at
    # view[i, j, (a*2+b)*C + cc], so tap (kh, kw) reads the contiguous slice
    # rows [kh//2, kh//2+Ho), cols [kw//2, kw//2+Wo), chans (kh%2*2+kw%2)*C.
    hp = max(h + 2, 2 * ho + 2)
    wp = max(w + 2, 2 * wo + 2)
    xp = jnp.pad(x, ((0, 0), (1, hp - h - 1), (1, wp - w - 1), (0, 0)))
    view = xp.reshape(n, hp // 2, 2, wp // 2, 2, c)
    view = view.transpose(0, 1, 3, 2, 4, 5).reshape(n, hp // 2, wp // 2, 4 * c)
    taps = tuple((kh // 2, kw // 2, ((kh % 2) * 2 + (kw % 2)) * c)
                 for kh in range(3) for kw in range(3))
    return view, taps, ho, wo


def fold_bn(gamma, beta, mean, var):
    scale = gamma / jnp.sqrt(var + EPS)
    return scale, beta - mean * scale


def stack_w3x3(w_oihw, scale, cin_pad, cout_pad):
    """torch [Cout, Cin, 3, 3] -> [9, cin_pad, cout_pad], BN scale folded."""
    c_out, c_in = w_oihw.shape[:2]
    w = jnp.transpose(w_oihw, (2, 3, 1, 0)).reshape(9, c_in, c_out)
    w = w * scale[None, None, :]
    return jnp.pad(w, ((0, 0), (0, cin_pad - c_in), (0, cout_pad - c_out)))


def basic_block_forward(x_nchw, p, stride, out_dtype=jnp.float32):
    """BasicBlock forward (BatchNorm in eval mode).  Input/output NCHW."""
    n, c_in, h, w = x_nchw.shape
    planes = p["w1"].shape[0]
    cp = _round_up(planes, LANE)              # lane-dense channel width
    x_nhwc = jnp.transpose(x_nchw, (0, 2, 3, 1))

    s1, b1 = fold_bn(p["g1"], p["b1"], p["m1"], p["v1"])
    s2, b2 = fold_bn(p["g2"], p["b2"], p["m2"], p["v2"])

    # ---- conv1 + bn1 + relu  ->  zero-halo padded NHWC bf16 -----------------
    view1, taps1, ho, wo = make_input_view(x_nhwc, stride)
    w1 = stack_w3x3(p["w1"], s1, c_in, cp)
    out1 = fused_conv3x3(view1, w1, _pad_last(b1[None, :], cp), taps1, ho, wo,
                         apply_relu=True, out_padded_nhwc=True,
                         out_dtype=MXU_DTYPE)

    # ---- conv2 + bn2 + (fused) shortcut + relu -------------------------------
    # conv2 reads out1 directly (already padded NHWC; per-tap K = cp, lane
    # dense).  The extra zero channels of out1 hit zero-padded weight rows.
    taps2 = tuple((kh, kw, 0) for kh in range(3) for kw in range(3))
    w2 = stack_w3x3(p["w2"], s2, cp, cp)
    b2p = _pad_last(b2[None, :], cp)

    if stride != 1 or c_in != planes:
        ss, bsv = fold_bn(p["gs"], p["bs"], p["ms"], p["vs"])
        ws = _pad_last(
            jnp.transpose(p["ws"][:, :, 0, 0], (1, 0)) * ss[None, :], cp)
        xs = x_nhwc[:, ::stride, ::stride, :].reshape(n, ho * wo, c_in)
        out2 = fused_conv3x3(out1, w2, b2p, taps2, ho, wo,
                             residual_proj=(xs, ws, _pad_last(bsv[None, :], cp)),
                             apply_relu=True, out_padded_nhwc=False,
                             out_dtype=out_dtype)
    else:
        res = _pad_last(x_nhwc, cp).reshape(n, ho * wo, cp)
        out2 = fused_conv3x3(out1, w2, b2p, taps2, ho, wo,
                             residual=res, apply_relu=True,
                             out_padded_nhwc=False, out_dtype=out_dtype)

    out_nhwc = out2[:, :, :planes].reshape(n, ho, wo, planes)
    return jnp.transpose(out_nhwc, (0, 3, 1, 2))


# ----------------------------------------------------------------------------
# Pure-JAX reference (mirrors the PyTorch forward, BN eval mode, f32)
# ----------------------------------------------------------------------------
def _conv_ref(x, w, stride, pad):
    return jax.lax.conv_general_dilated(
        x, w, window_strides=(stride, stride),
        padding=((pad, pad), (pad, pad)),
        dimension_numbers=("NCHW", "OIHW", "NCHW"))


def _bn_ref(x, g, b, m, v):
    return (x - m[None, :, None, None]) / jnp.sqrt(v + EPS)[None, :, None, None] \
        * g[None, :, None, None] + b[None, :, None, None]


def reference_forward(x, p, stride):
    c_in = x.shape[1]
    planes = p["w1"].shape[0]
    out = jnp.maximum(_bn_ref(_conv_ref(x, p["w1"], stride, 1),
                              p["g1"], p["b1"], p["m1"], p["v1"]), 0.0)
    out = _bn_ref(_conv_ref(out, p["w2"], 1, 1),
                  p["g2"], p["b2"], p["m2"], p["v2"])
    if stride != 1 or c_in != planes:
        sc = _bn_ref(_conv_ref(x, p["ws"], stride, 0),
                     p["gs"], p["bs"], p["ms"], p["vs"])
    else:
        sc = x
    return jnp.maximum(out + sc, 0.0)


# ----------------------------------------------------------------------------
def _make_params(key, in_planes, planes, with_shortcut):
    ks = jax.random.split(key, 6)

    def bn(k):
        k1, k2, k3, k4 = jax.random.split(k, 4)
        return (0.5 + 0.1 * jax.random.normal(k1, (planes,), jnp.float32),
                0.1 * jax.random.normal(k2, (planes,), jnp.float32),
                0.1 * jax.random.normal(k3, (planes,), jnp.float32),
                jnp.abs(jax.random.normal(k4, (planes,), jnp.float32)) + 0.5)

    g1, b1, m1, v1 = bn(ks[0])
    g2, b2, m2, v2 = bn(ks[1])
    p = dict(
        w1=0.1 * jax.random.normal(ks[3], (planes, in_planes, 3, 3), jnp.float32),
        w2=0.1 * jax.random.normal(ks[4], (planes, planes, 3, 3), jnp.float32),
        g1=g1, b1=b1, m1=m1, v1=v1, g2=g2, b2=b2, m2=m2, v2=v2)
    if with_shortcut:
        gs, bs, ms, vs = bn(ks[2])
        p.update(
            ws=0.1 * jax.random.normal(ks[5], (planes, in_planes, 1, 1),
                                       jnp.float32),
            gs=gs, bs=bs, ms=ms, vs=vs)
    return p


if __name__ == "__main__":
    key = jax.random.PRNGKey(0)
    k_pa, k_pb, k_xa, k_xb = jax.random.split(key, 4)

    # Case A: stride-2 block with projection shortcut
    #         (space-to-depth conv1, 1x1 projection fused into conv2's kernel).
    N, C_IN, H, W, PLANES = 2, 4, 16, 16, 8
    xa = jax.random.normal(k_xa, (N, C_IN, H, W), jnp.float32)
    pa = _make_params(k_pa, C_IN, PLANES, with_shortcut=True)
    fa = jax.jit(functools.partial(basic_block_forward, stride=2))
    out_a = jax.block_until_ready(fa(xa, pa))
    ref_a = reference_forward(xa, pa, 2)
    np.testing.assert_allclose(np.asarray(out_a), np.asarray(ref_a),
                               rtol=4e-2, atol=4e-2)

    # Case B: stride-1 block with identity shortcut (bf16 residual stream).
    xb = jax.random.normal(k_xb, (N, PLANES, H, W), jnp.float32)
    pb = _make_params(k_pb, PLANES, PLANES, with_shortcut=False)
    fb = jax.jit(functools.partial(basic_block_forward, stride=1))
    out_b = jax.block_until_ready(fb(xb, pb))
    ref_b = reference_forward(xb, pb, 1)
    np.testing.assert_allclose(np.asarray(out_b), np.asarray(ref_b),
                               rtol=4e-2, atol=4e-2)

    print("KERNEL_OK")
</pallas_src>

<mosaic_0001>
module attributes {stable_mosaic.version = 11 : i64} {
  func.func @_fused_conv3x3_kernel(%arg0: i32, %arg1: memref<1x9x9x16xbf16, #tpu.memory_space<vmem>>, %arg2: memref<9x4x128xbf16, #tpu.memory_space<vmem>>, %arg3: memref<1x128xf32, #tpu.memory_space<vmem>>, %arg4: memref<1x10x10x128xbf16, #tpu.memory_space<vmem>>) attributes {dimension_semantics = [#tpu.dimension_semantics<parallel>], iteration_bounds = array<i64: 2>, scalar_prefetch = 0 : i64, scratch_operands = 0 : i64, tpu.core_type = #tpu.core_type<tc>, window_params = [{transform_indices = @transform_0, window_bounds = array<i64: 1, 9, 9, 16>}, {pipeline_mode = #tpu.pipeline_mode<synchronous>, transform_indices = @transform_1, window_bounds = array<i64: 9, 4, 128>}, {pipeline_mode = #tpu.pipeline_mode<synchronous>, transform_indices = @transform_2, window_bounds = array<i64: 1, 128>}, {transform_indices = @transform_3, window_bounds = array<i64: 1, 10, 10, 128>}]} {
    %cst = arith.constant 0.000000e+00 : f32
    %0 = vector.broadcast %cst : f32 to vector<64x128xf32>
    %c0 = arith.constant 0 : index
    %c0_0 = arith.constant 0 : index
    %c0_1 = arith.constant 0 : index
    %c0_2 = arith.constant 0 : index
    %1 = vector.load %arg1[%c0, %c0_0, %c0_1, %c0_2] : memref<1x9x9x16xbf16, #tpu.memory_space<vmem>>, vector<1x8x8x4xbf16>
    %2 = vector.shape_cast %1 : vector<1x8x8x4xbf16> to vector<8x8x4xbf16>
    %3 = vector.shape_cast %2 : vector<8x8x4xbf16> to vector<64x4xbf16>
    %c0_3 = arith.constant 0 : index
    %c0_4 = arith.constant 0 : index
    %c0_5 = arith.constant 0 : index
    %4 = vector.load %arg2[%c0_3, %c0_4, %c0_5] : memref<9x4x128xbf16, #tpu.memory_space<vmem>>, vector<1x4x128xbf16>
    %5 = vector.shape_cast %4 : vector<1x4x128xbf16> to vector<4x128xbf16>
    %cst_6 = arith.constant dense<0.000000e+00> : vector<64x128xf32>
    %6 = tpu.matmul %3, %5, %cst_6 {dimension_numbers = #tpu.dot_dimension_numbers<[1], [0], [0], [1], [0, 0, 1, 1], [], []>} : vector<64x4xbf16>, vector<4x128xbf16>, vector<64x128xf32> -> vector<64x128xf32>
    %7 = arith.addf %0, %6 : vector<64x128xf32>
    %c0_7 = arith.constant 0 : index
    %c0_8 = arith.constant 0 : index
    %c0_9 = arith.constant 0 : index
    %c4 = arith.constant 4 : index
    %8 = vector.load %arg1[%c0_7, %c0_8, %c0_9, %c4] : memref<1x9x9x16xbf16, #tpu.memory_space<vmem>>, vector<1x8x8x4xbf16>
    %9 = vector.shape_cast %8 : vector<1x8x8x4xbf16> to vector<8x8x4xbf16>
    %10 = vector.shape_cast %9 : vector<8x8x4xbf16> to vector<64x4xbf16>
    %c1 = arith.constant 1 : index
    %c0_10 = arith.constant 0 : index
    %c0_11 = arith.constant 0 : index
    %11 = vector.load %arg2[%c1, %c0_10, %c0_11] : memref<9x4x128xbf16, #tpu.memory_space<vmem>>, vector<1x4x128xbf16>
    %12 = vector.shape_cast %11 : vector<1x4x128xbf16> to vector<4x128xbf16>
    %cst_12 = arith.constant dense<0.000000e+00> : vector<64x128xf32>
    %13 = tpu.matmul %10, %12, %cst_12 {dimension_numbers = #tpu.dot_dimension_numbers<[1], [0], [0], [1], [0, 0, 1, 1], [], []>} : vector<64x4xbf16>, vector<4x128xbf16>, vector<64x128xf32> -> vector<64x128xf32>
    %14 = arith.addf %7, %13 : vector<64x128xf32>
    %c0_13 = arith.constant 0 : index
    %c0_14 = arith.constant 0 : index
    %c1_15 = arith.constant 1 : index
    %c0_16 = arith.constant 0 : index
    %15 = vector.load %arg1[%c0_13, %c0_14, %c1_15, %c0_16] : memref<1x9x9x16xbf16, #tpu.memory_space<vmem>>, vector<1x8x8x4xbf16>
    %16 = vector.shape_cast %15 : vector<1x8x8x4xbf16> to vector<8x8x4xbf16>
    %17 = vector.shape_cast %16 : vector<8x8x4xbf16> to vector<64x4xbf16>
    %c2 = arith.constant 2 : index
    %c0_17 = arith.constant 0 : index
    %c0_18 = arith.constant 0 : index
    %18 = vector.load %arg2[%c2, %c0_17, %c0_18] : memref<9x4x128xbf16, #tpu.memory_space<vmem>>, vector<1x4x128xbf16>
    %19 = vector.shape_cast %18 : vector<1x4x128xbf16> to vector<4x128xbf16>
    %cst_19 = arith.constant dense<0.000000e+00> : vector<64x128xf32>
    %20 = tpu.matmul %17, %19, %cst_19 {dimension_numbers = #tpu.dot_dimension_numbers<[1], [0], [0], [1], [0, 0, 1, 1], [], []>} : vector<64x4xbf16>, vector<4x128xbf16>, vector<64x128xf32> -> vector<64x128xf32>
    %21 = arith.addf %14, %20 : vector<64x128xf32>
    %c0_20 = arith.constant 0 : index
    %c0_21 = arith.constant 0 : index
    %c0_22 = arith.constant 0 : index
    %c8 = arith.constant 8 : index
    %22 = vector.load %arg1[%c0_20, %c0_21, %c0_22, %c8] : memref<1x9x9x16xbf16, #tpu.memory_space<vmem>>, vector<1x8x8x4xbf16>
    %23 = vector.shape_cast %22 : vector<1x8x8x4xbf16> to vector<8x8x4xbf16>
    %24 = vector.shape_cast %23 : vector<8x8x4xbf16> to vector<64x4xbf16>
    %c3 = arith.constant 3 : index
    %c0_23 = arith.constant 0 : index
    %c0_24 = arith.constant 0 : index
    %25 = vector.load %arg2[%c3, %c0_23, %c0_24] : memref<9x4x128xbf16, #tpu.memory_space<vmem>>, vector<1x4x128xbf16>
    %26 = vector.shape_cast %25 : vector<1x4x128xbf16> to vector<4x128xbf16>
    %cst_25 = arith.constant dense<0.000000e+00> : vector<64x128xf32>
    %27 = tpu.matmul %24, %26, %cst_25 {dimension_numbers = #tpu.dot_dimension_numbers<[1], [0], [0], [1], [0, 0, 1, 1], [], []>} : vector<64x4xbf16>, vector<4x128xbf16>, vector<64x128xf32> -> vector<64x128xf32>
    %28 = arith.addf %21, %27 : vector<64x128xf32>
    %c0_26 = arith.constant 0 : index
    %c0_27 = arith.constant 0 : index
    %c0_28 = arith.constant 0 : index
    %c12 = arith.constant 12 : index
    %29 = vector.load %arg1[%c0_26, %c0_27, %c0_28, %c12] : memref<1x9x9x16xbf16, #tpu.memory_space<vmem>>, vector<1x8x8x4xbf16>
    %30 = vector.shape_cast %29 : vector<1x8x8x4xbf16> to vector<8x8x4xbf16>
    %31 = vector.shape_cast %30 : vector<8x8x4xbf16> to vector<64x4xbf16>
    %c4_29 = arith.constant 4 : index
    %c0_30 = arith.constant 0 : index
    %c0_31 = arith.constant 0 : index
    %32 = vector.load %arg2[%c4_29, %c0_30, %c0_31] : memref<9x4x128xbf16, #tpu.memory_space<vmem>>, vector<1x4x128xbf16>
    %33 = vector.shape_cast %32 : vector<1x4x128xbf16> to vector<4x128xbf16>
    %cst_32 = arith.constant dense<0.000000e+00> : vector<64x128xf32>
    %34 = tpu.matmul %31, %33, %cst_32 {dimension_numbers = #tpu.dot_dimension_numbers<[1], [0], [0], [1], [0, 0, 1, 1], [], []>} : vector<64x4xbf16>, vector<4x128xbf16>, vector<64x128xf32> -> vector<64x128xf32>
    %35 = arith.addf %28, %34 : vector<64x128xf32>
    %c0_33 = arith.constant 0 : index
    %c0_34 = arith.constant 0 : index
    %c1_35 = arith.constant 1 : index
    %c8_36 = arith.constant 8 : index
    %36 = vector.load %arg1[%c0_33, %c0_34, %c1_35, %c8_36] : memref<1x9x9x16xbf16, #tpu.memory_space<vmem>>, vector<1x8x8x4xbf16>
    %37 = vector.shape_cast %36 : vector<1x8x8x4xbf16> to vector<8x8x4xbf16>
    %38 = vector.shape_cast %37 : vector<8x8x4xbf16> to vector<64x4xbf16>
    %c5 = arith.constant 5 : index
    %c0_37 = arith.constant 0 : index
    %c0_38 = arith.constant 0 : index
    %39 = vector.load %arg2[%c5, %c0_37, %c0_38] : memref<9x4x128xbf16, #tpu.memory_space<vmem>>, vector<1x4x128xbf16>
    %40 = vector.shape_cast %39 : vector<1x4x128xbf16> to vector<4x128xbf16>
    %cst_39 = arith.constant dense<0.000000e+00> : vector<64x128xf32>
    %41 = tpu.matmul %38, %40, %cst_39 {dimension_numbers = #tpu.dot_dimension_numbers<[1], [0], [0], [1], [0, 0, 1, 1], [], []>} : vector<64x4xbf16>, vector<4x128xbf16>, vector<64x128xf32> -> vector<64x128xf32>
    %42 = arith.addf %35, %41 : vector<64x128xf32>
    %c0_40 = arith.constant 0 : index
    %c1_41 = arith.constant 1 : index
    %c0_42 = arith.constant 0 : index
    %c0_43 = arith.constant 0 : index
    %43 = vector.load %arg1[%c0_40, %c1_41, %c0_42, %c0_43] : memref<1x9x9x16xbf16, #tpu.memory_space<vmem>>, vector<1x8x8x4xbf16>
    %44 = vector.shape_cast %43 : vector<1x8x8x4xbf16> to vector<8x8x4xbf16>
    %45 = vector.shape_cast %44 : vector<8x8x4xbf16> to vector<64x4xbf16>
    %c6 = arith.constant 6 : index
    %c0_44 = arith.constant 0 : index
    %c0_45 = arith.constant 0 : index
    %46 = vector.load %arg2[%c6, %c0_44, %c0_45] : memref<9x4x128xbf16, #tpu.memory_space<vmem>>, vector<1x4x128xbf16>
    %47 = vector.shape_cast %46 : vector<1x4x128xbf16> to vector<4x128xbf16>
    %cst_46 = arith.constant dense<0.000000e+00> : vector<64x128xf32>
    %48 = tpu.matmul %45, %47, %cst_46 {dimension_numbers = #tpu.dot_dimension_numbers<[1], [0], [0], [1], [0, 0, 1, 1], [], []>} : vector<64x4xbf16>, vector<4x128xbf16>, vector<64x128xf32> -> vector<64x128xf32>
    %49 = arith.addf %42, %48 : vector<64x128xf32>
    %c0_47 = arith.constant 0 : index
    %c1_48 = arith.constant 1 : index
    %c0_49 = arith.constant 0 : index
    %c4_50 = arith.constant 4 : index
    %50 = vector.load %arg1[%c0_47, %c1_48, %c0_49, %c4_50] : memref<1x9x9x16xbf16, #tpu.memory_space<vmem>>, vector<1x8x8x4xbf16>
    %51 = vector.shape_cast %50 : vector<1x8x8x4xbf16> to vector<8x8x4xbf16>
    %52 = vector.shape_cast %51 : vector<8x8x4xbf16> to vector<64x4xbf16>
    %c7 = arith.constant 7 : index
    %c0_51 = arith.constant 0 : index
    %c0_52 = arith.constant 0 : index
    %53 = vector.load %arg2[%c7, %c0_51, %c0_52] : memref<9x4x128xbf16, #tpu.memory_space<vmem>>, vector<1x4x128xbf16>
    %54 = vector.shape_cast %53 : vector<1x4x128xbf16> to vector<4x128xbf16>
    %cst_53 = arith.constant dense<0.000000e+00> : vector<64x128xf32>
    %55 = tpu.matmul %52, %54, %cst_53 {dimension_numbers = #tpu.dot_dimension_numbers<[1], [0], [0], [1], [0, 0, 1, 1], [], []>} : vector<64x4xbf16>, vector<4x128xbf16>, vector<64x128xf32> -> vector<64x128xf32>
    %56 = arith.addf %49, %55 : vector<64x128xf32>
    %c0_54 = arith.constant 0 : index
    %c1_55 = arith.constant 1 : index
    %c1_56 = arith.constant 1 : index
    %c0_57 = arith.constant 0 : index
    %57 = vector.load %arg1[%c0_54, %c1_55, %c1_56, %c0_57] : memref<1x9x9x16xbf16, #tpu.memory_space<vmem>>, vector<1x8x8x4xbf16>
    %58 = vector.shape_cast %57 : vector<1x8x8x4xbf16> to vector<8x8x4xbf16>
    %59 = vector.shape_cast %58 : vector<8x8x4xbf16> to vector<64x4xbf16>
    %c8_58 = arith.constant 8 : index
    %c0_59 = arith.constant 0 : index
    %c0_60 = arith.constant 0 : index
    %60 = vector.load %arg2[%c8_58, %c0_59, %c0_60] : memref<9x4x128xbf16, #tpu.memory_space<vmem>>, vector<1x4x128xbf16>
    %61 = vector.shape_cast %60 : vector<1x4x128xbf16> to vector<4x128xbf16>
    %cst_61 = arith.constant dense<0.000000e+00> : vector<64x128xf32>
    %62 = tpu.matmul %59, %61, %cst_61 {dimension_numbers = #tpu.dot_dimension_numbers<[1], [0], [0], [1], [0, 0, 1, 1], [], []>} : vector<64x4xbf16>, vector<4x128xbf16>, vector<64x128xf32> -> vector<64x128xf32>
    %63 = arith.addf %56, %62 : vector<64x128xf32>
    %c0_62 = arith.constant 0 : index
    %c0_63 = arith.constant 0 : index
    %64 = vector.load %arg3[%c0_62, %c0_63] : memref<1x128xf32, #tpu.memory_space<vmem>>, vector<1x128xf32>
    %65 = vector.broadcast %64 : vector<1x128xf32> to vector<64x128xf32>
    %66 = arith.addf %63, %65 : vector<64x128xf32>
    %cst_64 = arith.constant 0.000000e+00 : f32
    %67 = vector.broadcast %cst_64 : f32 to vector<64x128xf32>
    %68 = arith.maximumf %66, %67 : vector<64x128xf32>
    %cst_65 = arith.constant 0.000000e+00 : bf16
    %69 = vector.broadcast %cst_65 : bf16 to vector<1x10x10x128xbf16>
    %c0_66 = arith.constant 0 : index
    %c0_67 = arith.constant 0 : index
    %c0_68 = arith.constant 0 : index
    %c0_69 = arith.constant 0 : index
    %70 = vector.load %arg4[%c0_66, %c0_67, %c0_68, %c0_69] : memref<1x10x10x128xbf16, #tpu.memory_space<vmem>>, vector<1x10x10x128xbf16>
    tpu.vector_store %arg4[%c0_66, %c0_67, %c0_68, %c0_69], %69 {strides = array<i32>} : memref<1x10x10x128xbf16, #tpu.memory_space<vmem>>, vector<1x10x10x128xbf16>,
    %71 = vector.shape_cast %68 : vector<64x128xf32> to vector<8x8x128xf32>
    %72 = arith.truncf %71 : vector<8x8x128xf32> to vector<8x8x128xbf16>
    %c0_70 = arith.constant 0 : index
    %c1_71 = arith.constant 1 : index
    %c1_72 = arith.constant 1 : index
    %c0_73 = arith.constant 0 : index
    %73 = vector.load %arg4[%c0_70, %c1_71, %c1_72, %c0_73] : memref<1x10x10x128xbf16, #tpu.memory_space<vmem>>, vector<1x8x8x128xbf16>
    %74 = vector.shape_cast %73 : vector<1x8x8x128xbf16> to vector<8x8x128xbf16>
    %75 = vector.shape_cast %72 : vector<8x8x128xbf16> to vector<1x8x8x128xbf16>
    tpu.vector_store %arg4[%c0_70, %c1_71, %c1_72, %c0_73], %75 {strides = array<i32>} : memref<1x10x10x128xbf16, #tpu.memory_space<vmem>>, vector<1x8x8x128xbf16>,
    return
  }
  func.func @transform_0(%arg0: i32) -> (i32, i32, i32, i32) {
    %c0_i32 = arith.constant 0 : i32
    %c0_i32_0 = arith.constant 0 : i32
    %c0_i32_1 = arith.constant 0 : i32
    %c0_i32_2 = arith.constant 0 : i32
    return %arg0, %c0_i32, %c0_i32_0, %c0_i32_1 : i32, i32, i32, i32
  }
  func.func @transform_1(%arg0: i32) -> (i32, i32, i32) {
    %c0_i32 = arith.constant 0 : i32
    %c0_i32_0 = arith.constant 0 : i32
    %c0_i32_1 = arith.constant 0 : i32
    %c0_i32_2 = arith.constant 0 : i32
    return %c0_i32, %c0_i32_0, %c0_i32_1 : i32, i32, i32
  }
  func.func @transform_2(%arg0: i32) -> (i32, i32) {
    %c0_i32 = arith.constant 0 : i32
    %c0_i32_0 = arith.constant 0 : i32
    %c0_i32_1 = arith.constant 0 : i32
    return %c0_i32, %c0_i32_0 : i32, i32
  }
  func.func @transform_3(%arg0: i32) -> (i32, i32, i32, i32) {
    %c0_i32 = arith.constant 0 : i32
    %c0_i32_0 = arith.constant 0 : i32
    %c0_i32_1 = arith.constant 0 : i32
    %c0_i32_2 = arith.constant 0 : i32
    return %arg0, %c0_i32, %c0_i32_0, %c0_i32_1 : i32, i32, i32, i32
  }
}

module attributes {stable_mosaic.version = 11 : i64} {
  func.func @_fused_conv3x3_kernel(%arg0: i32, %arg1: memref<1x10x10x128xbf16, #tpu.memory_space<vmem>>, %arg2: memref<9x128x128xbf16, #tpu.memory_space<vmem>>, %arg3: memref<1x128xf32, #tpu.memory_space<vmem>>, %arg4: memref<1x64x4xbf16, #tpu.memory_space<vmem>>, %arg5: memref<4x128xbf16, #tpu.memory_space<vmem>>, %arg6: memref<1x128xf32, #tpu.memory_space<vmem>>, %arg7: memref<1x64x128xf32, #tpu.memory_space<vmem>>) attributes {dimension_semantics = [#tpu.dimension_semantics<parallel>], iteration_bounds = array<i64: 2>, scalar_prefetch = 0 : i64, scratch_operands = 0 : i64, tpu.core_type = #tpu.core_type<tc>, window_params = [{transform_indices = @transform_0, window_bounds = array<i64: 1, 10, 10, 128>}, {pipeline_mode = #tpu.pipeline_mode<synchronous>, transform_indices = @transform_1, window_bounds = array<i64: 9, 128, 128>}, {pipeline_mode = #tpu.pipeline_mode<synchronous>, transform_indices = @transform_2, window_bounds = array<i64: 1, 128>}, {transform_indices = @transform_3, window_bounds = array<i64: 1, 64, 4>}, {pipeline_mode = #tpu.pipeline_mode<synchronous>, transform_indices = @transform_4, window_bounds = array<i64: 4, 128>}, {pipeline_mode = #tpu.pipeline_mode<synchronous>, transform_indices = @transform_5, window_bounds = array<i64: 1, 128>}, {transform_indices = @transform_6, window_bounds = array<i64: 1, 64, 128>}]} {
    %cst = arith.constant 0.000000e+00 : f32
    %0 = vector.broadcast %cst : f32 to vector<64x128xf32>
    %c0 = arith.constant 0 : index
    %c0_0 = arith.constant 0 : index
    %c0_1 = arith.constant 0 : index
    %c0_2 = arith.constant 0 : index
    %1 = vector.load %arg1[%c0, %c0_0, %c0_1, %c0_2] : memref<1x10x10x128xbf16, #tpu.memory_space<vmem>>, vector<1x8x8x128xbf16>
    %2 = vector.shape_cast %1 : vector<1x8x8x128xbf16> to vector<8x8x128xbf16>
    %3 = vector.shape_cast %2 : vector<8x8x128xbf16> to vector<64x128xbf16>
    %c0_3 = arith.constant 0 : index
    %c0_4 = arith.constant 0 : index
    %c0_5 = arith.constant 0 : index
    %4 = vector.load %arg2[%c0_3, %c0_4, %c0_5] : memref<9x128x128xbf16, #tpu.memory_space<vmem>>, vector<1x128x128xbf16>
    %5 = vector.shape_cast %4 : vector<1x128x128xbf16> to vector<128x128xbf16>
    %cst_6 = arith.constant dense<0.000000e+00> : vector<64x128xf32>
    %6 = tpu.matmul %3, %5, %cst_6 {dimension_numbers = #tpu.dot_dimension_numbers<[1], [0], [0], [1], [0, 0, 1, 1], [], []>} : vector<64x128xbf16>, vector<128x128xbf16>, vector<64x128xf32> -> vector<64x128xf32>
    %7 = arith.addf %0, %6 : vector<64x128xf32>
    %c0_7 = arith.constant 0 : index
    %c0_8 = arith.constant 0 : index
    %c1 = arith.constant 1 : index
    %c0_9 = arith.constant 0 : index
    %8 = vector.load %arg1[%c0_7, %c0_8, %c1, %c0_9] : memref<1x10x10x128xbf16, #tpu.memory_space<vmem>>, vector<1x8x8x128xbf16>
    %9 = vector.shape_cast %8 : vector<1x8x8x128xbf16> to vector<8x8x128xbf16>
    %10 = vector.shape_cast %9 : vector<8x8x128xbf16> to vector<64x128xbf16>
    %c1_10 = arith.constant 1 : index
    %c0_11 = arith.constant 0 : index
    %c0_12 = arith.constant 0 : index
    %11 = vector.load %arg2[%c1_10, %c0_11, %c0_12] : memref<9x128x128xbf16, #tpu.memory_space<vmem>>, vector<1x128x128xbf16>
    %12 = vector.shape_cast %11 : vector<1x128x128xbf16> to vector<128x128xbf16>
    %cst_13 = arith.constant dense<0.000000e+00> : vector<64x128xf32>
    %13 = tpu.matmul %10, %12, %cst_13 {dimension_numbers = #tpu.dot_dimension_numbers<[1], [0], [0], [1], [0, 0, 1, 1], [], []>} : vector<64x128xbf16>, vector<128x128xbf16>, vector<64x128xf32> -> vector<64x128xf32>
    %14 = arith.addf %7, %13 : vector<64x128xf32>
    %c0_14 = arith.constant 0 : index
    %c0_15 = arith.constant 0 : index
    %c2 = arith.constant 2 : index
    %c0_16 = arith.constant 0 : index
    %15 = vector.load %arg1[%c0_14, %c0_15, %c2, %c0_16] : memref<1x10x10x128xbf16, #tpu.memory_space<vmem>>, vector<1x8x8x128xbf16>
    %16 = vector.shape_cast %15 : vector<1x8x8x128xbf16> to vector<8x8x128xbf16>
    %17 = vector.shape_cast %16 : vector<8x8x128xbf16> to vector<64x128xbf16>
    %c2_17 = arith.constant 2 : index
    %c0_18 = arith.constant 0 : index
    %c0_19 = arith.constant 0 : index
    %18 = vector.load %arg2[%c2_17, %c0_18, %c0_19] : memref<9x128x128xbf16, #tpu.memory_space<vmem>>, vector<1x128x128xbf16>
    %19 = vector.shape_cast %18 : vector<1x128x128xbf16> to vector<128x128xbf16>
    %cst_20 = arith.constant dense<0.000000e+00> : vector<64x128xf32>
    %20 = tpu.matmul %17, %19, %cst_20 {dimension_numbers = #tpu.dot_dimension_numbers<[1], [0], [0], [1], [0, 0, 1, 1], [], []>} : vector<64x128xbf16>, vector<128x128xbf16>, vector<64x128xf32> -> vector<64x128xf32>
    %21 = arith.addf %14, %20 : vector<64x128xf32>
    %c0_21 = arith.constant 0 : index
    %c1_22 = arith.constant 1 : index
    %c0_23 = arith.constant 0 : index
    %c0_24 = arith.constant 0 : index
    %22 = vector.load %arg1[%c0_21, %c1_22, %c0_23, %c0_24] : memref<1x10x10x128xbf16, #tpu.memory_space<vmem>>, vector<1x8x8x128xbf16>
    %23 = vector.shape_cast %22 : vector<1x8x8x128xbf16> to vector<8x8x128xbf16>
    %24 = vector.shape_cast %23 : vector<8x8x128xbf16> to vector<64x128xbf16>
    %c3 = arith.constant 3 : index
    %c0_25 = arith.constant 0 : index
    %c0_26 = arith.constant 0 : index
    %25 = vector.load %arg2[%c3, %c0_25, %c0_26] : memref<9x128x128xbf16, #tpu.memory_space<vmem>>, vector<1x128x128xbf16>
    %26 = vector.shape_cast %25 : vector<1x128x128xbf16> to vector<128x128xbf16>
    %cst_27 = arith.constant dense<0.000000e+00> : vector<64x128xf32>
    %27 = tpu.matmul %24, %26, %cst_27 {dimension_numbers = #tpu.dot_dimension_numbers<[1], [0], [0], [1], [0, 0, 1, 1], [], []>} : vector<64x128xbf16>, vector<128x128xbf16>, vector<64x128xf32> -> vector<64x128xf32>
    %28 = arith.addf %21, %27 : vector<64x128xf32>
    %c0_28 = arith.constant 0 : index
    %c1_29 = arith.constant 1 : index
    %c1_30 = arith.constant 1 : index
    %c0_31 = arith.constant 0 : index
    %29 = vector.load %arg1[%c0_28, %c1_29, %c1_30, %c0_31] : memref<1x10x10x128xbf16, #tpu.memory_space<vmem>>, vector<1x8x8x128xbf16>
    %30 = vector.shape_cast %29 : vector<1x8x8x128xbf16> to vector<8x8x128xbf16>
    %31 = vector.shape_cast %30 : vector<8x8x128xbf16> to vector<64x128xbf16>
    %c4 = arith.constant 4 : index
    %c0_32 = arith.constant 0 : index
    %c0_33 = arith.constant 0 : index
    %32 = vector.load %arg2[%c4, %c0_32, %c0_33] : memref<9x128x128xbf16, #tpu.memory_space<vmem>>, vector<1x128x128xbf16>
    %33 = vector.shape_cast %32 : vector<1x128x128xbf16> to vector<128x128xbf16>
    %cst_34 = arith.constant dense<0.000000e+00> : vector<64x128xf32>
    %34 = tpu.matmul %31, %33, %cst_34 {dimension_numbers = #tpu.dot_dimension_numbers<[1], [0], [0], [1], [0, 0, 1, 1], [], []>} : vector<64x128xbf16>, vector<128x128xbf16>, vector<64x128xf32> -> vector<64x128xf32>
    %35 = arith.addf %28, %34 : vector<64x128xf32>
    %c0_35 = arith.constant 0 : index
    %c1_36 = arith.constant 1 : index
    %c2_37 = arith.constant 2 : index
    %c0_38 = arith.constant 0 : index
    %36 = vector.load %arg1[%c0_35, %c1_36, %c2_37, %c0_38] : memref<1x10x10x128xbf16, #tpu.memory_space<vmem>>, vector<1x8x8x128xbf16>
    %37 = vector.shape_cast %36 : vector<1x8x8x128xbf16> to vector<8x8x128xbf16>
    %38 = vector.shape_cast %37 : vector<8x8x128xbf16> to vector<64x128xbf16>
    %c5 = arith.constant 5 : index
    %c0_39 = arith.constant 0 : index
    %c0_40 = arith.constant 0 : index
    %39 = vector.load %arg2[%c5, %c0_39, %c0_40] : memref<9x128x128xbf16, #tpu.memory_space<vmem>>, vector<1x128x128xbf16>
    %40 = vector.shape_cast %39 : vector<1x128x128xbf16> to vector<128x128xbf16>
    %cst_41 = arith.constant dense<0.000000e+00> : vector<64x128xf32>
    %41 = tpu.matmul %38, %40, %cst_41 {dimension_numbers = #tpu.dot_dimension_numbers<[1], [0], [0], [1], [0, 0, 1, 1], [], []>} : vector<64x128xbf16>, vector<128x128xbf16>, vector<64x128xf32> -> vector<64x128xf32>
    %42 = arith.addf %35, %41 : vector<64x128xf32>
    %c0_42 = arith.constant 0 : index
    %c2_43 = arith.constant 2 : index
    %c0_44 = arith.constant 0 : index
    %c0_45 = arith.constant 0 : index
    %43 = vector.load %arg1[%c0_42, %c2_43, %c0_44, %c0_45] : memref<1x10x10x128xbf16, #tpu.memory_space<vmem>>, vector<1x8x8x128xbf16>
    %44 = vector.shape_cast %43 : vector<1x8x8x128xbf16> to vector<8x8x128xbf16>
    %45 = vector.shape_cast %44 : vector<8x8x128xbf16> to vector<64x128xbf16>
    %c6 = arith.constant 6 : index
    %c0_46 = arith.constant 0 : index
    %c0_47 = arith.constant 0 : index
    %46 = vector.load %arg2[%c6, %c0_46, %c0_47] : memref<9x128x128xbf16, #tpu.memory_space<vmem>>, vector<1x128x128xbf16>
    %47 = vector.shape_cast %46 : vector<1x128x128xbf16> to vector<128x128xbf16>
    %cst_48 = arith.constant dense<0.000000e+00> : vector<64x128xf32>
    %48 = tpu.matmul %45, %47, %cst_48 {dimension_numbers = #tpu.dot_dimension_numbers<[1], [0], [0], [1], [0, 0, 1, 1], [], []>} : vector<64x128xbf16>, vector<128x128xbf16>, vector<64x128xf32> -> vector<64x128xf32>
    %49 = arith.addf %42, %48 : vector<64x128xf32>
    %c0_49 = arith.constant 0 : index
    %c2_50 = arith.constant 2 : index
    %c1_51 = arith.constant 1 : index
    %c0_52 = arith.constant 0 : index
    %50 = vector.load %arg1[%c0_49, %c2_50, %c1_51, %c0_52] : memref<1x10x10x128xbf16, #tpu.memory_space<vmem>>, vector<1x8x8x128xbf16>
    %51 = vector.shape_cast %50 : vector<1x8x8x128xbf16> to vector<8x8x128xbf16>
    %52 = vector.shape_cast %51 : vector<8x8x128xbf16> to vector<64x128xbf16>
    %c7 = arith.constant 7 : index
    %c0_53 = arith.constant 0 : index
    %c0_54 = arith.constant 0 : index
    %53 = vector.load %arg2[%c7, %c0_53, %c0_54] : memref<9x128x128xbf16, #tpu.memory_space<vmem>>, vector<1x128x128xbf16>
    %54 = vector.shape_cast %53 : vector<1x128x128xbf16> to vector<128x128xbf16>
    %cst_55 = arith.constant dense<0.000000e+00> : vector<64x128xf32>
    %55 = tpu.matmul %52, %54, %cst_55 {dimension_numbers = #tpu.dot_dimension_numbers<[1], [0], [0], [1], [0, 0, 1, 1], [], []>} : vector<64x128xbf16>, vector<128x128xbf16>, vector<64x128xf32> -> vector<64x128xf32>
    %56 = arith.addf %49, %55 : vector<64x128xf32>
    %c0_56 = arith.constant 0 : index
    %c2_57 = arith.constant 2 : index
    %c2_58 = arith.constant 2 : index
    %c0_59 = arith.constant 0 : index
    %57 = vector.load %arg1[%c0_56, %c2_57, %c2_58, %c0_59] : memref<1x10x10x128xbf16, #tpu.memory_space<vmem>>, vector<1x8x8x128xbf16>
    %58 = vector.shape_cast %57 : vector<1x8x8x128xbf16> to vector<8x8x128xbf16>
    %59 = vector.shape_cast %58 : vector<8x8x128xbf16> to vector<64x128xbf16>
    %c8 = arith.constant 8 : index
    %c0_60 = arith.constant 0 : index
    %c0_61 = arith.constant 0 : index
    %60 = vector.load %arg2[%c8, %c0_60, %c0_61] : memref<9x128x128xbf16, #tpu.memory_space<vmem>>, vector<1x128x128xbf16>
    %61 = vector.shape_cast %60 : vector<1x128x128xbf16> to vector<128x128xbf16>
    %cst_62 = arith.constant dense<0.000000e+00> : vector<64x128xf32>
    %62 = tpu.matmul %59, %61, %cst_62 {dimension_numbers = #tpu.dot_dimension_numbers<[1], [0], [0], [1], [0, 0, 1, 1], [], []>} : vector<64x128xbf16>, vector<128x128xbf16>, vector<64x128xf32> -> vector<64x128xf32>
    %63 = arith.addf %56, %62 : vector<64x128xf32>
    %c0_63 = arith.constant 0 : index
    %c0_64 = arith.constant 0 : index
    %64 = vector.load %arg3[%c0_63, %c0_64] : memref<1x128xf32, #tpu.memory_space<vmem>>, vector<1x128xf32>
    %65 = vector.broadcast %64 : vector<1x128xf32> to vector<64x128xf32>
    %66 = arith.addf %63, %65 : vector<64x128xf32>
    %c0_65 = arith.constant 0 : index
    %c0_66 = arith.constant 0 : index
    %c0_67 = arith.constant 0 : index
    %67 = vector.load %arg4[%c0_65, %c0_66, %c0_67] : memref<1x64x4xbf16, #tpu.memory_space<vmem>>, vector<1x64x4xbf16>
    %68 = vector.shape_cast %67 : vector<1x64x4xbf16> to vector<64x4xbf16>
    %c0_68 = arith.constant 0 : index
    %c0_69 = arith.constant 0 : index
    %69 = vector.load %arg5[%c0_68, %c0_69] : memref<4x128xbf16, #tpu.memory_space<vmem>>, vector<4x128xbf16>
    %cst_70 = arith.constant dense<0.000000e+00> : vector<64x128xf32>
    %70 = tpu.matmul %68, %69, %cst_70 {dimension_numbers = #tpu.dot_dimension_numbers<[1], [0], [0], [1], [0, 0, 1, 1], [], []>} : vector<64x4xbf16>, vector<4x128xbf16>, vector<64x128xf32> -> vector<64x128xf32>
    %71 = arith.addf %66, %70 : vector<64x128xf32>
    %c0_71 = arith.constant 0 : index
    %c0_72 = arith.constant 0 : index
    %72 = vector.load %arg6[%c0_71, %c0_72] : memref<1x128xf32, #tpu.memory_space<vmem>>, vector<1x128xf32>
    %73 = vector.broadcast %72 : vector<1x128xf32> to vector<64x128xf32>
    %74 = arith.addf %71, %73 : vector<64x128xf32>
    %cst_73 = arith.constant 0.000000e+00 : f32
    %75 = vector.broadcast %cst_73 : f32 to vector<64x128xf32>
    %76 = arith.maximumf %74, %75 : vector<64x128xf32>
    %c0_74 = arith.constant 0 : index
    %c0_75 = arith.constant 0 : index
    %c0_76 = arith.constant 0 : index
    %77 = vector.load %arg7[%c0_74, %c0_75, %c0_76] : memref<1x64x128xf32, #tpu.memory_space<vmem>>, vector<1x64x128xf32>
    %78 = vector.shape_cast %77 : vector<1x64x128xf32> to vector<64x128xf32>
    %79 = vector.shape_cast %76 : vector<64x128xf32> to vector<1x64x128xf32>
    tpu.vector_store %arg7[%c0_74, %c0_75, %c0_76], %79 {strides = array<i32>} : memref<1x64x128xf32, #tpu.memory_space<vmem>>, vector<1x64x128xf32>,
    return
  }
  func.func @transform_0(%arg0: i32) -> (i32, i32, i32, i32) {
    %c0_i32 = arith.constant 0 : i32
    %c0_i32_0 = arith.constant 0 : i32
    %c0_i32_1 = arith.constant 0 : i32
    %c0_i32_2 = arith.constant 0 : i32
    return %arg0, %c0_i32, %c0_i32_0, %c0_i32_1 : i32, i32, i32, i32
  }
  func.func @transform_1(%arg0: i32) -> (i32, i32, i32) {
    %c0_i32 = arith.constant 0 : i32
    %c0_i32_0 = arith.constant 0 : i32
    %c0_i32_1 = arith.constant 0 : i32
    %c0_i32_2 = arith.constant 0 : i32
    return %c0_i32, %c0_i32_0, %c0_i32_1 : i32, i32, i32
  }
  func.func @transform_2(%arg0: i32) -> (i32, i32) {
    %c0_i32 = arith.constant 0 : i32
    %c0_i32_0 = arith.constant 0 : i32
    %c0_i32_1 = arith.constant 0 : i32
    return %c0_i32, %c0_i32_0 : i32, i32
  }
  func.func @transform_3(%arg0: i32) -> (i32, i32, i32) {
    %c0_i32 = arith.constant 0 : i32
    %c0_i32_0 = arith.constant 0 : i32
    %c0_i32_1 = arith.constant 0 : i32
    return %arg0, %c0_i32, %c0_i32_0 : i32, i32, i32
  }
  func.func @transform_4(%arg0: i32) -> (i32, i32) {
    %c0_i32 = arith.constant 0 : i32
    %c0_i32_0 = arith.constant 0 : i32
    %c0_i32_1 = arith.constant 0 : i32
    return %c0_i32, %c0_i32_0 : i32, i32
  }
  func.func @transform_5(%arg0: i32) -> (i32, i32) {
    %c0_i32 = arith.constant 0 : i32
    %c0_i32_0 = arith.constant 0 : i32
    %c0_i32_1 = arith.constant 0 : i32
    return %c0_i32, %c0_i32_0 : i32, i32
  }
  func.func @transform_6(%arg0: i32) -> (i32, i32, i32) {
    %c0_i32 = arith.constant 0 : i32
    %c0_i32_0 = arith.constant 0 : i32
    %c0_i32_1 = arith.constant 0 : i32
    return %arg0, %c0_i32, %c0_i32_0 : i32, i32, i32
  }
}

</mosaic_0001>

<llo_original>
// kernel: basic_block_forward.2
$region0: #{basic_block_forward.2}
  #allocation0 [shape = 'u32[]', space=smem, size = 0x4, offset = 0x4, fixed_abs, tag = 'smem constant byte address 0x4 - core index']
  #allocation1 [shape = 'u32[144,128]{1,0:T(1,128)}', space=vmem, size = 0x12000, scoped, tag = 'internal scratch']
  %s0 = inlined_call_operand.vmem [shape: bf16[2,9,9,16], index: 0, kind: input, shape index: {}]
  %s1 = inlined_call_operand.vmem [shape: bf16[9,4,128], index: 1, kind: input, shape index: {}]
  %s2 = inlined_call_operand.vmem [shape: f32[1,128], index: 2, kind: input, shape index: {}]
  %s3 = inlined_call_operand.vmem [shape: bf16[2,10,10,128], index: 3, kind: output, shape index: {}]
  %s4 = sld [smem:[#allocation0]]
  $region45: #{basic_block_forward.2} parent=0
    _
  %s6 = ssub.s32 1, %s4
  %s7 = scalar_select 0, %s6, %s4
  loop: start=0, step=1, limit=4
  $region2: #{basic_block_forward.2} parent=0 // loop_pre_header
    _
  $region3: #{basic_block_forward.2} parent=0 // loop_header
    %s9 = sphi 0, %s13
    %p10 = scmp.ge.s32.totalorder %s9, 4
    %s19 = sphi 0, %s21
    %s22 = sphi 0, %s19
    %s23 = sphi 0, %s22
    %s39 = sphi 0, %s23
    %s43 = sphi 0, %s43
    %s45 = sphi 0, %s43
    %s46 = sphi 0, %s45
    %s60 = sphi 0, %s46
    %s64 = sphi 0, %s64
    %s66 = sphi 0, %s64
    %s67 = sphi 0, %s66
    %s81 = sphi 0, %s67
    %s87 = sphi 0, %s89
    %s90 = sphi 0, %s87
    %s91 = sphi 0, %s90
    %s107 = sphi 0, %s91
  $region4: #{basic_block_forward.2} parent=0 // loop_header_branch
    %12 = sbr.rel (%p10) target = $region8
  $region5: #{basic_block_forward.2} parent=0 // loop_body
    %s14 = ssub.s32 %s9, 1
    %s15 = ssub.s32 %s9, 2
    %s16 = sadd.s32 %s9, 1
    %s17 = ssub.s32 %s9, %s16
    %p18 = scmp.eq.s32.totalorder %s17, 0
    %s20 = sadd.s32 %s19, 1
    %s21 = scalar_select %p18, %s19, %s20
    %p24 = pneg %p18
    %p25 = scmp.eq.s32.totalorder %s9, 1
    %p26 = por %p24, %p25
    %p27 = scmp.ne.s32.totalorder %s19, %s22
    %p28 = scmp.eq.s32.totalorder %s9, 0
    %p29 = por %p27, %p28
    %p30 = scmp.ne.s32.totalorder %s19, %s22
    %p31 = scmp.eq.s32.totalorder %s14, 1
    %p32 = por %p30, %p31
    %p33 = scmp.ne.s32.totalorder %s22, %s23
    %p34 = scmp.eq.s32.totalorder %s14, 0
    %p35 = por %p33, %p34
    %p36 = scmp.ne.s32.totalorder %s22, %s23
    %p37 = scmp.eq.s32.totalorder %s15, 1
    %p38 = por %p36, %p37
    %p40 = scmp.ne.s32.totalorder %s23, %s39
    %p41 = scmp.eq.s32.totalorder %s15, 0
    %p42 = por %p40, %p41
    %s44 = sadd.s32 %s43, 1
    %p47 = scmp.eq.s32.totalorder %s9, 1
    %p48 = scmp.ne.s32.totalorder %s43, %s45
    %p49 = scmp.eq.s32.totalorder %s9, 0
    %p50 = por %p48, %p49
    %p51 = scmp.ne.s32.totalorder %s43, %s45
    %p52 = scmp.eq.s32.totalorder %s14, 1
    %p53 = por %p51, %p52
    %p54 = scmp.ne.s32.totalorder %s45, %s46
    %p55 = scmp.eq.s32.totalorder %s14, 0
    %p56 = por %p54, %p55
    %p57 = scmp.ne.s32.totalorder %s45, %s46
    %p58 = scmp.eq.s32.totalorder %s15, 1
    %p59 = por %p57, %p58
    %p61 = scmp.ne.s32.totalorder %s46, %s60
    %p62 = scmp.eq.s32.totalorder %s15, 0
    %p63 = por %p61, %p62
    %s65 = sadd.s32 %s64, 1
    %p68 = scmp.eq.s32.totalorder %s9, 1
    %p69 = scmp.ne.s32.totalorder %s64, %s66
    %p70 = scmp.eq.s32.totalorder %s9, 0
    %p71 = por %p69, %p70
    %p72 = scmp.ne.s32.totalorder %s64, %s66
    %p73 = scmp.eq.s32.totalorder %s14, 1
    %p74 = por %p72, %p73
    %p75 = scmp.ne.s32.totalorder %s66, %s67
    %p76 = scmp.eq.s32.totalorder %s14, 0
    %p77 = por %p75, %p76
    %p78 = scmp.ne.s32.totalorder %s66, %s67
    %p79 = scmp.eq.s32.totalorder %s15, 1
    %p80 = por %p78, %p79
    %p82 = scmp.ne.s32.totalorder %s67, %s81
    %p83 = scmp.eq.s32.totalorder %s15, 0
    %p84 = por %p82, %p83
    %s85 = ssub.s32 %s9, %s16
    %p86 = scmp.eq.s32.totalorder %s85, 0
    %s88 = sadd.s32 %s87, 1
    %s89 = scalar_select %p86, %s87, %s88
    %p92 = pneg %p86
    %p93 = scmp.eq.s32.totalorder %s9, 1
    %p94 = por %p92, %p93
    %p95 = scmp.ne.s32.totalorder %s87, %s90
    %p96 = scmp.eq.s32.totalorder %s9, 0
    %p97 = por %p95, %p96
    %p98 = scmp.ne.s32.totalorder %s87, %s90
    %p99 = scmp.eq.s32.totalorder %s14, 1
    %p100 = por %p98, %p99
    %p101 = scmp.ne.s32.totalorder %s90, %s91
    %p102 = scmp.eq.s32.totalorder %s14, 0
    %p103 = por %p101, %p102
    %p104 = scmp.ne.s32.totalorder %s90, %s91
    %p105 = scmp.eq.s32.totalorder %s15, 1
    %p106 = por %p104, %p105
    %p108 = scmp.ne.s32.totalorder %s91, %s107
    %p109 = scmp.eq.s32.totalorder %s15, 0
    %p110 = por %p108, %p109
    %p111 = scmp.le.s32.totalorder 1, %s9
    %p112 = scmp.lt.s32.totalorder %s9, 3
    %p113 = pnand %p111, %p112
    %p114 = pneg %p113
    // Predicated region
    $region9: #{basic_block_forward.2} parent=5 // pred_check
      _
    $region10: #{basic_block_forward.2} parent=5 // pred_check_branch
      %116 = sbr.rel (%p113) target = $region12
    $region11: #{basic_block_forward.2} parent=5 // pred_region
      %s117 = ssub.s32 %s9, 1
      // Predicated region
      $region13: #{basic_block_forward.2} parent=11 // pred_check
        %p118 = pneg %p56
      $region14: #{basic_block_forward.2} parent=11 // pred_check_branch
        %120 = sbr.rel (%p118) target = $region16
      $region15: #{basic_block_forward.2} parent=11 // pred_region
        _
      $region16: #{basic_block_forward.2} parent=11 // pred_fallthru
        _
      // Predicated region
      $region17: #{basic_block_forward.2} parent=11 // pred_check
        %p121 = pneg %p77
      $region18: #{basic_block_forward.2} parent=11 // pred_check_branch
        %123 = sbr.rel (%p121) target = $region20
      $region19: #{basic_block_forward.2} parent=11 // pred_region
        _
      $region20: #{basic_block_forward.2} parent=11 // pred_fallthru
        _
    $region12: #{basic_block_forward.2} parent=5 // pred_fallthru
      _
    %p124 = scmp.lt.s32.totalorder %s9, 2
    // Predicated region
    $region21: #{basic_block_forward.2} parent=5 // pred_check
      %p125 = pneg %p124
    $region22: #{basic_block_forward.2} parent=5 // pred_check_branch
      %127 = sbr.rel (%p125) target = $region24
    $region23: #{basic_block_forward.2} parent=5 // pred_region
      // Predicated region
      $region25: #{basic_block_forward.2} parent=23 // pred_check
        %p128 = pneg %p29
      $region26: #{basic_block_forward.2} parent=23 // pred_check_branch
        %130 = sbr.rel (%p128) target = $region28
      $region27: #{basic_block_forward.2} parent=23 // pred_region
        %p131 = scmp.lt.s32.totalorder %s9, 1
        %s132 = scalar_select %p131, %s9, 1
        %s133 = smul.addr %s132, 18
        %s134 = smul.addr %s133, 4
        %s135 = scalar_lea.vmem %s0, %s134
      $region28: #{basic_block_forward.2} parent=23 // pred_fallthru
        _
    $region24: #{basic_block_forward.2} parent=5 // pred_fallthru
      _
    %p136 = scmp.le.s32.totalorder 1, %s9
    %p137 = scmp.lt.s32.totalorder %s9, 3
    %p138 = pnand %p136, %p137
    %p139 = pneg %p138
    // Predicated region
    $region29: #{basic_block_forward.2} parent=5 // pred_check
      _
    $region30: #{basic_block_forward.2} parent=5 // pred_check_branch
      %141 = sbr.rel (%p138) target = $region32
    $region31: #{basic_block_forward.2} parent=5 // pred_region
      %s142 = ssub.s32 %s9, 1
      %p143 = scmp.lt.s32.totalorder %s14, 1
      %s144 = scalar_select %p143, %s14, 1
      %s145 = smul.addr %s144, 18
      %s146 = smul.addr %s145, 4
      %s147 = scalar_lea.vmem %s0, %s146
      %p148 = pneg %p35
      %p149 = pneg %p32
      %p150 = pneg %p56
      %p151 = pneg %p53
      %p152 = pneg %p77
      %p153 = pneg %p74
      %p154 = pneg %p103
      %p155 = pneg %p100
      %p156 = scmp.lt.s32.totalorder %s14, 1
      %s157 = scalar_select %p156, %s14, 1
      %s158 = smul.addr %s157, 20
      %s159 = smul.addr %s158, 4
      %s160 = scalar_lea.vmem %s3, %s159
      %p161 = scmp.lt.s32.totalorder %s14, 1
      %s162 = scalar_select %p161, %s14, 1
      %s163 = smul.addr %s162, 18
      %s164 = smul.addr %s163, 4
      %s165 = scalar_lea.vmem %s0, %s164
      %p166 = scmp.lt.s32.totalorder %s14, 1
      %s167 = scalar_select %p166, %s14, 1
      %s168 = smul.addr %s167, 20
      %s169 = smul.addr %s168, 4
      %s170 = scalar_lea.vmem %s3, %s169
      %v172 = vld [vmem:[%s165] sm:$0xf]
      %v173 = vld [vmem:[%s165 + $0x8] sm:$0xf]
      %v174 = vld [vmem:[%s165 + $0x10] sm:$0xf]
      %v175 = vld [vmem:[%s165 + $0x18] sm:$0xf]
      %v176 = vld [vmem:[%s165 + $0x20] sm:$0xf]
      %v177 = vld [vmem:[%s165 + $0x28] sm:$0xf]
      %v178 = vld [vmem:[%s165 + $0x30] sm:$0xf]
      %v179 = vld [vmem:[%s165 + $0x38] sm:$0xf]
      %v180 = vld [vmem:[%s1] sm:$0x3]
      %s181 = scalar_lea.vmem %s1, 2
      %v182 = vld [vmem:[%s181] sm:$0x3]
      %v191 = vunpack.c.l.b16 %v172
      %v192 = vunpack.c.l.b16 %v173
      %v193 = vunpack.c.l.b16 %v174
      %v194 = vunpack.c.l.b16 %v175
      %v195 = vunpack.c.l.b16 %v176
      %v196 = vunpack.c.l.b16 %v177
      %v197 = vunpack.c.l.b16 %v178
      %v198 = vunpack.c.l.b16 %v179
      %v199 = vpack.c.b16 %v192, %v191
      %v200 = vpack.c.b16 %v194, %v193
      %v201 = vpack.c.b16 %v196, %v195
      %v202 = vpack.c.b16 %v198, %v197
      %203 = vrot.lane.b32.xlu0 %v199, 124
      %v204 = vpop.permute.xlu0 %203
      %205 = vrot.lane.b32.xlu0 %v200, 124
      %v206 = vpop.permute.xlu0 %205
      %207 = vrot.lane.b32.xlu0 %v201, 124
      %v208 = vpop.permute.xlu0 %207
      %209 = vrot.lane.b32.xlu0 %v202, 124
      %v210 = vpop.permute.xlu0 %209
      %vm211 = vcmask 31744
      %v213 = vsel %vm211, %v204, 0
      %v216 = vsel %vm211, %v206, 0
      %v219 = vsel %vm211, %v208, 0
      %v222 = vsel %vm211, %v210, 0
      %vm224 = vcmask 1041408
      %v226 = vsel %vm224, %v182, 0
      %228 = vmatprep.subr.bf16.mxu0 0
      %229 = vmatpush1.bf16.msra.mxu0 0
      %230 = vmatprep.subr.bf16.mxu0 0
      %231 = vmatpush1.bf16.msra.mxu0 0
      %232 = vmatprep.subr.bf16.mxu0 0
      %233 = vmatpush1.bf16.msra.mxu0 0
      %234 = vmatprep.subr.bf16.mxu0 0
      %235 = vmatpush1.bf16.msra.mxu0 0
      %236 = vmatprep.subr.bf16.mxu0 0
      %237 = vmatpush1.bf16.msra.mxu0 0
      %238 = vmatprep.subr.bf16.mxu0 0
      %239 = vmatpush1.bf16.msra.mxu0 0
      %240 = vmatprep.subr.bf16.mxu0 0
      %241 = vmatpush1.bf16.msra.mxu0 0
      %242 = vmatprep.subr.bf16.mxu0 0
      %243 = vmatpush1.bf16.msra.mxu0 %v226
      %244 = vmatprep.subr.bf16.mxu0 0
      %245 = vmatpush2.bf16.msra.mxu0 0
      %246 = vmatprep.subr.bf16.mxu0 0
      %247 = vmatpush2.bf16.msra.mxu0 0
      %248 = vmatprep.subr.bf16.mxu0 0
      %249 = vmatpush2.bf16.msra.mxu0 0
      %250 = vmatprep.subr.bf16.mxu0 0
      %251 = vmatpush2.bf16.msra.mxu0 0
      %252 = vmatprep.subr.bf16.mxu0 0
      %253 = vmatpush2.bf16.msra.mxu0 0
      %254 = vmatprep.subr.bf16.mxu0 0
      %255 = vmatpush2.bf16.msra.mxu0 0
      %256 = vmatprep.subr.bf16.mxu0 0
      %257 = vmatpush2.bf16.msra.mxu0 0
      %258 = vmatprep.subr.bf16.mxu0 0
      %259 = vmatpush2.bf16.msra.mxu0 0
      %260 = vmatprep.mubr.bf16.mxu0 0
      %261 = vmatmul.mubr.bf16.gmra.mxu0 %v213
      %v262 = vpop.f32.mrf.mxu0
      %v263 = vadd.f32 0.0, %v262
      %v264 = vpop.f32.mrf.mxu0
      %v265 = vpop.f32.mrf.mxu0
      %v266 = vadd.f32 0.0, %v265
      %v267 = vpop.f32.mrf.mxu0
      %268 = vmatprep.mubr.bf16.mxu0 0
      %269 = vmatmul.mubr.bf16.gmra.mxu0 %v216
      %v270 = vpop.f32.mrf.mxu0
      %v271 = vadd.f32 0.0, %v270
      %v272 = vpop.f32.mrf.mxu0
      %v273 = vpop.f32.mrf.mxu0
      %v274 = vadd.f32 0.0, %v273
      %v275 = vpop.f32.mrf.mxu0
      %276 = vmatprep.mubr.bf16.mxu0 0
      %277 = vmatmul.mubr.bf16.gmra.mxu0 %v219
      %v278 = vpop.f32.mrf.mxu0
      %v279 = vadd.f32 0.0, %v278
      %v280 = vpop.f32.mrf.mxu0
      %v281 = vpop.f32.mrf.mxu0
      %v282 = vadd.f32 0.0, %v281
      %v283 = vpop.f32.mrf.mxu0
      %284 = vmatprep.mubr.bf16.mxu0 0
      %285 = vmatmul.mubr.bf16.gmra.mxu0 %v222
      %v286 = vpop.f32.mrf.mxu0
      %v287 = vadd.f32 0.0, %v286
      %v288 = vpop.f32.mrf.mxu0
      %v289 = vpop.f32.mrf.mxu0
      %v290 = vadd.f32 0.0, %v289
      %v291 = vpop.f32.mrf.mxu0
      %292 = vdwg.mxu0
      %v294 = vsel %vm211, %v199, 0
      %v297 = vsel %vm211, %v200, 0
      %v300 = vsel %vm211, %v201, 0
      %v303 = vsel %vm211, %v202, 0
      %v306 = vsel %vm224, %v180, 0
      %308 = vmatprep.subr.bf16.mxu0 0
      %309 = vmatpush1.bf16.msra.mxu0 0
      %310 = vmatprep.subr.bf16.mxu0 0
      %311 = vmatpush1.bf16.msra.mxu0 0
      %312 = vmatprep.subr.bf16.mxu0 0
      %313 = vmatpush1.bf16.msra.mxu0 0
      %314 = vmatprep.subr.bf16.mxu0 0
      %315 = vmatpush1.bf16.msra.mxu0 0
      %316 = vmatprep.subr.bf16.mxu0 0
      %317 = vmatpush1.bf16.msra.mxu0 0
      %318 = vmatprep.subr.bf16.mxu0 0
      %319 = vmatpush1.bf16.msra.mxu0 0
      %320 = vmatprep.subr.bf16.mxu0 0
      %321 = vmatpush1.bf16.msra.mxu0 0
      %322 = vmatprep.subr.bf16.mxu0 0
      %323 = vmatpush1.bf16.msra.mxu0 %v306
      %324 = vmatprep.subr.bf16.mxu0 0
      %325 = vmatpush2.bf16.msra.mxu0 0
      %326 = vmatprep.subr.bf16.mxu0 0
      %327 = vmatpush2.bf16.msra.mxu0 0
      %328 = vmatprep.subr.bf16.mxu0 0
      %329 = vmatpush2.bf16.msra.mxu0 0
      %330 = vmatprep.subr.bf16.mxu0 0
      %331 = vmatpush2.bf16.msra.mxu0 0
      %332 = vmatprep.subr.bf16.mxu0 0
      %333 = vmatpush2.bf16.msra.mxu0 0
      %334 = vmatprep.subr.bf16.mxu0 0
      %335 = vmatpush2.bf16.msra.mxu0 0
      %336 = vmatprep.subr.bf16.mxu0 0
      %337 = vmatpush2.bf16.msra.mxu0 0
      %338 = vmatprep.subr.bf16.mxu0 0
      %339 = vmatpush2.bf16.msra.mxu0 0
      %340 = vmatprep.mubr.bf16.mxu0 0
      %341 = vmatmul.mubr.bf16.gmra.mxu0 %v294
      %v342 = vpop.f32.mrf.mxu0
      %v343 = vadd.f32 %v263, %v342
      %v344 = vpop.f32.mrf.mxu0
      %v345 = vpop.f32.mrf.mxu0
      %v346 = vadd.f32 %v266, %v345
      %v347 = vpop.f32.mrf.mxu0
      %348 = vmatprep.mubr.bf16.mxu0 0
      %349 = vmatmul.mubr.bf16.gmra.mxu0 %v297
      %v350 = vpop.f32.mrf.mxu0
      %v351 = vadd.f32 %v271, %v350
      %v352 = vpop.f32.mrf.mxu0
      %v353 = vpop.f32.mrf.mxu0
      %v354 = vadd.f32 %v274, %v353
      %v355 = vpop.f32.mrf.mxu0
      %356 = vmatprep.mubr.bf16.mxu0 0
      %357 = vmatmul.mubr.bf16.gmra.mxu0 %v300
      %v358 = vpop.f32.mrf.mxu0
      %v359 = vadd.f32 %v279, %v358
      %v360 = vpop.f32.mrf.mxu0
      %v361 = vpop.f32.mrf.mxu0
      %v362 = vadd.f32 %v282, %v361
      %v363 = vpop.f32.mrf.mxu0
      %364 = vmatprep.mubr.bf16.mxu0 0
      %365 = vmatmul.mubr.bf16.gmra.mxu0 %v303
      %v366 = vpop.f32.mrf.mxu0
      %v367 = vadd.f32 %v287, %v366
      %v368 = vpop.f32.mrf.mxu0
      %v369 = vpop.f32.mrf.mxu0
      %v370 = vadd.f32 %v290, %v369
      %v371 = vpop.f32.mrf.mxu0
      %372 = vdwg.mxu0
      %v373 = vld [vmem:[%s165] sm:$0xf]
      %v374 = vld [vmem:[%s165 + $0x4] sm:$0x1]
      %v375 = vld [vmem:[%s165 + $0x8] sm:$0xf]
      %v376 = vld [vmem:[%s165 + $0xc] sm:$0x1]
      %v377 = vld [vmem:[%s165 + $0x10] sm:$0xf]
      %v378 = vld [vmem:[%s165 + $0x14] sm:$0x1]
      %v379 = vld [vmem:[%s165 + $0x18] sm:$0xf]
      %v380 = vld [vmem:[%s165 + $0x1c] sm:$0x1]
      %v381 = vld [vmem:[%s165 + $0x20] sm:$0xf]
      %v382 = vld [vmem:[%s165 + $0x24] sm:$0x1]
      %v383 = vld [vmem:[%s165 + $0x28] sm:$0xf]
      %v384 = vld [vmem:[%s165 + $0x2c] sm:$0x1]
      %v385 = vld [vmem:[%s165 + $0x30] sm:$0xf]
      %v386 = vld [vmem:[%s165 + $0x34] sm:$0x1]
      %v387 = vld [vmem:[%s165 + $0x38] sm:$0xf]
      %v388 = vld [vmem:[%s165 + $0x3c] sm:$0x1]
      %vm389 = vsmask.f32 3328
      %vm390 = vsmask.f32 7440
      %vm391 = vmor %vm389, %vm390
      %v393 = vshrl.u32 %v373, 16
      %v395 = vrot.slane %v393, 4
      %v396 = vshll.u32 %v373, 16
      %v398 = vrot.slane %v396, 5
      %v399 = vor.u32 %v395, %v398
      %v400 = vrot.slane %v399, 4
      %v402 = vshll.u32 %v374, 16
      %v404 = vrot.slane %v402, 5
      %v405 = vsel %vm391, %v400, %v404
      %v407 = vshrl.u32 %v375, 16
      %v409 = vrot.slane %v407, 4
      %v410 = vshll.u32 %v375, 16
      %v412 = vrot.slane %v410, 5
      %v413 = vor.u32 %v409, %v412
      %v414 = vrot.slane %v413, 4
      %v416 = vshll.u32 %v376, 16
      %v418 = vrot.slane %v416, 5
      %v419 = vsel %vm391, %v414, %v418
      %v421 = vshrl.u32 %v377, 16
      %v423 = vrot.slane %v421, 4
      %v424 = vshll.u32 %v377, 16
      %v426 = vrot.slane %v424, 5
      %v427 = vor.u32 %v423, %v426
      %v428 = vrot.slane %v427, 4
      %v430 = vshll.u32 %v378, 16
      %v432 = vrot.slane %v430, 5
      %v433 = vsel %vm391, %v428, %v432
      %v435 = vshrl.u32 %v379, 16
      %v437 = vrot.slane %v435, 4
      %v438 = vshll.u32 %v379, 16
      %v440 = vrot.slane %v438, 5
      %v441 = vor.u32 %v437, %v440
      %v442 = vrot.slane %v441, 4
      %v444 = vshll.u32 %v380, 16
      %v446 = vrot.slane %v444, 5
      %v447 = vsel %vm391, %v442, %v446
      %v449 = vshrl.u32 %v381, 16
      %v451 = vrot.slane %v449, 4
      %v452 = vshll.u32 %v381, 16
      %v454 = vrot.slane %v452, 5
      %v455 = vor.u32 %v451, %v454
      %v456 = vrot.slane %v455, 4
      %v458 = vshll.u32 %v382, 16
      %v460 = vrot.slane %v458, 5
      %v461 = vsel %vm391, %v456, %v460
      %v463 = vshrl.u32 %v383, 16
      %v465 = vrot.slane %v463, 4
      %v466 = vshll.u32 %v383, 16
      %v468 = vrot.slane %v466, 5
      %v469 = vor.u32 %v465, %v468
      %v470 = vrot.slane %v469, 4
      %v472 = vshll.u32 %v384, 16
      %v474 = vrot.slane %v472, 5
      %v475 = vsel %vm391, %v470, %v474
      %v477 = vshrl.u32 %v385, 16
      %v479 = vrot.slane %v477, 4
      %v480 = vshll.u32 %v385, 16
      %v482 = vrot.slane %v480, 5
      %v483 = vor.u32 %v479, %v482
      %v484 = vrot.slane %v483, 4
      %v486 = vshll.u32 %v386, 16
      %v488 = vrot.slane %v486, 5
      %v489 = vsel %vm391, %v484, %v488
      %v491 = vshrl.u32 %v387, 16
      %v493 = vrot.slane %v491, 4
      %v494 = vshll.u32 %v387, 16
      %v496 = vrot.slane %v494, 5
      %v497 = vor.u32 %v493, %v496
      %v498 = vrot.slane %v497, 4
      %v500 = vshll.u32 %v388, 16
      %v502 = vrot.slane %v500, 5
      %v503 = vsel %vm391, %v498, %v502
      %s504 = scalar_lea.vmem %s1, 4
      %v505 = vld [vmem:[%s504] sm:$0x3]
      %v506 = vunpack.c.l.b16 %v405
      %v507 = vunpack.c.l.b16 %v419
      %v508 = vunpack.c.l.b16 %v433
      %v509 = vunpack.c.l.b16 %v447
      %v510 = vunpack.c.l.b16 %v461
      %v511 = vunpack.c.l.b16 %v475
      %v512 = vunpack.c.l.b16 %v489
      %v513 = vunpack.c.l.b16 %v503
      %v514 = vpack.c.b16 %v507, %v506
      %v515 = vpack.c.b16 %v509, %v508
      %v516 = vpack.c.b16 %v511, %v510
      %v517 = vpack.c.b16 %v513, %v512
      %v519 = vsel %vm211, %v514, 0
      %v522 = vsel %vm211, %v515, 0
      %v525 = vsel %vm211, %v516, 0
      %v528 = vsel %vm211, %v517, 0
      %v531 = vsel %vm224, %v505, 0
      %533 = vmatprep.subr.bf16.mxu0 0
      %534 = vmatpush1.bf16.msra.mxu0 0
      %535 = vmatprep.subr.bf16.mxu0 0
      %536 = vmatpush1.bf16.msra.mxu0 0
      %537 = vmatprep.subr.bf16.mxu0 0
      %538 = vmatpush1.bf16.msra.mxu0 0
      %539 = vmatprep.subr.bf16.mxu0 0
      %540 = vmatpush1.bf16.msra.mxu0 0
      %541 = vmatprep.subr.bf16.mxu0 0
      %542 = vmatpush1.bf16.msra.mxu0 0
      %543 = vmatprep.subr.bf16.mxu0 0
      %544 = vmatpush1.bf16.msra.mxu0 0
      %545 = vmatprep.subr.bf16.mxu0 0
      %546 = vmatpush1.bf16.msra.mxu0 0
      %547 = vmatprep.subr.bf16.mxu0 0
      %548 = vmatpush1.bf16.msra.mxu0 %v531
      %549 = vmatprep.subr.bf16.mxu0 0
      %550 = vmatpush2.bf16.msra.mxu0 0
      %551 = vmatprep.subr.bf16.mxu0 0
      %552 = vmatpush2.bf16.msra.mxu0 0
      %553 = vmatprep.subr.bf16.mxu0 0
      %554 = vmatpush2.bf16.msra.mxu0 0
      %555 = vmatprep.subr.bf16.mxu0 0
      %556 = vmatpush2.bf16.msra.mxu0 0
      %557 = vmatprep.subr.bf16.mxu0 0
      %558 = vmatpush2.bf16.msra.mxu0 0
      %559 = vmatprep.subr.bf16.mxu0 0
      %560 = vmatpush2.bf16.msra.mxu0 0
      %561 = vmatprep.subr.bf16.mxu0 0
      %562 = vmatpush2.bf16.msra.mxu0 0
      %563 = vmatprep.subr.bf16.mxu0 0
      %564 = vmatpush2.bf16.msra.mxu0 0
      %565 = vmatprep.mubr.bf16.mxu0 0
      %566 = vmatmul.mubr.bf16.gmra.mxu0 %v519
      %v567 = vpop.f32.mrf.mxu0
      %v568 = vadd.f32 0.0, %v567
      %v569 = vpop.f32.mrf.mxu0
      %v570 = vpop.f32.mrf.mxu0
      %v571 = vadd.f32 0.0, %v570
      %v572 = vpop.f32.mrf.mxu0
      %573 = vmatprep.mubr.bf16.mxu0 0
      %574 = vmatmul.mubr.bf16.gmra.mxu0 %v522
      %v575 = vpop.f32.mrf.mxu0
      %v576 = vadd.f32 0.0, %v575
      %v577 = vpop.f32.mrf.mxu0
      %v578 = vpop.f32.mrf.mxu0
      %v579 = vadd.f32 0.0, %v578
      %v580 = vpop.f32.mrf.mxu0
      %581 = vmatprep.mubr.bf16.mxu0 0
      %582 = vmatmul.mubr.bf16.gmra.mxu0 %v525
      %v583 = vpop.f32.mrf.mxu0
      %v584 = vadd.f32 0.0, %v583
      %v585 = vpop.f32.mrf.mxu0
      %v586 = vpop.f32.mrf.mxu0
      %v587 = vadd.f32 0.0, %v586
      %v588 = vpop.f32.mrf.mxu0
      %589 = vmatprep.mubr.bf16.mxu0 0
      %590 = vmatmul.mubr.bf16.gmra.mxu0 %v528
      %v591 = vpop.f32.mrf.mxu0
      %v592 = vadd.f32 0.0, %v591
      %v593 = vpop.f32.mrf.mxu0
      %v594 = vpop.f32.mrf.mxu0
      %v595 = vadd.f32 0.0, %v594
      %v596 = vpop.f32.mrf.mxu0
      %597 = vdwg.mxu0
      %v598 = vadd.f32 %v343, %v568
      %v599 = vadd.f32 %v346, %v571
      %v600 = vadd.f32 %v351, %v576
      %v601 = vadd.f32 %v354, %v579
      %v602 = vadd.f32 %v359, %v584
      %v603 = vadd.f32 %v362, %v587
      %v604 = vadd.f32 %v367, %v592
      %v605 = vadd.f32 %v370, %v595
      %s606 = scalar_lea.vmem %s1, 6
      %v607 = vld [vmem:[%s606] sm:$0x3]
      %608 = vrot.lane.b32.xlu0 %v199, 120
      %v609 = vpop.permute.xlu0 %608
      %610 = vrot.lane.b32.xlu0 %v200, 120
      %v611 = vpop.permute.xlu0 %610
      %612 = vrot.lane.b32.xlu0 %v201, 120
      %v613 = vpop.permute.xlu0 %612
      %614 = vrot.lane.b32.xlu0 %v202, 120
      %v615 = vpop.permute.xlu0 %614
      %v617 = vsel %vm211, %v609, 0
      %v620 = vsel %vm211, %v611, 0
      %v623 = vsel %vm211, %v613, 0
      %v626 = vsel %vm211, %v615, 0
      %v629 = vsel %vm224, %v607, 0
      %631 = vmatprep.subr.bf16.mxu0 0
      %632 = vmatpush1.bf16.msra.mxu0 0
      %633 = vmatprep.subr.bf16.mxu0 0
      %634 = vmatpush1.bf16.msra.mxu0 0
      %635 = vmatprep.subr.bf16.mxu0 0
      %636 = vmatpush1.bf16.msra.mxu0 0
      %637 = vmatprep.subr.bf16.mxu0 0
      %638 = vmatpush1.bf16.msra.mxu0 0
      %639 = vmatprep.subr.bf16.mxu0 0
      %640 = vmatpush1.bf16.msra.mxu0 0
      %641 = vmatprep.subr.bf16.mxu0 0
      %642 = vmatpush1.bf16.msra.mxu0 0
      %643 = vmatprep.subr.bf16.mxu0 0
      %644 = vmatpush1.bf16.msra.mxu0 0
      %645 = vmatprep.subr.bf16.mxu0 0
      %646 = vmatpush1.bf16.msra.mxu0 %v629
      %647 = vmatprep.subr.bf16.mxu0 0
      %648 = vmatpush2.bf16.msra.mxu0 0
      %649 = vmatprep.subr.bf16.mxu0 0
      %650 = vmatpush2.bf16.msra.mxu0 0
      %651 = vmatprep.subr.bf16.mxu0 0
      %652 = vmatpush2.bf16.msra.mxu0 0
      %653 = vmatprep.subr.bf16.mxu0 0
      %654 = vmatpush2.bf16.msra.mxu0 0
      %655 = vmatprep.subr.bf16.mxu0 0
      %656 = vmatpush2.bf16.msra.mxu0 0
      %657 = vmatprep.subr.bf16.mxu0 0
      %658 = vmatpush2.bf16.msra.mxu0 0
      %659 = vmatprep.subr.bf16.mxu0 0
      %660 = vmatpush2.bf16.msra.mxu0 0
      %661 = vmatprep.subr.bf16.mxu0 0
      %662 = vmatpush2.bf16.msra.mxu0 0
      %663 = vmatprep.mubr.bf16.mxu0 0
      %664 = vmatmul.mubr.bf16.gmra.mxu0 %v617
      %v665 = vpop.f32.mrf.mxu0
      %v666 = vadd.f32 0.0, %v665
      %v667 = vpop.f32.mrf.mxu0
      %v668 = vpop.f32.mrf.mxu0
      %v669 = vadd.f32 0.0, %v668
      %v670 = vpop.f32.mrf.mxu0
      %671 = vmatprep.mubr.bf16.mxu0 0
      %672 = vmatmul.mubr.bf16.gmra.mxu0 %v620
      %v673 = vpop.f32.mrf.mxu0
      %v674 = vadd.f32 0.0, %v673
      %v675 = vpop.f32.mrf.mxu0
      %v676 = vpop.f32.mrf.mxu0
      %v677 = vadd.f32 0.0, %v676
      %v678 = vpop.f32.mrf.mxu0
      %679 = vmatprep.mubr.bf16.mxu0 0
      %680 = vmatmul.mubr.bf16.gmra.mxu0 %v623
      %v681 = vpop.f32.mrf.mxu0
      %v682 = vadd.f32 0.0, %v681
      %v683 = vpop.f32.mrf.mxu0
      %v684 = vpop.f32.mrf.mxu0
      %v685 = vadd.f32 0.0, %v684
      %v686 = vpop.f32.mrf.mxu0
      %687 = vmatprep.mubr.bf16.mxu0 0
      %688 = vmatmul.mubr.bf16.gmra.mxu0 %v626
      %v689 = vpop.f32.mrf.mxu0
      %v690 = vadd.f32 0.0, %v689
      %v691 = vpop.f32.mrf.mxu0
      %v692 = vpop.f32.mrf.mxu0
      %v693 = vadd.f32 0.0, %v692
      %v694 = vpop.f32.mrf.mxu0
      %695 = vdwg.mxu0
      %v696 = vadd.f32 %v598, %v666
      %v697 = vadd.f32 %v599, %v669
      %v698 = vadd.f32 %v600, %v674
      %v699 = vadd.f32 %v601, %v677
      %v700 = vadd.f32 %v602, %v682
      %v701 = vadd.f32 %v603, %v685
      %v702 = vadd.f32 %v604, %v690
      %v703 = vadd.f32 %v605, %v693
      %s704 = scalar_lea.vmem %s1, 8
      %v705 = vld [vmem:[%s704] sm:$0x3]
      %706 = vrot.lane.b32.xlu0 %v199, 116
      %v707 = vpop.permute.xlu0 %706
      %708 = vrot.lane.b32.xlu0 %v200, 116
      %v709 = vpop.permute.xlu0 %708
      %710 = vrot.lane.b32.xlu0 %v201, 116
      %v711 = vpop.permute.xlu0 %710
      %712 = vrot.lane.b32.xlu0 %v202, 116
      %v713 = vpop.permute.xlu0 %712
      %v715 = vsel %vm211, %v707, 0
      %v718 = vsel %vm211, %v709, 0
      %v721 = vsel %vm211, %v711, 0
      %v724 = vsel %vm211, %v713, 0
      %v727 = vsel %vm224, %v705, 0
      %729 = vmatprep.subr.bf16.mxu0 0
      %730 = vmatpush1.bf16.msra.mxu0 0
      %731 = vmatprep.subr.bf16.mxu0 0
      %732 = vmatpush1.bf16.msra.mxu0 0
      %733 = vmatprep.subr.bf16.mxu0 0
      %734 = vmatpush1.bf16.msra.mxu0 0
      %735 = vmatprep.subr.bf16.mxu0 0
      %736 = vmatpush1.bf16.msra.mxu0 0
      %737 = vmatprep.subr.bf16.mxu0 0
      %738 = vmatpush1.bf16.msra.mxu0 0
      %739 = vmatprep.subr.bf16.mxu0 0
      %740 = vmatpush1.bf16.msra.mxu0 0
      %741 = vmatprep.subr.bf16.mxu0 0
      %742 = vmatpush1.bf16.msra.mxu0 0
      %743 = vmatprep.subr.bf16.mxu0 0
      %744 = vmatpush1.bf16.msra.mxu0 %v727
      %745 = vmatprep.subr.bf16.mxu0 0
      %746 = vmatpush2.bf16.msra.mxu0 0
      %747 = vmatprep.subr.bf16.mxu0 0
      %748 = vmatpush2.bf16.msra.mxu0 0
      %749 = vmatprep.subr.bf16.mxu0 0
      %750 = vmatpush2.bf16.msra.mxu0 0
      %751 = vmatprep.subr.bf16.mxu0 0
      %752 = vmatpush2.bf16.msra.mxu0 0
      %753 = vmatprep.subr.bf16.mxu0 0
      %754 = vmatpush2.bf16.msra.mxu0 0
      %755 = vmatprep.subr.bf16.mxu0 0
      %756 = vmatpush2.bf16.msra.mxu0 0
      %757 = vmatprep.subr.bf16.mxu0 0
      %758 = vmatpush2.bf16.msra.mxu0 0
      %759 = vmatprep.subr.bf16.mxu0 0
      %760 = vmatpush2.bf16.msra.mxu0 0
      %761 = vmatprep.mubr.bf16.mxu0 0
      %762 = vmatmul.mubr.bf16.gmra.mxu0 %v715
      %v763 = vpop.f32.mrf.mxu0
      %v764 = vadd.f32 0.0, %v763
      %v765 = vpop.f32.mrf.mxu0
      %v766 = vpop.f32.mrf.mxu0
      %v767 = vadd.f32 0.0, %v766
      %v768 = vpop.f32.mrf.mxu0
      %769 = vmatprep.mubr.bf16.mxu0 0
      %770 = vmatmul.mubr.bf16.gmra.mxu0 %v718
      %v771 = vpop.f32.mrf.mxu0
      %v772 = vadd.f32 0.0, %v771
      %v773 = vpop.f32.mrf.mxu0
      %v774 = vpop.f32.mrf.mxu0
      %v775 = vadd.f32 0.0, %v774
      %v776 = vpop.f32.mrf.mxu0
      %777 = vmatprep.mubr.bf16.mxu0 0
      %778 = vmatmul.mubr.bf16.gmra.mxu0 %v721
      %v779 = vpop.f32.mrf.mxu0
      %v780 = vadd.f32 0.0, %v779
      %v781 = vpop.f32.mrf.mxu0
      %v782 = vpop.f32.mrf.mxu0
      %v783 = vadd.f32 0.0, %v782
      %v784 = vpop.f32.mrf.mxu0
      %785 = vmatprep.mubr.bf16.mxu0 0
      %786 = vmatmul.mubr.bf16.gmra.mxu0 %v724
      %v787 = vpop.f32.mrf.mxu0
      %v788 = vadd.f32 0.0, %v787
      %v789 = vpop.f32.mrf.mxu0
      %v790 = vpop.f32.mrf.mxu0
      %v791 = vadd.f32 0.0, %v790
      %v792 = vpop.f32.mrf.mxu0
      %793 = vdwg.mxu0
      %v794 = vadd.f32 %v696, %v764
      %v795 = vadd.f32 %v697, %v767
      %v796 = vadd.f32 %v698, %v772
      %v797 = vadd.f32 %v699, %v775
      %v798 = vadd.f32 %v700, %v780
      %v799 = vadd.f32 %v701, %v783
      %v800 = vadd.f32 %v702, %v788
      %v801 = vadd.f32 %v703, %v791
      %s802 = scalar_lea.vmem %s1, 10
      %v803 = vld [vmem:[%s802] sm:$0x3]
      %804 = vrot.lane.b32.xlu0 %v514, 120
      %v805 = vpop.permute.xlu0 %804
      %806 = vrot.lane.b32.xlu0 %v515, 120
      %v807 = vpop.permute.xlu0 %806
      %808 = vrot.lane.b32.xlu0 %v516, 120
      %v809 = vpop.permute.xlu0 %808
      %810 = vrot.lane.b32.xlu0 %v517, 120
      %v811 = vpop.permute.xlu0 %810
      %v813 = vsel %vm211, %v805, 0
      %v816 = vsel %vm211, %v807, 0
      %v819 = vsel %vm211, %v809, 0
      %v822 = vsel %vm211, %v811, 0
      %v825 = vsel %vm224, %v803, 0
      %827 = vmatprep.subr.bf16.mxu0 0
      %828 = vmatpush1.bf16.msra.mxu0 0
      %829 = vmatprep.subr.bf16.mxu0 0
      %830 = vmatpush1.bf16.msra.mxu0 0
      %831 = vmatprep.subr.bf16.mxu0 0
      %832 = vmatpush1.bf16.msra.mxu0 0
      %833 = vmatprep.subr.bf16.mxu0 0
      %834 = vmatpush1.bf16.msra.mxu0 0
      %835 = vmatprep.subr.bf16.mxu0 0
      %836 = vmatpush1.bf16.msra.mxu0 0
      %837 = vmatprep.subr.bf16.mxu0 0
      %838 = vmatpush1.bf16.msra.mxu0 0
      %839 = vmatprep.subr.bf16.mxu0 0
      %840 = vmatpush1.bf16.msra.mxu0 0
      %841 = vmatprep.subr.bf16.mxu0 0
      %842 = vmatpush1.bf16.msra.mxu0 %v825
      %843 = vmatprep.subr.bf16.mxu0 0
      %844 = vmatpush2.bf16.msra.mxu0 0
      %845 = vmatprep.subr.bf16.mxu0 0
      %846 = vmatpush2.bf16.msra.mxu0 0
      %847 = vmatprep.subr.bf16.mxu0 0
      %848 = vmatpush2.bf16.msra.mxu0 0
      %849 = vmatprep.subr.bf16.mxu0 0
      %850 = vmatpush2.bf16.msra.mxu0 0
      %851 = vmatprep.subr.bf16.mxu0 0
      %852 = vmatpush2.bf16.msra.mxu0 0
      %853 = vmatprep.subr.bf16.mxu0 0
      %854 = vmatpush2.bf16.msra.mxu0 0
      %855 = vmatprep.subr.bf16.mxu0 0
      %856 = vmatpush2.bf16.msra.mxu0 0
      %857 = vmatprep.subr.bf16.mxu0 0
      %858 = vmatpush2.bf16.msra.mxu0 0
      %859 = vmatprep.mubr.bf16.mxu0 0
      %860 = vmatmul.mubr.bf16.gmra.mxu0 %v813
      %v861 = vpop.f32.mrf.mxu0
      %v862 = vadd.f32 0.0, %v861
      %v863 = vpop.f32.mrf.mxu0
      %v864 = vpop.f32.mrf.mxu0
      %v865 = vadd.f32 0.0, %v864
      %v866 = vpop.f32.mrf.mxu0
      %867 = vmatprep.mubr.bf16.mxu0 0
      %868 = vmatmul.mubr.bf16.gmra.mxu0 %v816
      %v869 = vpop.f32.mrf.mxu0
      %v870 = vadd.f32 0.0, %v869
      %v871 = vpop.f32.mrf.mxu0
      %v872 = vpop.f32.mrf.mxu0
      %v873 = vadd.f32 0.0, %v872
      %v874 = vpop.f32.mrf.mxu0
      %875 = vmatprep.mubr.bf16.mxu0 0
      %876 = vmatmul.mubr.bf16.gmra.mxu0 %v819
      %v877 = vpop.f32.mrf.mxu0
      %v878 = vadd.f32 0.0, %v877
      %v879 = vpop.f32.mrf.mxu0
      %v880 = vpop.f32.mrf.mxu0
      %v881 = vadd.f32 0.0, %v880
      %v882 = vpop.f32.mrf.mxu0
      %883 = vmatprep.mubr.bf16.mxu0 0
      %884 = vmatmul.mubr.bf16.gmra.mxu0 %v822
      %v885 = vpop.f32.mrf.mxu0
      %v886 = vadd.f32 0.0, %v885
      %v887 = vpop.f32.mrf.mxu0
      %v888 = vpop.f32.mrf.mxu0
      %v889 = vadd.f32 0.0, %v888
      %v890 = vpop.f32.mrf.mxu0
      %891 = vdwg.mxu0
      %v892 = vadd.f32 %v794, %v862
      %v893 = vadd.f32 %v795, %v865
      %v894 = vadd.f32 %v796, %v870
      %v895 = vadd.f32 %v797, %v873
      %v896 = vadd.f32 %v798, %v878
      %v897 = vadd.f32 %v799, %v881
      %v898 = vadd.f32 %v800, %v886
      %v899 = vadd.f32 %v801, %v889
      %s900 = scalar_lea.vmem %s165, 8
      %v901 = vld [vmem:[%s900] sm:$0xf]
      %v902 = vld [vmem:[%s900 + $0x8] sm:$0xf]
      %v903 = vld [vmem:[%s900 + $0x10] sm:$0xf]
      %v904 = vld [vmem:[%s900 + $0x18] sm:$0xf]
      %v905 = vld [vmem:[%s900 + $0x20] sm:$0xf]
      %v906 = vld [vmem:[%s900 + $0x28] sm:$0xf]
      %v907 = vld [vmem:[%s900 + $0x30] sm:$0xf]
      %v908 = vld [vmem:[%s900 + $0x38] sm:$0xf]
      %s909 = scalar_lea.vmem %s1, 12
      %v910 = vld [vmem:[%s909] sm:$0x3]
      %v919 = vunpack.c.l.b16 %v901
      %v920 = vunpack.c.l.b16 %v902
      %v921 = vunpack.c.l.b16 %v903
      %v922 = vunpack.c.l.b16 %v904
      %v923 = vunpack.c.l.b16 %v905
      %v924 = vunpack.c.l.b16 %v906
      %v925 = vunpack.c.l.b16 %v907
      %v926 = vunpack.c.l.b16 %v908
      %v927 = vpack.c.b16 %v920, %v919
      %v928 = vpack.c.b16 %v922, %v921
      %v929 = vpack.c.b16 %v924, %v923
      %v930 = vpack.c.b16 %v926, %v925
      %v932 = vsel %vm211, %v927, 0
      %v935 = vsel %vm211, %v928, 0
      %v938 = vsel %vm211, %v929, 0
      %v941 = vsel %vm211, %v930, 0
      %v944 = vsel %vm224, %v910, 0
      %946 = vmatprep.subr.bf16.mxu0 0
      %947 = vmatpush1.bf16.msra.mxu0 0
      %948 = vmatprep.subr.bf16.mxu0 0
      %949 = vmatpush1.bf16.msra.mxu0 0
      %950 = vmatprep.subr.bf16.mxu0 0
      %951 = vmatpush1.bf16.msra.mxu0 0
      %952 = vmatprep.subr.bf16.mxu0 0
      %953 = vmatpush1.bf16.msra.mxu0 0
      %954 = vmatprep.subr.bf16.mxu0 0
      %955 = vmatpush1.bf16.msra.mxu0 0
      %956 = vmatprep.subr.bf16.mxu0 0
      %957 = vmatpush1.bf16.msra.mxu0 0
      %958 = vmatprep.subr.bf16.mxu0 0
      %959 = vmatpush1.bf16.msra.mxu0 0
      %960 = vmatprep.subr.bf16.mxu0 0
      %961 = vmatpush1.bf16.msra.mxu0 %v944
      %962 = vmatprep.subr.bf16.mxu0 0
      %963 = vmatpush2.bf16.msra.mxu0 0
      %964 = vmatprep.subr.bf16.mxu0 0
      %965 = vmatpush2.bf16.msra.mxu0 0
      %966 = vmatprep.subr.bf16.mxu0 0
      %967 = vmatpush2.bf16.msra.mxu0 0
      %968 = vmatprep.subr.bf16.mxu0 0
      %969 = vmatpush2.bf16.msra.mxu0 0
      %970 = vmatprep.subr.bf16.mxu0 0
      %971 = vmatpush2.bf16.msra.mxu0 0
      %972 = vmatprep.subr.bf16.mxu0 0
      %973 = vmatpush2.bf16.msra.mxu0 0
      %974 = vmatprep.subr.bf16.mxu0 0
      %975 = vmatpush2.bf16.msra.mxu0 0
      %976 = vmatprep.subr.bf16.mxu0 0
      %977 = vmatpush2.bf16.msra.mxu0 0
      %978 = vmatprep.mubr.bf16.mxu0 0
      %979 = vmatmul.mubr.bf16.gmra.mxu0 %v932
      %v980 = vpop.f32.mrf.mxu0
      %v981 = vadd.f32 0.0, %v980
      %v982 = vpop.f32.mrf.mxu0
      %v983 = vpop.f32.mrf.mxu0
      %v984 = vadd.f32 0.0, %v983
      %v985 = vpop.f32.mrf.mxu0
      %986 = vmatprep.mubr.bf16.mxu0 0
      %987 = vmatmul.mubr.bf16.gmra.mxu0 %v935
      %v988 = vpop.f32.mrf.mxu0
      %v989 = vadd.f32 0.0, %v988
      %v990 = vpop.f32.mrf.mxu0
      %v991 = vpop.f32.mrf.mxu0
      %v992 = vadd.f32 0.0, %v991
      %v993 = vpop.f32.mrf.mxu0
      %994 = vmatprep.mubr.bf16.mxu0 0
      %995 = vmatmul.mubr.bf16.gmra.mxu0 %v938
      %v996 = vpop.f32.mrf.mxu0
      %v997 = vadd.f32 0.0, %v996
      %v998 = vpop.f32.mrf.mxu0
      %v999 = vpop.f32.mrf.mxu0
      %v1000 = vadd.f32 0.0, %v999
      %v1001 = vpop.f32.mrf.mxu0
      %1002 = vmatprep.mubr.bf16.mxu0 0
      %1003 = vmatmul.mubr.bf16.gmra.mxu0 %v941
      %v1004 = vpop.f32.mrf.mxu0
      %v1005 = vadd.f32 0.0, %v1004
      %v1006 = vpop.f32.mrf.mxu0
      %v1007 = vpop.f32.mrf.mxu0
      %v1008 = vadd.f32 0.0, %v1007
      %v1009 = vpop.f32.mrf.mxu0
      %1010 = vdwg.mxu0
      %v1011 = vadd.f32 %v892, %v981
      %v1012 = vadd.f32 %v893, %v984
      %v1013 = vadd.f32 %v894, %v989
      %v1014 = vadd.f32 %v895, %v992
      %v1015 = vadd.f32 %v896, %v997
      %v1016 = vadd.f32 %v897, %v1000
      %v1017 = vadd.f32 %v898, %v1005
      %v1018 = vadd.f32 %v899, %v1008
      %s1019 = scalar_lea.vmem %s1, 14
      %v1020 = vld [vmem:[%s1019] sm:$0x3]
      %1021 = vrot.lane.b32.xlu0 %v927, 124
      %v1022 = vpop.permute.xlu0 %1021
      %1023 = vrot.lane.b32.xlu0 %v928, 124
      %v1024 = vpop.permute.xlu0 %1023
      %1025 = vrot.lane.b32.xlu0 %v929, 124
      %v1026 = vpop.permute.xlu0 %1025
      %1027 = vrot.lane.b32.xlu0 %v930, 124
      %v1028 = vpop.permute.xlu0 %1027
      %v1030 = vsel %vm211, %v1022, 0
      %v1033 = vsel %vm211, %v1024, 0
      %v1036 = vsel %vm211, %v1026, 0
      %v1039 = vsel %vm211, %v1028, 0
      %v1042 = vsel %vm224, %v1020, 0
      %1044 = vmatprep.subr.bf16.mxu0 0
      %1045 = vmatpush1.bf16.msra.mxu0 0
      %1046 = vmatprep.subr.bf16.mxu0 0
      %1047 = vmatpush1.bf16.msra.mxu0 0
      %1048 = vmatprep.subr.bf16.mxu0 0
      %1049 = vmatpush1.bf16.msra.mxu0 0
      %1050 = vmatprep.subr.bf16.mxu0 0
      %1051 = vmatpush1.bf16.msra.mxu0 0
      %1052 = vmatprep.subr.bf16.mxu0 0
      %1053 = vmatpush1.bf16.msra.mxu0 0
      %1054 = vmatprep.subr.bf16.mxu0 0
      %1055 = vmatpush1.bf16.msra.mxu0 0
      %1056 = vmatprep.subr.bf16.mxu0 0
      %1057 = vmatpush1.bf16.msra.mxu0 0
      %1058 = vmatprep.subr.bf16.mxu0 0
      %1059 = vmatpush1.bf16.msra.mxu0 %v1042
      %1060 = vmatprep.subr.bf16.mxu0 0
      %1061 = vmatpush2.bf16.msra.mxu0 0
      %1062 = vmatprep.subr.bf16.mxu0 0
      %1063 = vmatpush2.bf16.msra.mxu0 0
      %1064 = vmatprep.subr.bf16.mxu0 0
      %1065 = vmatpush2.bf16.msra.mxu0 0
      %1066 = vmatprep.subr.bf16.mxu0 0
      %1067 = vmatpush2.bf16.msra.mxu0 0
      %1068 = vmatprep.subr.bf16.mxu0 0
      %1069 = vmatpush2.bf16.msra.mxu0 0
      %1070 = vmatprep.subr.bf16.mxu0 0
      %1071 = vmatpush2.bf16.msra.mxu0 0
      %1072 = vmatprep.subr.bf16.mxu0 0
      %1073 = vmatpush2.bf16.msra.mxu0 0
      %1074 = vmatprep.subr.bf16.mxu0 0
      %1075 = vmatpush2.bf16.msra.mxu0 0
      %1076 = vmatprep.mubr.bf16.mxu0 0
      %1077 = vmatmul.mubr.bf16.gmra.mxu0 %v1030
      %v1078 = vpop.f32.mrf.mxu0
      %v1079 = vadd.f32 0.0, %v1078
      %v1080 = vpop.f32.mrf.mxu0
      %v1081 = vpop.f32.mrf.mxu0
      %v1082 = vadd.f32 0.0, %v1081
      %v1083 = vpop.f32.mrf.mxu0
      %1084 = vmatprep.mubr.bf16.mxu0 0
      %1085 = vmatmul.mubr.bf16.gmra.mxu0 %v1033
      %v1086 = vpop.f32.mrf.mxu0
      %v1087 = vadd.f32 0.0, %v1086
      %v1088 = vpop.f32.mrf.mxu0
      %v1089 = vpop.f32.mrf.mxu0
      %v1090 = vadd.f32 0.0, %v1089
      %v1091 = vpop.f32.mrf.mxu0
      %1092 = vmatprep.mubr.bf16.mxu0 0
      %1093 = vmatmul.mubr.bf16.gmra.mxu0 %v1036
      %v1094 = vpop.f32.mrf.mxu0
      %v1095 = vadd.f32 0.0, %v1094
      %v1096 = vpop.f32.mrf.mxu0
      %v1097 = vpop.f32.mrf.mxu0
      %v1098 = vadd.f32 0.0, %v1097
      %v1099 = vpop.f32.mrf.mxu0
      %1100 = vmatprep.mubr.bf16.mxu0 0
      %1101 = vmatmul.mubr.bf16.gmra.mxu0 %v1039
      %v1102 = vpop.f32.mrf.mxu0
      %v1103 = vadd.f32 0.0, %v1102
      %v1104 = vpop.f32.mrf.mxu0
      %v1105 = vpop.f32.mrf.mxu0
      %v1106 = vadd.f32 0.0, %v1105
      %v1107 = vpop.f32.mrf.mxu0
      %1108 = vdwg.mxu0
      %v1109 = vadd.f32 %v1011, %v1079
      %v1110 = vadd.f32 %v1012, %v1082
      %v1111 = vadd.f32 %v1013, %v1087
      %v1112 = vadd.f32 %v1014, %v1090
      %v1113 = vadd.f32 %v1015, %v1095
      %v1114 = vadd.f32 %v1016, %v1098
      %v1115 = vadd.f32 %v1017, %v1103
      %v1116 = vadd.f32 %v1018, %v1106
      %v1117 = vld [vmem:[%s900] sm:$0xf]
      %v1118 = vld [vmem:[%s900 + $0x4] sm:$0x1]
      %v1119 = vld [vmem:[%s900 + $0x8] sm:$0xf]
      %v1120 = vld [vmem:[%s900 + $0xc] sm:$0x1]
      %v1121 = vld [vmem:[%s900 + $0x10] sm:$0xf]
      %v1122 = vld [vmem:[%s900 + $0x14] sm:$0x1]
      %v1123 = vld [vmem:[%s900 + $0x18] sm:$0xf]
      %v1124 = vld [vmem:[%s900 + $0x1c] sm:$0x1]
      %v1125 = vld [vmem:[%s900 + $0x20] sm:$0xf]
      %v1126 = vld [vmem:[%s900 + $0x24] sm:$0x1]
      %v1127 = vld [vmem:[%s900 + $0x28] sm:$0xf]
      %v1128 = vld [vmem:[%s900 + $0x2c] sm:$0x1]
      %v1129 = vld [vmem:[%s900 + $0x30] sm:$0xf]
      %v1130 = vld [vmem:[%s900 + $0x34] sm:$0x1]
      %v1131 = vld [vmem:[%s900 + $0x38] sm:$0xf]
      %v1132 = vld [vmem:[%s900 + $0x3c] sm:$0x1]
      %v1134 = vshrl.u32 %v1117, 16
      %v1136 = vrot.slane %v1134, 4
      %v1137 = vshll.u32 %v1117, 16
      %v1139 = vrot.slane %v1137, 5
      %v1140 = vor.u32 %v1136, %v1139
      %v1141 = vrot.slane %v1140, 4
      %v1143 = vshll.u32 %v1118, 16
      %v1145 = vrot.slane %v1143, 5
      %v1146 = vsel %vm391, %v1141, %v1145
      %v1148 = vshrl.u32 %v1119, 16
      %v1150 = vrot.slane %v1148, 4
      %v1151 = vshll.u32 %v1119, 16
      %v1153 = vrot.slane %v1151, 5
      %v1154 = vor.u32 %v1150, %v1153
      %v1155 = vrot.slane %v1154, 4
      %v1157 = vshll.u32 %v1120, 16
      %v1159 = vrot.slane %v1157, 5
      %v1160 = vsel %vm391, %v1155, %v1159
      %v1162 = vshrl.u32 %v1121, 16
      %v1164 = vrot.slane %v1162, 4
      %v1165 = vshll.u32 %v1121, 16
      %v1167 = vrot.slane %v1165, 5
      %v1168 = vor.u32 %v1164, %v1167
      %v1169 = vrot.slane %v1168, 4
      %v1171 = vshll.u32 %v1122, 16
      %v1173 = vrot.slane %v1171, 5
      %v1174 = vsel %vm391, %v1169, %v1173
      %v1176 = vshrl.u32 %v1123, 16
      %v1178 = vrot.slane %v1176, 4
      %v1179 = vshll.u32 %v1123, 16
      %v1181 = vrot.slane %v1179, 5
      %v1182 = vor.u32 %v1178, %v1181
      %v1183 = vrot.slane %v1182, 4
      %v1185 = vshll.u32 %v1124, 16
      %v1187 = vrot.slane %v1185, 5
      %v1188 = vsel %vm391, %v1183, %v1187
      %v1190 = vshrl.u32 %v1125, 16
      %v1192 = vrot.slane %v1190, 4
      %v1193 = vshll.u32 %v1125, 16
      %v1195 = vrot.slane %v1193, 5
      %v1196 = vor.u32 %v1192, %v1195
      %v1197 = vrot.slane %v1196, 4
      %v1199 = vshll.u32 %v1126, 16
      %v1201 = vrot.slane %v1199, 5
      %v1202 = vsel %vm391, %v1197, %v1201
      %v1204 = vshrl.u32 %v1127, 16
      %v1206 = vrot.slane %v1204, 4
      %v1207 = vshll.u32 %v1127, 16
      %v1209 = vrot.slane %v1207, 5
      %v1210 = vor.u32 %v1206, %v1209
      %v1211 = vrot.slane %v1210, 4
      %v1213 = vshll.u32 %v1128, 16
      %v1215 = vrot.slane %v1213, 5
      %v1216 = vsel %vm391, %v1211, %v1215
      %v1218 = vshrl.u32 %v1129, 16
      %v1220 = vrot.slane %v1218, 4
      %v1221 = vshll.u32 %v1129, 16
      %v1223 = vrot.slane %v1221, 5
      %v1224 = vor.u32 %v1220, %v1223
      %v1225 = vrot.slane %v1224, 4
      %v1227 = vshll.u32 %v1130, 16
      %v1229 = vrot.slane %v1227, 5
      %v1230 = vsel %vm391, %v1225, %v1229
      %v1232 = vshrl.u32 %v1131, 16
      %v1234 = vrot.slane %v1232, 4
      %v1235 = vshll.u32 %v1131, 16
      %v1237 = vrot.slane %v1235, 5
      %v1238 = vor.u32 %v1234, %v1237
      %v1239 = vrot.slane %v1238, 4
      %v1241 = vshll.u32 %v1132, 16
      %v1243 = vrot.slane %v1241, 5
      %v1244 = vsel %vm391, %v1239, %v1243
      %s1245 = scalar_lea.vmem %s1, 16
      %v1246 = vld [vmem:[%s1245] sm:$0x3]
      %v1247 = vunpack.c.l.b16 %v1146
      %v1248 = vunpack.c.l.b16 %v1160
      %v1249 = vunpack.c.l.b16 %v1174
      %v1250 = vunpack.c.l.b16 %v1188
      %v1251 = vunpack.c.l.b16 %v1202
      %v1252 = vunpack.c.l.b16 %v1216
      %v1253 = vunpack.c.l.b16 %v1230
      %v1254 = vunpack.c.l.b16 %v1244
      %v1255 = vpack.c.b16 %v1248, %v1247
      %v1256 = vpack.c.b16 %v1250, %v1249
      %v1257 = vpack.c.b16 %v1252, %v1251
      %v1258 = vpack.c.b16 %v1254, %v1253
      %v1260 = vsel %vm211, %v1255, 0
      %v1263 = vsel %vm211, %v1256, 0
      %v1266 = vsel %vm211, %v1257, 0
      %v1269 = vsel %vm211, %v1258, 0
      %v1272 = vsel %vm224, %v1246, 0
      %1274 = vmatprep.subr.bf16.mxu0 0
      %1275 = vmatpush1.bf16.msra.mxu0 0
      %1276 = vmatprep.subr.bf16.mxu0 0
      %1277 = vmatpush1.bf16.msra.mxu0 0
      %1278 = vmatprep.subr.bf16.mxu0 0
      %1279 = vmatpush1.bf16.msra.mxu0 0
      %1280 = vmatprep.subr.bf16.mxu0 0
      %1281 = vmatpush1.bf16.msra.mxu0 0
      %1282 = vmatprep.subr.bf16.mxu0 0
      %1283 = vmatpush1.bf16.msra.mxu0 0
      %1284 = vmatprep.subr.bf16.mxu0 0
      %1285 = vmatpush1.bf16.msra.mxu0 0
      %1286 = vmatprep.subr.bf16.mxu0 0
      %1287 = vmatpush1.bf16.msra.mxu0 0
      %1288 = vmatprep.subr.bf16.mxu0 0
      %1289 = vmatpush1.bf16.msra.mxu0 %v1272
      %1290 = vmatprep.subr.bf16.mxu0 0
      %1291 = vmatpush2.bf16.msra.mxu0 0
      %1292 = vmatprep.subr.bf16.mxu0 0
      %1293 = vmatpush2.bf16.msra.mxu0 0
      %1294 = vmatprep.subr.bf16.mxu0 0
      %1295 = vmatpush2.bf16.msra.mxu0 0
      %1296 = vmatprep.subr.bf16.mxu0 0
      %1297 = vmatpush2.bf16.msra.mxu0 0
      %1298 = vmatprep.subr.bf16.mxu0 0
      %1299 = vmatpush2.bf16.msra.mxu0 0
      %1300 = vmatprep.subr.bf16.mxu0 0
      %1301 = vmatpush2.bf16.msra.mxu0 0
      %1302 = vmatprep.subr.bf16.mxu0 0
      %1303 = vmatpush2.bf16.msra.mxu0 0
      %1304 = vmatprep.subr.bf16.mxu0 0
      %1305 = vmatpush2.bf16.msra.mxu0 0
      %1306 = vmatprep.mubr.bf16.mxu0 0
      %1307 = vmatmul.mubr.bf16.gmra.mxu0 %v1260
      %v1308 = vpop.f32.mrf.mxu0
      %v1309 = vadd.f32 0.0, %v1308
      %v1310 = vpop.f32.mrf.mxu0
      %v1311 = vpop.f32.mrf.mxu0
      %v1312 = vadd.f32 0.0, %v1311
      %v1313 = vpop.f32.mrf.mxu0
      %1314 = vmatprep.mubr.bf16.mxu0 0
      %1315 = vmatmul.mubr.bf16.gmra.mxu0 %v1263
      %v1316 = vpop.f32.mrf.mxu0
      %v1317 = vadd.f32 0.0, %v1316
      %v1318 = vpop.f32.mrf.mxu0
      %v1319 = vpop.f32.mrf.mxu0
      %v1320 = vadd.f32 0.0, %v1319
      %v1321 = vpop.f32.mrf.mxu0
      %1322 = vmatprep.mubr.bf16.mxu0 0
      %1323 = vmatmul.mubr.bf16.gmra.mxu0 %v1266
      %v1324 = vpop.f32.mrf.mxu0
      %v1325 = vadd.f32 0.0, %v1324
      %v1326 = vpop.f32.mrf.mxu0
      %v1327 = vpop.f32.mrf.mxu0
      %v1328 = vadd.f32 0.0, %v1327
      %v1329 = vpop.f32.mrf.mxu0
      %1330 = vmatprep.mubr.bf16.mxu0 0
      %1331 = vmatmul.mubr.bf16.gmra.mxu0 %v1269
      %v1332 = vpop.f32.mrf.mxu0
      %v1333 = vadd.f32 0.0, %v1332
      %v1334 = vpop.f32.mrf.mxu0
      %v1335 = vpop.f32.mrf.mxu0
      %v1336 = vadd.f32 0.0, %v1335
      %v1337 = vpop.f32.mrf.mxu0
      %1338 = vdwg.mxu0
      %v1339 = vadd.f32 %v1109, %v1309
      %v1340 = vadd.f32 %v1110, %v1312
      %v1341 = vadd.f32 %v1111, %v1317
      %v1342 = vadd.f32 %v1112, %v1320
      %v1343 = vadd.f32 %v1113, %v1325
      %v1344 = vadd.f32 %v1114, %v1328
      %v1345 = vadd.f32 %v1115, %v1333
      %v1346 = vadd.f32 %v1116, %v1336
      %v1347 = vld [vmem:[%s2] sm:$0x1]
      %v1349 = vlaneseq
      %v1350 = vshrl.u32 %v1349, 7
      %v1351 = vsub.s32 0, %v1350
      %v1352 = vrot.slane %v1347, %v1351
      %v1354 = vadd.f32 %v1339, %v1352
      %v1355 = vadd.f32 %v1340, %v1352
      %v1356 = vadd.f32 %v1341, %v1352
      %v1357 = vadd.f32 %v1342, %v1352
      %v1358 = vadd.f32 %v1343, %v1352
      %v1359 = vadd.f32 %v1344, %v1352
      %v1360 = vadd.f32 %v1345, %v1352
      %v1361 = vadd.f32 %v1346, %v1352
      %v1362 = vmax.f32 %v1354, 0.0
      %v1363 = vmax.f32 %v1355, 0.0
      %v1364 = vmax.f32 %v1356, 0.0
      %v1365 = vmax.f32 %v1357, 0.0
      %v1366 = vmax.f32 %v1358, 0.0
      %v1367 = vmax.f32 %v1359, 0.0
      %v1368 = vmax.f32 %v1360, 0.0
      %v1369 = vmax.f32 %v1361, 0.0
      %1370 = vst [vmem:[%s170] sm:$0xf] 0
      %1371 = vst [vmem:[%s170 + $0x4] sm:$0x1] 0
      %1372 = vst [vmem:[%s170 + $0x8] sm:$0xf] 0
      %1373 = vst [vmem:[%s170 + $0xc] sm:$0x1] 0
      %1374 = vst [vmem:[%s170 + $0x10] sm:$0xf] 0
      %1375 = vst [vmem:[%s170 + $0x14] sm:$0x1] 0
      %1376 = vst [vmem:[%s170 + $0x18] sm:$0xf] 0
      %1377 = vst [vmem:[%s170 + $0x1c] sm:$0x1] 0
      %1378 = vst [vmem:[%s170 + $0x20] sm:$0xf] 0
      %1379 = vst [vmem:[%s170 + $0x24] sm:$0x1] 0
      %1380 = vst [vmem:[%s170 + $0x28] sm:$0xf] 0
      %1381 = vst [vmem:[%s170 + $0x2c] sm:$0x1] 0
      %1382 = vst [vmem:[%s170 + $0x30] sm:$0xf] 0
      %1383 = vst [vmem:[%s170 + $0x34] sm:$0x1] 0
      %1384 = vst [vmem:[%s170 + $0x38] sm:$0xf] 0
      %1385 = vst [vmem:[%s170 + $0x3c] sm:$0x1] 0
      %1386 = vst [vmem:[%s170 + $0x40] sm:$0xf] 0
      %1387 = vst [vmem:[%s170 + $0x44] sm:$0x1] 0
      %1388 = vst [vmem:[%s170 + $0x48] sm:$0xf] 0
      %1389 = vst [vmem:[%s170 + $0x4c] sm:$0x1] 0
      %v1390 = vpack.c.bf16 %v1362, %v1362
      %v1391 = vpack.c.bf16 %v1363, %v1363
      %v1392 = vpack.c.bf16 %v1364, %v1364
      %v1393 = vpack.c.bf16 %v1365, %v1365
      %v1394 = vpack.c.bf16 %v1366, %v1366
      %v1395 = vpack.c.bf16 %v1367, %v1367
      %v1396 = vpack.c.bf16 %v1368, %v1368
      %v1397 = vpack.c.bf16 %v1369, %v1369
      %v1406 = vunpack.c.l.b16 %v1390
      %v1407 = vunpack.c.l.b16 %v1391
      %v1408 = vunpack.c.l.b16 %v1392
      %v1409 = vunpack.c.l.b16 %v1393
      %v1410 = vunpack.c.l.b16 %v1394
      %v1411 = vunpack.c.l.b16 %v1395
      %v1412 = vunpack.c.l.b16 %v1396
      %v1413 = vunpack.c.l.b16 %v1397
      %v1414 = vpack.c.b16 %v1406, %v1406
      %v1415 = vpack.c.b16 %v1407, %v1407
      %v1416 = vpack.c.b16 %v1408, %v1408
      %v1417 = vpack.c.b16 %v1409, %v1409
      %v1418 = vpack.c.b16 %v1410, %v1410
      %v1419 = vpack.c.b16 %v1411, %v1411
      %v1420 = vpack.c.b16 %v1412, %v1412
      %v1421 = vpack.c.b16 %v1413, %v1413
      %v1423 = vshrl.u32 %v1414, 16
      %v1425 = vrot.slane %v1423, 7
      %v1426 = vshll.u32 %v1414, 16
      %v1428 = vor.u32 %v1425, %v1426
      %v1429 = vrot.slane %v1425, 4
      %v1431 = vshrl.u32 %v1415, 16
      %v1433 = vrot.slane %v1431, 7
      %v1434 = vshll.u32 %v1415, 16
      %v1436 = vor.u32 %v1433, %v1434
      %v1437 = vrot.slane %v1433, 4
      %v1439 = vshrl.u32 %v1416, 16
      %v1441 = vrot.slane %v1439, 7
      %v1442 = vshll.u32 %v1416, 16
      %v1444 = vor.u32 %v1441, %v1442
      %v1445 = vrot.slane %v1441, 4
      %v1447 = vshrl.u32 %v1417, 16
      %v1449 = vrot.slane %v1447, 7
      %v1450 = vshll.u32 %v1417, 16
      %v1452 = vor.u32 %v1449, %v1450
      %v1453 = vrot.slane %v1449, 4
      %v1455 = vshrl.u32 %v1418, 16
      %v1457 = vrot.slane %v1455, 7
      %v1458 = vshll.u32 %v1418, 16
      %v1460 = vor.u32 %v1457, %v1458
      %v1461 = vrot.slane %v1457, 4
      %v1463 = vshrl.u32 %v1419, 16
      %v1465 = vrot.slane %v1463, 7
      %v1466 = vshll.u32 %v1419, 16
      %v1468 = vor.u32 %v1465, %v1466
      %v1469 = vrot.slane %v1465, 4
      %v1471 = vshrl.u32 %v1420, 16
      %v1473 = vrot.slane %v1471, 7
      %v1474 = vshll.u32 %v1420, 16
      %v1476 = vor.u32 %v1473, %v1474
      %v1477 = vrot.slane %v1473, 4
      %v1479 = vshrl.u32 %v1421, 16
      %v1481 = vrot.slane %v1479, 7
      %v1482 = vshll.u32 %v1421, 16
      %v1484 = vor.u32 %v1481, %v1482
      %v1485 = vrot.slane %v1481, 4
      %s1502 = scalar_lea.vmem %s170, 8
      %vm1503 = vcmask 1043456
      %vm1504 = vsmask.f32 7938
      %vm1505 = vmand %vm1503, %vm1504
      %v1506 = vld [vmem:[%s1502] sm:$0xf]
      %v1507 = vsel %vm1505, %v1428, %v1506
      %1508 = vst [vmem:[%s1502] sm:$0xf] %v1507
      %vm1509 = vcmask 1040384
      %vm1510 = vsmask.f32 256
      %vm1511 = vmand %vm1509, %vm1510
      %v1512 = vld [vmem:[%s1502 + $0x4] sm:$0x1]
      %v1513 = vsel %vm1511, %v1429, %v1512
      %1514 = vst [vmem:[%s1502 + $0x4] sm:$0x1] %v1513
      %v1515 = vld [vmem:[%s1502 + $0x8] sm:$0xf]
      %v1516 = vsel %vm1505, %v1436, %v1515
      %1517 = vst [vmem:[%s1502 + $0x8] sm:$0xf] %v1516
      %v1518 = vld [vmem:[%s1502 + $0xc] sm:$0x1]
      %v1519 = vsel %vm1511, %v1437, %v1518
      %1520 = vst [vmem:[%s1502 + $0xc] sm:$0x1] %v1519
      %v1521 = vld [vmem:[%s1502 + $0x10] sm:$0xf]
      %v1522 = vsel %vm1505, %v1444, %v1521
      %1523 = vst [vmem:[%s1502 + $0x10] sm:$0xf] %v1522
      %v1524 = vld [vmem:[%s1502 + $0x14] sm:$0x1]
      %v1525 = vsel %vm1511, %v1445, %v1524
      %1526 = vst [vmem:[%s1502 + $0x14] sm:$0x1] %v1525
      %v1527 = vld [vmem:[%s1502 + $0x18] sm:$0xf]
      %v1528 = vsel %vm1505, %v1452, %v1527
      %1529 = vst [vmem:[%s1502 + $0x18] sm:$0xf] %v1528
      %v1530 = vld [vmem:[%s1502 + $0x1c] sm:$0x1]
      %v1531 = vsel %vm1511, %v1453, %v1530
      %1532 = vst [vmem:[%s1502 + $0x1c] sm:$0x1] %v1531
      %v1533 = vld [vmem:[%s1502 + $0x20] sm:$0xf]
      %v1534 = vsel %vm1505, %v1460, %v1533
      %1535 = vst [vmem:[%s1502 + $0x20] sm:$0xf] %v1534
      %v1536 = vld [vmem:[%s1502 + $0x24] sm:$0x1]
      %v1537 = vsel %vm1511, %v1461, %v1536
      %1538 = vst [vmem:[%s1502 + $0x24] sm:$0x1] %v1537
      %v1539 = vld [vmem:[%s1502 + $0x28] sm:$0xf]
      %v1540 = vsel %vm1505, %v1468, %v1539
      %1541 = vst [vmem:[%s1502 + $0x28] sm:$0xf] %v1540
      %v1542 = vld [vmem:[%s1502 + $0x2c] sm:$0x1]
      %v1543 = vsel %vm1511, %v1469, %v1542
      %1544 = vst [vmem:[%s1502 + $0x2c] sm:$0x1] %v1543
      %v1545 = vld [vmem:[%s1502 + $0x30] sm:$0xf]
      %v1546 = vsel %vm1505, %v1476, %v1545
      %1547 = vst [vmem:[%s1502 + $0x30] sm:$0xf] %v1546
      %v1548 = vld [vmem:[%s1502 + $0x34] sm:$0x1]
      %v1549 = vsel %vm1511, %v1477, %v1548
      %1550 = vst [vmem:[%s1502 + $0x34] sm:$0x1] %v1549
      %v1551 = vld [vmem:[%s1502 + $0x38] sm:$0xf]
      %v1552 = vsel %vm1505, %v1484, %v1551
      %1553 = vst [vmem:[%s1502 + $0x38] sm:$0xf] %v1552
      %v1554 = vld [vmem:[%s1502 + $0x3c] sm:$0x1]
      %v1555 = vsel %vm1511, %v1485, %v1554
      %1556 = vst [vmem:[%s1502 + $0x3c] sm:$0x1] %v1555
      %p1557 = scmp.lt.s32.totalorder %s14, 1
      %s1558 = scalar_select %p1557, %s14, 1
      %s1559 = smul.addr %s1558, 20
      %s1560 = smul.addr %s1559, 4
      %s1561 = scalar_lea.vmem %s3, %s1560
      // Predicated region
      $region33: #{basic_block_forward.2} parent=31 // pred_check
        %p1562 = pneg %p100
      $region34: #{basic_block_forward.2} parent=31 // pred_check_branch
        %1564 = sbr.rel (%p1562) target = $region36
      $region35: #{basic_block_forward.2} parent=31 // pred_region
        _
      $region36: #{basic_block_forward.2} parent=31 // pred_fallthru
        _
    $region32: #{basic_block_forward.2} parent=5 // pred_fallthru
      _
    %p1565 = scmp.le.s32.totalorder 2, %s9
    // Predicated region
    $region37: #{basic_block_forward.2} parent=5 // pred_check
      %p1566 = pneg %p1565
    $region38: #{basic_block_forward.2} parent=5 // pred_check_branch
      %1568 = sbr.rel (%p1566) target = $region40
    $region39: #{basic_block_forward.2} parent=5 // pred_region
      %s1569 = ssub.s32 %s9, 2
      // Predicated region
      $region41: #{basic_block_forward.2} parent=39 // pred_check
        %p1570 = pneg %p106
      $region42: #{basic_block_forward.2} parent=39 // pred_check_branch
        %1572 = sbr.rel (%p1570) target = $region44
      $region43: #{basic_block_forward.2} parent=39 // pred_region
        %p1573 = scmp.lt.s32.totalorder %s15, 1
        %s1574 = scalar_select %p1573, %s15, 1
        %s1575 = smul.addr %s1574, 20
        %s1576 = smul.addr %s1575, 4
        %s1577 = scalar_lea.vmem %s3, %s1576
      $region44: #{basic_block_forward.2} parent=39 // pred_fallthru
        _
    $region40: #{basic_block_forward.2} parent=5 // pred_fallthru
      _
  $region6: #{basic_block_forward.2} parent=0 // loop_footer
    %s13 = sadd.s32 1, %s9
  $region7: #{basic_block_forward.2} parent=0 // loop_footer_branch
    %8 = sbr.rel target = $region3
  $region8: #{basic_block_forward.2} parent=0 // loop_exit
    _

// kernel: basic_block_forward.3
$region0: #{basic_block_forward.3}
  #allocation0 [shape = 'u32[]', space=smem, size = 0x4, offset = 0x4, fixed_abs, tag = 'smem constant byte address 0x4 - core index']
  #allocation1 [shape = 'u32[144,128]{1,0:T(1,128)}', space=vmem, size = 0x12000, scoped, tag = 'internal scratch']
  %s0 = inlined_call_operand.vmem [shape: bf16[2,10,10,128], index: 0, kind: input, shape index: {}]
  %s1 = inlined_call_operand.vmem [shape: bf16[9,128,128], index: 1, kind: input, shape index: {}]
  %s2 = inlined_call_operand.vmem [shape: f32[1,128], index: 2, kind: input, shape index: {}]
  %s3 = inlined_call_operand.vmem [shape: bf16[2,64,4], index: 3, kind: input, shape index: {}]
  %s4 = inlined_call_operand.vmem [shape: bf16[4,128], index: 4, kind: input, shape index: {}]
  %s5 = inlined_call_operand.vmem [shape: f32[1,128], index: 5, kind: input, shape index: {}]
  %s6 = inlined_call_operand.vmem [shape: f32[2,64,128], index: 6, kind: output, shape index: {}]
  %s7 = sld [smem:[#allocation0]]
  $region57: #{basic_block_forward.3} parent=0
    _
  %s9 = ssub.s32 1, %s7
  %s10 = scalar_select 0, %s9, %s7
  loop: start=0, step=1, limit=4
  $region2: #{basic_block_forward.3} parent=0 // loop_pre_header
    _
  $region3: #{basic_block_forward.3} parent=0 // loop_header
    %s12 = sphi 0, %s16
    %p13 = scmp.ge.s32.totalorder %s12, 4
    %s22 = sphi 0, %s24
    %s25 = sphi 0, %s22
    %s26 = sphi 0, %s25
    %s42 = sphi 0, %s26
    %s46 = sphi 0, %s46
    %s48 = sphi 0, %s46
    %s49 = sphi 0, %s48
    %s63 = sphi 0, %s49
    %s67 = sphi 0, %s67
    %s69 = sphi 0, %s67
    %s70 = sphi 0, %s69
    %s84 = sphi 0, %s70
    %s90 = sphi 0, %s92
    %s93 = sphi 0, %s90
    %s94 = sphi 0, %s93
    %s110 = sphi 0, %s94
    %s114 = sphi 0, %s114
    %s116 = sphi 0, %s114
    %s117 = sphi 0, %s116
    %s131 = sphi 0, %s117
    %s135 = sphi 0, %s135
    %s137 = sphi 0, %s135
    %s138 = sphi 0, %s137
    %s152 = sphi 0, %s138
    %s158 = sphi 0, %s160
    %s161 = sphi 0, %s158
    %s162 = sphi 0, %s161
    %s178 = sphi 0, %s162
  $region4: #{basic_block_forward.3} parent=0 // loop_header_branch
    %15 = sbr.rel (%p13) target = $region8
  $region5: #{basic_block_forward.3} parent=0 // loop_body
    %s17 = ssub.s32 %s12, 1
    %s18 = ssub.s32 %s12, 2
    %s19 = sadd.s32 %s12, 1
    %s20 = ssub.s32 %s12, %s19
    %p21 = scmp.eq.s32.totalorder %s20, 0
    %s23 = sadd.s32 %s22, 1
    %s24 = scalar_select %p21, %s22, %s23
    %p27 = pneg %p21
    %p28 = scmp.eq.s32.totalorder %s12, 1
    %p29 = por %p27, %p28
    %p30 = scmp.ne.s32.totalorder %s22, %s25
    %p31 = scmp.eq.s32.totalorder %s12, 0
    %p32 = por %p30, %p31
    %p33 = scmp.ne.s32.totalorder %s22, %s25
    %p34 = scmp.eq.s32.totalorder %s17, 1
    %p35 = por %p33, %p34
    %p36 = scmp.ne.s32.totalorder %s25, %s26
    %p37 = scmp.eq.s32.totalorder %s17, 0
    %p38 = por %p36, %p37
    %p39 = scmp.ne.s32.totalorder %s25, %s26
    %p40 = scmp.eq.s32.totalorder %s18, 1
    %p41 = por %p39, %p40
    %p43 = scmp.ne.s32.totalorder %s26, %s42
    %p44 = scmp.eq.s32.totalorder %s18, 0
    %p45 = por %p43, %p44
    %s47 = sadd.s32 %s46, 1
    %p50 = scmp.eq.s32.totalorder %s12, 1
    %p51 = scmp.ne.s32.totalorder %s46, %s48
    %p52 = scmp.eq.s32.totalorder %s12, 0
    %p53 = por %p51, %p52
    %p54 = scmp.ne.s32.totalorder %s46, %s48
    %p55 = scmp.eq.s32.totalorder %s17, 1
    %p56 = por %p54, %p55
    %p57 = scmp.ne.s32.totalorder %s48, %s49
    %p58 = scmp.eq.s32.totalorder %s17, 0
    %p59 = por %p57, %p58
    %p60 = scmp.ne.s32.totalorder %s48, %s49
    %p61 = scmp.eq.s32.totalorder %s18, 1
    %p62 = por %p60, %p61
    %p64 = scmp.ne.s32.totalorder %s49, %s63
    %p65 = scmp.eq.s32.totalorder %s18, 0
    %p66 = por %p64, %p65
    %s68 = sadd.s32 %s67, 1
    %p71 = scmp.eq.s32.totalorder %s12, 1
    %p72 = scmp.ne.s32.totalorder %s67, %s69
    %p73 = scmp.eq.s32.totalorder %s12, 0
    %p74 = por %p72, %p73
    %p75 = scmp.ne.s32.totalorder %s67, %s69
    %p76 = scmp.eq.s32.totalorder %s17, 1
    %p77 = por %p75, %p76
    %p78 = scmp.ne.s32.totalorder %s69, %s70
    %p79 = scmp.eq.s32.totalorder %s17, 0
    %p80 = por %p78, %p79
    %p81 = scmp.ne.s32.totalorder %s69, %s70
    %p82 = scmp.eq.s32.totalorder %s18, 1
    %p83 = por %p81, %p82
    %p85 = scmp.ne.s32.totalorder %s70, %s84
    %p86 = scmp.eq.s32.totalorder %s18, 0
    %p87 = por %p85, %p86
    %s88 = ssub.s32 %s12, %s19
    %p89 = scmp.eq.s32.totalorder %s88, 0
    %s91 = sadd.s32 %s90, 1
    %s92 = scalar_select %p89, %s90, %s91
    %p95 = pneg %p89
    %p96 = scmp.eq.s32.totalorder %s12, 1
    %p97 = por %p95, %p96
    %p98 = scmp.ne.s32.totalorder %s90, %s93
    %p99 = scmp.eq.s32.totalorder %s12, 0
    %p100 = por %p98, %p99
    %p101 = scmp.ne.s32.totalorder %s90, %s93
    %p102 = scmp.eq.s32.totalorder %s17, 1
    %p103 = por %p101, %p102
    %p104 = scmp.ne.s32.totalorder %s93, %s94
    %p105 = scmp.eq.s32.totalorder %s17, 0
    %p106 = por %p104, %p105
    %p107 = scmp.ne.s32.totalorder %s93, %s94
    %p108 = scmp.eq.s32.totalorder %s18, 1
    %p109 = por %p107, %p108
    %p111 = scmp.ne.s32.totalorder %s94, %s110
    %p112 = scmp.eq.s32.totalorder %s18, 0
    %p113 = por %p111, %p112
    %s115 = sadd.s32 %s114, 1
    %p118 = scmp.eq.s32.totalorder %s12, 1
    %p119 = scmp.ne.s32.totalorder %s114, %s116
    %p120 = scmp.eq.s32.totalorder %s12, 0
    %p121 = por %p119, %p120
    %p122 = scmp.ne.s32.totalorder %s114, %s116
    %p123 = scmp.eq.s32.totalorder %s17, 1
    %p124 = por %p122, %p123
    %p125 = scmp.ne.s32.totalorder %s116, %s117
    %p126 = scmp.eq.s32.totalorder %s17, 0
    %p127 = por %p125, %p126
    %p128 = scmp.ne.s32.totalorder %s116, %s117
    %p129 = scmp.eq.s32.totalorder %s18, 1
    %p130 = por %p128, %p129
    %p132 = scmp.ne.s32.totalorder %s117, %s131
    %p133 = scmp.eq.s32.totalorder %s18, 0
    %p134 = por %p132, %p133
    %s136 = sadd.s32 %s135, 1
    %p139 = scmp.eq.s32.totalorder %s12, 1
    %p140 = scmp.ne.s32.totalorder %s135, %s137
    %p141 = scmp.eq.s32.totalorder %s12, 0
    %p142 = por %p140, %p141
    %p143 = scmp.ne.s32.totalorder %s135, %s137
    %p144 = scmp.eq.s32.totalorder %s17, 1
    %p145 = por %p143, %p144
    %p146 = scmp.ne.s32.totalorder %s137, %s138
    %p147 = scmp.eq.s32.totalorder %s17, 0
    %p148 = por %p146, %p147
    %p149 = scmp.ne.s32.totalorder %s137, %s138
    %p150 = scmp.eq.s32.totalorder %s18, 1
    %p151 = por %p149, %p150
    %p153 = scmp.ne.s32.totalorder %s138, %s152
    %p154 = scmp.eq.s32.totalorder %s18, 0
    %p155 = por %p153, %p154
    %s156 = ssub.s32 %s12, %s19
    %p157 = scmp.eq.s32.totalorder %s156, 0
    %s159 = sadd.s32 %s158, 1
    %s160 = scalar_select %p157, %s158, %s159
    %p163 = pneg %p157
    %p164 = scmp.eq.s32.totalorder %s12, 1
    %p165 = por %p163, %p164
    %p166 = scmp.ne.s32.totalorder %s158, %s161
    %p167 = scmp.eq.s32.totalorder %s12, 0
    %p168 = por %p166, %p167
    %p169 = scmp.ne.s32.totalorder %s158, %s161
    %p170 = scmp.eq.s32.totalorder %s17, 1
    %p171 = por %p169, %p170
    %p172 = scmp.ne.s32.totalorder %s161, %s162
    %p173 = scmp.eq.s32.totalorder %s17, 0
    %p174 = por %p172, %p173
    %p175 = scmp.ne.s32.totalorder %s161, %s162
    %p176 = scmp.eq.s32.totalorder %s18, 1
    %p177 = por %p175, %p176
    %p179 = scmp.ne.s32.totalorder %s162, %s178
    %p180 = scmp.eq.s32.totalorder %s18, 0
    %p181 = por %p179, %p180
    %p182 = scmp.le.s32.totalorder 1, %s12
    %p183 = scmp.lt.s32.totalorder %s12, 3
    %p184 = pnand %p182, %p183
    %p185 = pneg %p184
    // Predicated region
    $region9: #{basic_block_forward.3} parent=5 // pred_check
      _
    $region10: #{basic_block_forward.3} parent=5 // pred_check_branch
      %187 = sbr.rel (%p184) target = $region12
    $region11: #{basic_block_forward.3} parent=5 // pred_region
      %s188 = ssub.s32 %s12, 1
      // Predicated region
      $region13: #{basic_block_forward.3} parent=11 // pred_check
        %p189 = pneg %p59
      $region14: #{basic_block_forward.3} parent=11 // pred_check_branch
        %191 = sbr.rel (%p189) target = $region16
      $region15: #{basic_block_forward.3} parent=11 // pred_region
        _
      $region16: #{basic_block_forward.3} parent=11 // pred_fallthru
        _
      // Predicated region
      $region17: #{basic_block_forward.3} parent=11 // pred_check
        %p192 = pneg %p80
      $region18: #{basic_block_forward.3} parent=11 // pred_check_branch
        %194 = sbr.rel (%p192) target = $region20
      $region19: #{basic_block_forward.3} parent=11 // pred_region
        _
      $region20: #{basic_block_forward.3} parent=11 // pred_fallthru
        _
      // Predicated region
      $region21: #{basic_block_forward.3} parent=11 // pred_check
        %p195 = pneg %p127
      $region22: #{basic_block_forward.3} parent=11 // pred_check_branch
        %197 = sbr.rel (%p195) target = $region24
      $region23: #{basic_block_forward.3} parent=11 // pred_region
        _
      $region24: #{basic_block_forward.3} parent=11 // pred_fallthru
        _
      // Predicated region
      $region25: #{basic_block_forward.3} parent=11 // pred_check
        %p198 = pneg %p148
      $region26: #{basic_block_forward.3} parent=11 // pred_check_branch
        %200 = sbr.rel (%p198) target = $region28
      $region27: #{basic_block_forward.3} parent=11 // pred_region
        _
      $region28: #{basic_block_forward.3} parent=11 // pred_fallthru
        _
    $region12: #{basic_block_forward.3} parent=5 // pred_fallthru
      _
    %p201 = scmp.lt.s32.totalorder %s12, 2
    // Predicated region
    $region29: #{basic_block_forward.3} parent=5 // pred_check
      %p202 = pneg %p201
    $region30: #{basic_block_forward.3} parent=5 // pred_check_branch
      %204 = sbr.rel (%p202) target = $region32
    $region31: #{basic_block_forward.3} parent=5 // pred_region
      // Predicated region
      $region33: #{basic_block_forward.3} parent=31 // pred_check
        %p205 = pneg %p32
      $region34: #{basic_block_forward.3} parent=31 // pred_check_branch
        %207 = sbr.rel (%p205) target = $region36
      $region35: #{basic_block_forward.3} parent=31 // pred_region
        %p208 = scmp.lt.s32.totalorder %s12, 1
        %s209 = scalar_select %p208, %s12, 1
        %s210 = smul.addr %s209, 20
        %s211 = smul.addr %s210, 4
        %s212 = scalar_lea.vmem %s0, %s211
      $region36: #{basic_block_forward.3} parent=31 // pred_fallthru
        _
      // Predicated region
      $region37: #{basic_block_forward.3} parent=31 // pred_check
        %p213 = pneg %p100
      $region38: #{basic_block_forward.3} parent=31 // pred_check_branch
        %215 = sbr.rel (%p213) target = $region40
      $region39: #{basic_block_forward.3} parent=31 // pred_region
        %p216 = scmp.lt.s32.totalorder %s12, 1
        %s217 = scalar_select %p216, %s12, 1
        %s218 = smul.addr %s217, 8
        %s219 = smul.addr %s218, 4
        %s220 = scalar_lea.vmem %s3, %s219
      $region40: #{basic_block_forward.3} parent=31 // pred_fallthru
        _
    $region32: #{basic_block_forward.3} parent=5 // pred_fallthru
      _
    %p221 = scmp.le.s32.totalorder 1, %s12
    %p222 = scmp.lt.s32.totalorder %s12, 3
    %p223 = pnand %p221, %p222
    %p224 = pneg %p223
    // Predicated region
    $region41: #{basic_block_forward.3} parent=5 // pred_check
      _
    $region42: #{basic_block_forward.3} parent=5 // pred_check_branch
      %226 = sbr.rel (%p223) target = $region44
    $region43: #{basic_block_forward.3} parent=5 // pred_region
      %s227 = ssub.s32 %s12, 1
      %p228 = scmp.lt.s32.totalorder %s17, 1
      %s229 = scalar_select %p228, %s17, 1
      %s230 = smul.addr %s229, 20
      %s231 = smul.addr %s230, 4
      %s232 = scalar_lea.vmem %s0, %s231
      %p233 = pneg %p38
      %p234 = pneg %p35
      %p235 = pneg %p59
      %p236 = pneg %p56
      %p237 = pneg %p80
      %p238 = pneg %p77
      %p239 = scmp.lt.s32.totalorder %s17, 1
      %s240 = scalar_select %p239, %s17, 1
      %s241 = smul.addr %s240, 8
      %s242 = smul.addr %s241, 4
      %s243 = scalar_lea.vmem %s3, %s242
      %p244 = pneg %p106
      %p245 = pneg %p103
      %p246 = pneg %p127
      %p247 = pneg %p124
      %p248 = pneg %p148
      %p249 = pneg %p145
      %p250 = pneg %p174
      %p251 = pneg %p171
      %p252 = scmp.lt.s32.totalorder %s17, 1
      %s253 = scalar_select %p252, %s17, 1
      %s254 = smul.addr %s253, 8
      %s255 = smul.addr %s254, 8
      %s256 = scalar_lea.vmem %s6, %s255
      %p257 = scmp.lt.s32.totalorder %s17, 1
      %s258 = scalar_select %p257, %s17, 1
      %s259 = smul.addr %s258, 20
      %s260 = smul.addr %s259, 4
      %s261 = scalar_lea.vmem %s0, %s260
      %p262 = scmp.lt.s32.totalorder %s17, 1
      %s263 = scalar_select %p262, %s17, 1
      %s264 = smul.addr %s263, 8
      %s265 = smul.addr %s264, 4
      %s266 = scalar_lea.vmem %s3, %s265
      %p267 = scmp.lt.s32.totalorder %s17, 1
      %s268 = scalar_select %p267, %s17, 1
      %s269 = smul.addr %s268, 8
      %s270 = smul.addr %s269, 8
      %s271 = scalar_lea.vmem %s6, %s270
      %v273 = vld [vmem:[%s261] sm:$0xf]
      %v274 = vld [vmem:[%s261 + $0x8] sm:$0xf]
      %v275 = vld [vmem:[%s261 + $0x10] sm:$0xf]
      %v276 = vld [vmem:[%s261 + $0x18] sm:$0xf]
      %v277 = vld [vmem:[%s261 + $0x20] sm:$0xf]
      %v278 = vld [vmem:[%s261 + $0x28] sm:$0xf]
      %v279 = vld [vmem:[%s261 + $0x30] sm:$0xf]
      %v280 = vld [vmem:[%s261 + $0x38] sm:$0xf]
      %v281 = vld [vmem:[%s1] sm:$0xf]
      %v282 = vld [vmem:[%s1 + $0x4] sm:$0xf]
      %v283 = vld [vmem:[%s1 + $0x8] sm:$0xf]
      %v284 = vld [vmem:[%s1 + $0xc] sm:$0xf]
      %v285 = vld [vmem:[%s1 + $0x10] sm:$0xf]
      %v286 = vld [vmem:[%s1 + $0x14] sm:$0xf]
      %v287 = vld [vmem:[%s1 + $0x18] sm:$0xf]
      %v288 = vld [vmem:[%s1 + $0x1c] sm:$0xf]
      %v289 = vld [vmem:[%s1 + $0x20] sm:$0xf]
      %v290 = vld [vmem:[%s1 + $0x24] sm:$0xf]
      %v291 = vld [vmem:[%s1 + $0x28] sm:$0xf]
      %v292 = vld [vmem:[%s1 + $0x2c] sm:$0xf]
      %v293 = vld [vmem:[%s1 + $0x30] sm:$0xf]
      %v294 = vld [vmem:[%s1 + $0x34] sm:$0xf]
      %v295 = vld [vmem:[%s1 + $0x38] sm:$0xf]
      %v296 = vld [vmem:[%s1 + $0x3c] sm:$0xf]
      %v297 = vld [vmem:[%s261 + $0x4] sm:$0x1]
      %v298 = vld [vmem:[%s261 + $0xc] sm:$0x1]
      %v299 = vld [vmem:[%s261 + $0x14] sm:$0x1]
      %v300 = vld [vmem:[%s261 + $0x1c] sm:$0x1]
      %v301 = vld [vmem:[%s261 + $0x24] sm:$0x1]
      %v302 = vld [vmem:[%s261 + $0x2c] sm:$0x1]
      %v303 = vld [vmem:[%s261 + $0x34] sm:$0x1]
      %v304 = vld [vmem:[%s261 + $0x3c] sm:$0x1]
      %vm305 = vsmask.f32 3328
      %vm306 = vsmask.f32 7440
      %vm307 = vmor %vm305, %vm306
      %v309 = vshrl.u32 %v273, 16
      %v311 = vrot.slane %v309, 4
      %v312 = vshll.u32 %v273, 16
      %v314 = vrot.slane %v312, 5
      %v315 = vor.u32 %v311, %v314
      %v316 = vrot.slane %v315, 4
      %v318 = vshll.u32 %v297, 16
      %v320 = vrot.slane %v318, 5
      %v321 = vsel %vm307, %v316, %v320
      %v323 = vshrl.u32 %v274, 16
      %v325 = vrot.slane %v323, 4
      %v326 = vshll.u32 %v274, 16
      %v328 = vrot.slane %v326, 5
      %v329 = vor.u32 %v325, %v328
      %v330 = vrot.slane %v329, 4
      %v332 = vshll.u32 %v298, 16
      %v334 = vrot.slane %v332, 5
      %v335 = vsel %vm307, %v330, %v334
      %v337 = vshrl.u32 %v275, 16
      %v339 = vrot.slane %v337, 4
      %v340 = vshll.u32 %v275, 16
      %v342 = vrot.slane %v340, 5
      %v343 = vor.u32 %v339, %v342
      %v344 = vrot.slane %v343, 4
      %v346 = vshll.u32 %v299, 16
      %v348 = vrot.slane %v346, 5
      %v349 = vsel %vm307, %v344, %v348
      %v351 = vshrl.u32 %v276, 16
      %v353 = vrot.slane %v351, 4
      %v354 = vshll.u32 %v276, 16
      %v356 = vrot.slane %v354, 5
      %v357 = vor.u32 %v353, %v356
      %v358 = vrot.slane %v357, 4
      %v360 = vshll.u32 %v300, 16
      %v362 = vrot.slane %v360, 5
      %v363 = vsel %vm307, %v358, %v362
      %v365 = vshrl.u32 %v277, 16
      %v367 = vrot.slane %v365, 4
      %v368 = vshll.u32 %v277, 16
      %v370 = vrot.slane %v368, 5
      %v371 = vor.u32 %v367, %v370
      %v372 = vrot.slane %v371, 4
      %v374 = vshll.u32 %v301, 16
      %v376 = vrot.slane %v374, 5
      %v377 = vsel %vm307, %v372, %v376
      %v379 = vshrl.u32 %v278, 16
      %v381 = vrot.slane %v379, 4
      %v382 = vshll.u32 %v278, 16
      %v384 = vrot.slane %v382, 5
      %v385 = vor.u32 %v381, %v384
      %v386 = vrot.slane %v385, 4
      %v388 = vshll.u32 %v302, 16
      %v390 = vrot.slane %v388, 5
      %v391 = vsel %vm307, %v386, %v390
      %v393 = vshrl.u32 %v279, 16
      %v395 = vrot.slane %v393, 4
      %v396 = vshll.u32 %v279, 16
      %v398 = vrot.slane %v396, 5
      %v399 = vor.u32 %v395, %v398
      %v400 = vrot.slane %v399, 4
      %v402 = vshll.u32 %v303, 16
      %v404 = vrot.slane %v402, 5
      %v405 = vsel %vm307, %v400, %v404
      %v407 = vshrl.u32 %v280, 16
      %v409 = vrot.slane %v407, 4
      %v410 = vshll.u32 %v280, 16
      %v412 = vrot.slane %v410, 5
      %v413 = vor.u32 %v409, %v412
      %v414 = vrot.slane %v413, 4
      %v416 = vshll.u32 %v304, 16
      %v418 = vrot.slane %v416, 5
      %v419 = vsel %vm307, %v414, %v418
      %s420 = scalar_lea.vmem %s1, 64
      %v421 = vld [vmem:[%s420] sm:$0xf]
      %v422 = vld [vmem:[%s420 + $0x4] sm:$0xf]
      %v423 = vld [vmem:[%s420 + $0x8] sm:$0xf]
      %v424 = vld [vmem:[%s420 + $0xc] sm:$0xf]
      %v425 = vld [vmem:[%s420 + $0x10] sm:$0xf]
      %v426 = vld [vmem:[%s420 + $0x14] sm:$0xf]
      %v427 = vld [vmem:[%s420 + $0x18] sm:$0xf]
      %v428 = vld [vmem:[%s420 + $0x1c] sm:$0xf]
      %v429 = vld [vmem:[%s420 + $0x20] sm:$0xf]
      %v430 = vld [vmem:[%s420 + $0x24] sm:$0xf]
      %v431 = vld [vmem:[%s420 + $0x28] sm:$0xf]
      %v432 = vld [vmem:[%s420 + $0x2c] sm:$0xf]
      %v433 = vld [vmem:[%s420 + $0x30] sm:$0xf]
      %v434 = vld [vmem:[%s420 + $0x34] sm:$0xf]
      %v435 = vld [vmem:[%s420 + $0x38] sm:$0xf]
      %v436 = vld [vmem:[%s420 + $0x3c] sm:$0xf]
      %v437 = vunpack.c.l.b16 %v321
      %v438 = vunpack.c.l.b16 %v335
      %v439 = vunpack.c.l.b16 %v349
      %v440 = vunpack.c.l.b16 %v363
      %v441 = vunpack.c.l.b16 %v377
      %v442 = vunpack.c.l.b16 %v391
      %v443 = vunpack.c.l.b16 %v405
      %v444 = vunpack.c.l.b16 %v419
      %v445 = vpack.c.b16 %v438, %v437
      %v446 = vpack.c.b16 %v440, %v439
      %v447 = vpack.c.b16 %v442, %v441
      %v448 = vpack.c.b16 %v444, %v443
      %v469 = vunpack.c.l.b16 %v421
      %v470 = vunpack.c.l.b16 %v422
      %v471 = vunpack.c.l.b16 %v423
      %v472 = vunpack.c.l.b16 %v424
      %v473 = vunpack.c.l.b16 %v425
      %v474 = vunpack.c.l.b16 %v426
      %v475 = vunpack.c.l.b16 %v427
      %v476 = vunpack.c.l.b16 %v428
      %v477 = vunpack.c.l.b16 %v429
      %v478 = vunpack.c.l.b16 %v430
      %v479 = vunpack.c.l.b16 %v431
      %v480 = vunpack.c.l.b16 %v432
      %v481 = vunpack.c.l.b16 %v433
      %v482 = vunpack.c.l.b16 %v434
      %v483 = vunpack.c.l.b16 %v435
      %v484 = vunpack.c.l.b16 %v436
      %v485 = vpack.c.b16 %v470, %v469
      %v486 = vpack.c.b16 %v472, %v471
      %v487 = vpack.c.b16 %v474, %v473
      %v488 = vpack.c.b16 %v476, %v475
      %v489 = vpack.c.b16 %v478, %v477
      %v490 = vpack.c.b16 %v480, %v479
      %v491 = vpack.c.b16 %v482, %v481
      %v492 = vpack.c.b16 %v484, %v483
      %501 = vmatprep.subr.bf16.mxu0 0
      %502 = vmatpush1.bf16.msra.mxu0 %v492
      %503 = vmatprep.subr.bf16.mxu0 0
      %504 = vmatpush1.bf16.msra.mxu0 %v491
      %505 = vmatprep.subr.bf16.mxu0 0
      %506 = vmatpush1.bf16.msra.mxu0 %v490
      %507 = vmatprep.subr.bf16.mxu0 0
      %508 = vmatpush1.bf16.msra.mxu0 %v489
      %509 = vmatprep.subr.bf16.mxu0 0
      %510 = vmatpush1.bf16.msra.mxu0 %v488
      %511 = vmatprep.subr.bf16.mxu0 0
      %512 = vmatpush1.bf16.msra.mxu0 %v487
      %513 = vmatprep.subr.bf16.mxu0 0
      %514 = vmatpush1.bf16.msra.mxu0 %v486
      %515 = vmatprep.subr.bf16.mxu0 0
      %516 = vmatpush1.bf16.msra.mxu0 %v485
      %517 = vmatprep.subr.bf16.mxu0 0
      %518 = vmatpush2.bf16.msra.mxu0 0
      %519 = vmatprep.subr.bf16.mxu0 0
      %520 = vmatpush2.bf16.msra.mxu0 0
      %521 = vmatprep.subr.bf16.mxu0 0
      %522 = vmatpush2.bf16.msra.mxu0 0
      %523 = vmatprep.subr.bf16.mxu0 0
      %524 = vmatpush2.bf16.msra.mxu0 0
      %525 = vmatprep.subr.bf16.mxu0 0
      %526 = vmatpush2.bf16.msra.mxu0 0
      %527 = vmatprep.subr.bf16.mxu0 0
      %528 = vmatpush2.bf16.msra.mxu0 0
      %529 = vmatprep.subr.bf16.mxu0 0
      %530 = vmatpush2.bf16.msra.mxu0 0
      %531 = vmatprep.subr.bf16.mxu0 0
      %532 = vmatpush2.bf16.msra.mxu0 0
      %533 = vmatprep.mubr.bf16.mxu0 0
      %534 = vmatmul.mubr.bf16.gmra.mxu0 %v445
      %v535 = vpop.f32.mrf.mxu0
      %v536 = vadd.f32 0.0, %v535
      %v537 = vpop.f32.mrf.mxu0
      %v538 = vpop.f32.mrf.mxu0
      %v539 = vadd.f32 0.0, %v538
      %v540 = vpop.f32.mrf.mxu0
      %541 = vmatprep.mubr.bf16.mxu0 0
      %542 = vmatmul.mubr.bf16.gmra.mxu0 %v446
      %v543 = vpop.f32.mrf.mxu0
      %v544 = vadd.f32 0.0, %v543
      %v545 = vpop.f32.mrf.mxu0
      %v546 = vpop.f32.mrf.mxu0
      %v547 = vadd.f32 0.0, %v546
      %v548 = vpop.f32.mrf.mxu0
      %549 = vmatprep.mubr.bf16.mxu0 0
      %550 = vmatmul.mubr.bf16.gmra.mxu0 %v447
      %v551 = vpop.f32.mrf.mxu0
      %v552 = vadd.f32 0.0, %v551
      %v553 = vpop.f32.mrf.mxu0
      %v554 = vpop.f32.mrf.mxu0
      %v555 = vadd.f32 0.0, %v554
      %v556 = vpop.f32.mrf.mxu0
      %557 = vmatprep.mubr.bf16.mxu0 0
      %558 = vmatmul.mubr.bf16.gmra.mxu0 %v448
      %v559 = vpop.f32.mrf.mxu0
      %v560 = vadd.f32 0.0, %v559
      %v561 = vpop.f32.mrf.mxu0
      %v562 = vpop.f32.mrf.mxu0
      %v563 = vadd.f32 0.0, %v562
      %v564 = vpop.f32.mrf.mxu0
      %565 = vdwg.mxu0
      %v574 = vunpack.c.l.b16 %v273
      %v575 = vunpack.c.l.b16 %v274
      %v576 = vunpack.c.l.b16 %v275
      %v577 = vunpack.c.l.b16 %v276
      %v578 = vunpack.c.l.b16 %v277
      %v579 = vunpack.c.l.b16 %v278
      %v580 = vunpack.c.l.b16 %v279
      %v581 = vunpack.c.l.b16 %v280
      %v582 = vpack.c.b16 %v575, %v574
      %v583 = vpack.c.b16 %v577, %v576
      %v584 = vpack.c.b16 %v579, %v578
      %v585 = vpack.c.b16 %v581, %v580
      %v606 = vunpack.c.l.b16 %v281
      %v607 = vunpack.c.l.b16 %v282
      %v608 = vunpack.c.l.b16 %v283
      %v609 = vunpack.c.l.b16 %v284
      %v610 = vunpack.c.l.b16 %v285
      %v611 = vunpack.c.l.b16 %v286
      %v612 = vunpack.c.l.b16 %v287
      %v613 = vunpack.c.l.b16 %v288
      %v614 = vunpack.c.l.b16 %v289
      %v615 = vunpack.c.l.b16 %v290
      %v616 = vunpack.c.l.b16 %v291
      %v617 = vunpack.c.l.b16 %v292
      %v618 = vunpack.c.l.b16 %v293
      %v619 = vunpack.c.l.b16 %v294
      %v620 = vunpack.c.l.b16 %v295
      %v621 = vunpack.c.l.b16 %v296
      %v622 = vpack.c.b16 %v607, %v606
      %v623 = vpack.c.b16 %v609, %v608
      %v624 = vpack.c.b16 %v611, %v610
      %v625 = vpack.c.b16 %v613, %v612
      %v626 = vpack.c.b16 %v615, %v614
      %v627 = vpack.c.b16 %v617, %v616
      %v628 = vpack.c.b16 %v619, %v618
      %v629 = vpack.c.b16 %v621, %v620
      %638 = vmatprep.subr.bf16.mxu0 0
      %639 = vmatpush1.bf16.msra.mxu0 %v629
      %640 = vmatprep.subr.bf16.mxu0 0
      %641 = vmatpush1.bf16.msra.mxu0 %v628
      %642 = vmatprep.subr.bf16.mxu0 0
      %643 = vmatpush1.bf16.msra.mxu0 %v627
      %644 = vmatprep.subr.bf16.mxu0 0
      %645 = vmatpush1.bf16.msra.mxu0 %v626
      %646 = vmatprep.subr.bf16.mxu0 0
      %647 = vmatpush1.bf16.msra.mxu0 %v625
      %648 = vmatprep.subr.bf16.mxu0 0
      %649 = vmatpush1.bf16.msra.mxu0 %v624
      %650 = vmatprep.subr.bf16.mxu0 0
      %651 = vmatpush1.bf16.msra.mxu0 %v623
      %652 = vmatprep.subr.bf16.mxu0 0
      %653 = vmatpush1.bf16.msra.mxu0 %v622
      %654 = vmatprep.subr.bf16.mxu0 0
      %655 = vmatpush2.bf16.msra.mxu0 0
      %656 = vmatprep.subr.bf16.mxu0 0
      %657 = vmatpush2.bf16.msra.mxu0 0
      %658 = vmatprep.subr.bf16.mxu0 0
      %659 = vmatpush2.bf16.msra.mxu0 0
      %660 = vmatprep.subr.bf16.mxu0 0
      %661 = vmatpush2.bf16.msra.mxu0 0
      %662 = vmatprep.subr.bf16.mxu0 0
      %663 = vmatpush2.bf16.msra.mxu0 0
      %664 = vmatprep.subr.bf16.mxu0 0
      %665 = vmatpush2.bf16.msra.mxu0 0
      %666 = vmatprep.subr.bf16.mxu0 0
      %667 = vmatpush2.bf16.msra.mxu0 0
      %668 = vmatprep.subr.bf16.mxu0 0
      %669 = vmatpush2.bf16.msra.mxu0 0
      %670 = vmatprep.mubr.bf16.mxu0 0
      %671 = vmatmul.mubr.bf16.gmra.mxu0 %v582
      %v672 = vpop.f32.mrf.mxu0
      %v673 = vadd.f32 %v536, %v672
      %v674 = vpop.f32.mrf.mxu0
      %v675 = vpop.f32.mrf.mxu0
      %v676 = vadd.f32 %v539, %v675
      %v677 = vpop.f32.mrf.mxu0
      %678 = vmatprep.mubr.bf16.mxu0 0
      %679 = vmatmul.mubr.bf16.gmra.mxu0 %v583
      %v680 = vpop.f32.mrf.mxu0
      %v681 = vadd.f32 %v544, %v680
      %v682 = vpop.f32.mrf.mxu0
      %v683 = vpop.f32.mrf.mxu0
      %v684 = vadd.f32 %v547, %v683
      %v685 = vpop.f32.mrf.mxu0
      %686 = vmatprep.mubr.bf16.mxu0 0
      %687 = vmatmul.mubr.bf16.gmra.mxu0 %v584
      %v688 = vpop.f32.mrf.mxu0
      %v689 = vadd.f32 %v552, %v688
      %v690 = vpop.f32.mrf.mxu0
      %v691 = vpop.f32.mrf.mxu0
      %v692 = vadd.f32 %v555, %v691
      %v693 = vpop.f32.mrf.mxu0
      %694 = vmatprep.mubr.bf16.mxu0 0
      %695 = vmatmul.mubr.bf16.gmra.mxu0 %v585
      %v696 = vpop.f32.mrf.mxu0
      %v697 = vadd.f32 %v560, %v696
      %v698 = vpop.f32.mrf.mxu0
      %v699 = vpop.f32.mrf.mxu0
      %v700 = vadd.f32 %v563, %v699
      %v701 = vpop.f32.mrf.mxu0
      %702 = vdwg.mxu0
      %v703 = vld [vmem:[%s261] sm:$0xe]
      %v704 = vld [vmem:[%s261 + $0x8] sm:$0xe]
      %v705 = vld [vmem:[%s261 + $0x10] sm:$0xe]
      %v706 = vld [vmem:[%s261 + $0x18] sm:$0xe]
      %v707 = vld [vmem:[%s261 + $0x20] sm:$0xe]
      %v708 = vld [vmem:[%s261 + $0x28] sm:$0xe]
      %v709 = vld [vmem:[%s261 + $0x30] sm:$0xe]
      %v710 = vld [vmem:[%s261 + $0x38] sm:$0xe]
      %vm727 = vcmask 1042432
      %vm728 = vcmask 1046532
      %vm729 = vmor %vm727, %vm728
      %v730 = vrot.slane %v703, 5
      %v731 = vrot.slane %v730, 4
      %v732 = vrot.slane %v297, 5
      %v733 = vsel %vm729, %v731, %v732
      %v734 = vrot.slane %v704, 5
      %v735 = vrot.slane %v734, 4
      %v736 = vrot.slane %v298, 5
      %v737 = vsel %vm729, %v735, %v736
      %v738 = vrot.slane %v705, 5
      %v739 = vrot.slane %v738, 4
      %v740 = vrot.slane %v299, 5
      %v741 = vsel %vm729, %v739, %v740
      %v742 = vrot.slane %v706, 5
      %v743 = vrot.slane %v742, 4
      %v744 = vrot.slane %v300, 5
      %v745 = vsel %vm729, %v743, %v744
      %v746 = vrot.slane %v707, 5
      %v747 = vrot.slane %v746, 4
      %v748 = vrot.slane %v301, 5
      %v749 = vsel %vm729, %v747, %v748
      %v750 = vrot.slane %v708, 5
      %v751 = vrot.slane %v750, 4
      %v752 = vrot.slane %v302, 5
      %v753 = vsel %vm729, %v751, %v752
      %v754 = vrot.slane %v709, 5
      %v755 = vrot.slane %v754, 4
      %v756 = vrot.slane %v303, 5
      %v757 = vsel %vm729, %v755, %v756
      %v758 = vrot.slane %v710, 5
      %v759 = vrot.slane %v758, 4
      %v760 = vrot.slane %v304, 5
      %v761 = vsel %vm729, %v759, %v760
      %s762 = scalar_lea.vmem %s1, 128
      %v763 = vld [vmem:[%s762] sm:$0xf]
      %v764 = vld [vmem:[%s762 + $0x4] sm:$0xf]
      %v765 = vld [vmem:[%s762 + $0x8] sm:$0xf]
      %v766 = vld [vmem:[%s762 + $0xc] sm:$0xf]
      %v767 = vld [vmem:[%s762 + $0x10] sm:$0xf]
      %v768 = vld [vmem:[%s762 + $0x14] sm:$0xf]
      %v769 = vld [vmem:[%s762 + $0x18] sm:$0xf]
      %v770 = vld [vmem:[%s762 + $0x1c] sm:$0xf]
      %v771 = vld [vmem:[%s762 + $0x20] sm:$0xf]
      %v772 = vld [vmem:[%s762 + $0x24] sm:$0xf]
      %v773 = vld [vmem:[%s762 + $0x28] sm:$0xf]
      %v774 = vld [vmem:[%s762 + $0x2c] sm:$0xf]
      %v775 = vld [vmem:[%s762 + $0x30] sm:$0xf]
      %v776 = vld [vmem:[%s762 + $0x34] sm:$0xf]
      %v777 = vld [vmem:[%s762 + $0x38] sm:$0xf]
      %v778 = vld [vmem:[%s762 + $0x3c] sm:$0xf]
      %v779 = vunpack.c.l.b16 %v733
      %v780 = vunpack.c.l.b16 %v737
      %v781 = vunpack.c.l.b16 %v741
      %v782 = vunpack.c.l.b16 %v745
      %v783 = vunpack.c.l.b16 %v749
      %v784 = vunpack.c.l.b16 %v753
      %v785 = vunpack.c.l.b16 %v757
      %v786 = vunpack.c.l.b16 %v761
      %v787 = vpack.c.b16 %v780, %v779
      %v788 = vpack.c.b16 %v782, %v781
      %v789 = vpack.c.b16 %v784, %v783
      %v790 = vpack.c.b16 %v786, %v785
      %v811 = vunpack.c.l.b16 %v763
      %v812 = vunpack.c.l.b16 %v764
      %v813 = vunpack.c.l.b16 %v765
      %v814 = vunpack.c.l.b16 %v766
      %v815 = vunpack.c.l.b16 %v767
      %v816 = vunpack.c.l.b16 %v768
      %v817 = vunpack.c.l.b16 %v769
      %v818 = vunpack.c.l.b16 %v770
      %v819 = vunpack.c.l.b16 %v771
      %v820 = vunpack.c.l.b16 %v772
      %v821 = vunpack.c.l.b16 %v773
      %v822 = vunpack.c.l.b16 %v774
      %v823 = vunpack.c.l.b16 %v775
      %v824 = vunpack.c.l.b16 %v776
      %v825 = vunpack.c.l.b16 %v777
      %v826 = vunpack.c.l.b16 %v778
      %v827 = vpack.c.b16 %v812, %v811
      %v828 = vpack.c.b16 %v814, %v813
      %v829 = vpack.c.b16 %v816, %v815
      %v830 = vpack.c.b16 %v818, %v817
      %v831 = vpack.c.b16 %v820, %v819
      %v832 = vpack.c.b16 %v822, %v821
      %v833 = vpack.c.b16 %v824, %v823
      %v834 = vpack.c.b16 %v826, %v825
      %843 = vmatprep.subr.bf16.mxu0 0
      %844 = vmatpush1.bf16.msra.mxu0 %v834
      %845 = vmatprep.subr.bf16.mxu0 0
      %846 = vmatpush1.bf16.msra.mxu0 %v833
      %847 = vmatprep.subr.bf16.mxu0 0
      %848 = vmatpush1.bf16.msra.mxu0 %v832
      %849 = vmatprep.subr.bf16.mxu0 0
      %850 = vmatpush1.bf16.msra.mxu0 %v831
      %851 = vmatprep.subr.bf16.mxu0 0
      %852 = vmatpush1.bf16.msra.mxu0 %v830
      %853 = vmatprep.subr.bf16.mxu0 0
      %854 = vmatpush1.bf16.msra.mxu0 %v829
      %855 = vmatprep.subr.bf16.mxu0 0
      %856 = vmatpush1.bf16.msra.mxu0 %v828
      %857 = vmatprep.subr.bf16.mxu0 0
      %858 = vmatpush1.bf16.msra.mxu0 %v827
      %859 = vmatprep.subr.bf16.mxu0 0
      %860 = vmatpush2.bf16.msra.mxu0 0
      %861 = vmatprep.subr.bf16.mxu0 0
      %862 = vmatpush2.bf16.msra.mxu0 0
      %863 = vmatprep.subr.bf16.mxu0 0
      %864 = vmatpush2.bf16.msra.mxu0 0
      %865 = vmatprep.subr.bf16.mxu0 0
      %866 = vmatpush2.bf16.msra.mxu0 0
      %867 = vmatprep.subr.bf16.mxu0 0
      %868 = vmatpush2.bf16.msra.mxu0 0
      %869 = vmatprep.subr.bf16.mxu0 0
      %870 = vmatpush2.bf16.msra.mxu0 0
      %871 = vmatprep.subr.bf16.mxu0 0
      %872 = vmatpush2.bf16.msra.mxu0 0
      %873 = vmatprep.subr.bf16.mxu0 0
      %874 = vmatpush2.bf16.msra.mxu0 0
      %875 = vmatprep.mubr.bf16.mxu0 0
      %876 = vmatmul.mubr.bf16.gmra.mxu0 %v787
      %v877 = vpop.f32.mrf.mxu0
      %v878 = vadd.f32 0.0, %v877
      %v879 = vpop.f32.mrf.mxu0
      %v880 = vpop.f32.mrf.mxu0
      %v881 = vadd.f32 0.0, %v880
      %v882 = vpop.f32.mrf.mxu0
      %883 = vmatprep.mubr.bf16.mxu0 0
      %884 = vmatmul.mubr.bf16.gmra.mxu0 %v788
      %v885 = vpop.f32.mrf.mxu0
      %v886 = vadd.f32 0.0, %v885
      %v887 = vpop.f32.mrf.mxu0
      %v888 = vpop.f32.mrf.mxu0
      %v889 = vadd.f32 0.0, %v888
      %v890 = vpop.f32.mrf.mxu0
      %891 = vmatprep.mubr.bf16.mxu0 0
      %892 = vmatmul.mubr.bf16.gmra.mxu0 %v789
      %v893 = vpop.f32.mrf.mxu0
      %v894 = vadd.f32 0.0, %v893
      %v895 = vpop.f32.mrf.mxu0
      %v896 = vpop.f32.mrf.mxu0
      %v897 = vadd.f32 0.0, %v896
      %v898 = vpop.f32.mrf.mxu0
      %899 = vmatprep.mubr.bf16.mxu0 0
      %900 = vmatmul.mubr.bf16.gmra.mxu0 %v790
      %v901 = vpop.f32.mrf.mxu0
      %v902 = vadd.f32 0.0, %v901
      %v903 = vpop.f32.mrf.mxu0
      %v904 = vpop.f32.mrf.mxu0
      %v905 = vadd.f32 0.0, %v904
      %v906 = vpop.f32.mrf.mxu0
      %907 = vdwg.mxu0
      %v908 = vadd.f32 %v673, %v878
      %v909 = vadd.f32 %v676, %v881
      %v910 = vadd.f32 %v681, %v886
      %v911 = vadd.f32 %v684, %v889
      %v912 = vadd.f32 %v689, %v894
      %v913 = vadd.f32 %v692, %v897
      %v914 = vadd.f32 %v697, %v902
      %v915 = vadd.f32 %v700, %v905
      %s916 = scalar_lea.vmem %s261, 8
      %v917 = vld [vmem:[%s916] sm:$0xf]
      %v918 = vld [vmem:[%s916 + $0x8] sm:$0xf]
      %v919 = vld [vmem:[%s916 + $0x10] sm:$0xf]
      %v920 = vld [vmem:[%s916 + $0x18] sm:$0xf]
      %v921 = vld [vmem:[%s916 + $0x20] sm:$0xf]
      %v922 = vld [vmem:[%s916 + $0x28] sm:$0xf]
      %v923 = vld [vmem:[%s916 + $0x30] sm:$0xf]
      %v924 = vld [vmem:[%s916 + $0x38] sm:$0xf]
      %s925 = scalar_lea.vmem %s1, 192
      %v926 = vld [vmem:[%s925] sm:$0xf]
      %v927 = vld [vmem:[%s925 + $0x4] sm:$0xf]
      %v928 = vld [vmem:[%s925 + $0x8] sm:$0xf]
      %v929 = vld [vmem:[%s925 + $0xc] sm:$0xf]
      %v930 = vld [vmem:[%s925 + $0x10] sm:$0xf]
      %v931 = vld [vmem:[%s925 + $0x14] sm:$0xf]
      %v932 = vld [vmem:[%s925 + $0x18] sm:$0xf]
      %v933 = vld [vmem:[%s925 + $0x1c] sm:$0xf]
      %v934 = vld [vmem:[%s925 + $0x20] sm:$0xf]
      %v935 = vld [vmem:[%s925 + $0x24] sm:$0xf]
      %v936 = vld [vmem:[%s925 + $0x28] sm:$0xf]
      %v937 = vld [vmem:[%s925 + $0x2c] sm:$0xf]
      %v938 = vld [vmem:[%s925 + $0x30] sm:$0xf]
      %v939 = vld [vmem:[%s925 + $0x34] sm:$0xf]
      %v940 = vld [vmem:[%s925 + $0x38] sm:$0xf]
      %v941 = vld [vmem:[%s925 + $0x3c] sm:$0xf]
      %v950 = vunpack.c.l.b16 %v917
      %v951 = vunpack.c.l.b16 %v918
      %v952 = vunpack.c.l.b16 %v919
      %v953 = vunpack.c.l.b16 %v920
      %v954 = vunpack.c.l.b16 %v921
      %v955 = vunpack.c.l.b16 %v922
      %v956 = vunpack.c.l.b16 %v923
      %v957 = vunpack.c.l.b16 %v924
      %v958 = vpack.c.b16 %v951, %v950
      %v959 = vpack.c.b16 %v953, %v952
      %v960 = vpack.c.b16 %v955, %v954
      %v961 = vpack.c.b16 %v957, %v956
      %v982 = vunpack.c.l.b16 %v926
      %v983 = vunpack.c.l.b16 %v927
      %v984 = vunpack.c.l.b16 %v928
      %v985 = vunpack.c.l.b16 %v929
      %v986 = vunpack.c.l.b16 %v930
      %v987 = vunpack.c.l.b16 %v931
      %v988 = vunpack.c.l.b16 %v932
      %v989 = vunpack.c.l.b16 %v933
      %v990 = vunpack.c.l.b16 %v934
      %v991 = vunpack.c.l.b16 %v935
      %v992 = vunpack.c.l.b16 %v936
      %v993 = vunpack.c.l.b16 %v937
      %v994 = vunpack.c.l.b16 %v938
      %v995 = vunpack.c.l.b16 %v939
      %v996 = vunpack.c.l.b16 %v940
      %v997 = vunpack.c.l.b16 %v941
      %v998 = vpack.c.b16 %v983, %v982
      %v999 = vpack.c.b16 %v985, %v984
      %v1000 = vpack.c.b16 %v987, %v986
      %v1001 = vpack.c.b16 %v989, %v988
      %v1002 = vpack.c.b16 %v991, %v990
      %v1003 = vpack.c.b16 %v993, %v992
      %v1004 = vpack.c.b16 %v995, %v994
      %v1005 = vpack.c.b16 %v997, %v996
      %1014 = vmatprep.subr.bf16.mxu0 0
      %1015 = vmatpush1.bf16.msra.mxu0 %v1005
      %1016 = vmatprep.subr.bf16.mxu0 0
      %1017 = vmatpush1.bf16.msra.mxu0 %v1004
      %1018 = vmatprep.subr.bf16.mxu0 0
      %1019 = vmatpush1.bf16.msra.mxu0 %v1003
      %1020 = vmatprep.subr.bf16.mxu0 0
      %1021 = vmatpush1.bf16.msra.mxu0 %v1002
      %1022 = vmatprep.subr.bf16.mxu0 0
      %1023 = vmatpush1.bf16.msra.mxu0 %v1001
      %1024 = vmatprep.subr.bf16.mxu0 0
      %1025 = vmatpush1.bf16.msra.mxu0 %v1000
      %1026 = vmatprep.subr.bf16.mxu0 0
      %1027 = vmatpush1.bf16.msra.mxu0 %v999
      %1028 = vmatprep.subr.bf16.mxu0 0
      %1029 = vmatpush1.bf16.msra.mxu0 %v998
      %1030 = vmatprep.subr.bf16.mxu0 0
      %1031 = vmatpush2.bf16.msra.mxu0 0
      %1032 = vmatprep.subr.bf16.mxu0 0
      %1033 = vmatpush2.bf16.msra.mxu0 0
      %1034 = vmatprep.subr.bf16.mxu0 0
      %1035 = vmatpush2.bf16.msra.mxu0 0
      %1036 = vmatprep.subr.bf16.mxu0 0
      %1037 = vmatpush2.bf16.msra.mxu0 0
      %1038 = vmatprep.subr.bf16.mxu0 0
      %1039 = vmatpush2.bf16.msra.mxu0 0
      %1040 = vmatprep.subr.bf16.mxu0 0
      %1041 = vmatpush2.bf16.msra.mxu0 0
      %1042 = vmatprep.subr.bf16.mxu0 0
      %1043 = vmatpush2.bf16.msra.mxu0 0
      %1044 = vmatprep.subr.bf16.mxu0 0
      %1045 = vmatpush2.bf16.msra.mxu0 0
      %1046 = vmatprep.mubr.bf16.mxu0 0
      %1047 = vmatmul.mubr.bf16.gmra.mxu0 %v958
      %v1048 = vpop.f32.mrf.mxu0
      %v1049 = vadd.f32 0.0, %v1048
      %v1050 = vpop.f32.mrf.mxu0
      %v1051 = vpop.f32.mrf.mxu0
      %v1052 = vadd.f32 0.0, %v1051
      %v1053 = vpop.f32.mrf.mxu0
      %1054 = vmatprep.mubr.bf16.mxu0 0
      %1055 = vmatmul.mubr.bf16.gmra.mxu0 %v959
      %v1056 = vpop.f32.mrf.mxu0
      %v1057 = vadd.f32 0.0, %v1056
      %v1058 = vpop.f32.mrf.mxu0
      %v1059 = vpop.f32.mrf.mxu0
      %v1060 = vadd.f32 0.0, %v1059
      %v1061 = vpop.f32.mrf.mxu0
      %1062 = vmatprep.mubr.bf16.mxu0 0
      %1063 = vmatmul.mubr.bf16.gmra.mxu0 %v960
      %v1064 = vpop.f32.mrf.mxu0
      %v1065 = vadd.f32 0.0, %v1064
      %v1066 = vpop.f32.mrf.mxu0
      %v1067 = vpop.f32.mrf.mxu0
      %v1068 = vadd.f32 0.0, %v1067
      %v1069 = vpop.f32.mrf.mxu0
      %1070 = vmatprep.mubr.bf16.mxu0 0
      %1071 = vmatmul.mubr.bf16.gmra.mxu0 %v961
      %v1072 = vpop.f32.mrf.mxu0
      %v1073 = vadd.f32 0.0, %v1072
      %v1074 = vpop.f32.mrf.mxu0
      %v1075 = vpop.f32.mrf.mxu0
      %v1076 = vadd.f32 0.0, %v1075
      %v1077 = vpop.f32.mrf.mxu0
      %1078 = vdwg.mxu0
      %v1079 = vadd.f32 %v908, %v1049
      %v1080 = vadd.f32 %v909, %v1052
      %v1081 = vadd.f32 %v910, %v1057
      %v1082 = vadd.f32 %v911, %v1060
      %v1083 = vadd.f32 %v912, %v1065
      %v1084 = vadd.f32 %v913, %v1068
      %v1085 = vadd.f32 %v914, %v1073
      %v1086 = vadd.f32 %v915, %v1076
      %v1087 = vld [vmem:[%s916] sm:$0xf]
      %v1088 = vld [vmem:[%s916 + $0x4] sm:$0x1]
      %v1089 = vld [vmem:[%s916 + $0x8] sm:$0xf]
      %v1090 = vld [vmem:[%s916 + $0xc] sm:$0x1]
      %v1091 = vld [vmem:[%s916 + $0x10] sm:$0xf]
      %v1092 = vld [vmem:[%s916 + $0x14] sm:$0x1]
      %v1093 = vld [vmem:[%s916 + $0x18] sm:$0xf]
      %v1094 = vld [vmem:[%s916 + $0x1c] sm:$0x1]
      %v1095 = vld [vmem:[%s916 + $0x20] sm:$0xf]
      %v1096 = vld [vmem:[%s916 + $0x24] sm:$0x1]
      %v1097 = vld [vmem:[%s916 + $0x28] sm:$0xf]
      %v1098 = vld [vmem:[%s916 + $0x2c] sm:$0x1]
      %v1099 = vld [vmem:[%s916 + $0x30] sm:$0xf]
      %v1100 = vld [vmem:[%s916 + $0x34] sm:$0x1]
      %v1101 = vld [vmem:[%s916 + $0x38] sm:$0xf]
      %v1102 = vld [vmem:[%s916 + $0x3c] sm:$0x1]
      %v1104 = vshrl.u32 %v1087, 16
      %v1106 = vrot.slane %v1104, 4
      %v1107 = vshll.u32 %v1087, 16
      %v1109 = vrot.slane %v1107, 5
      %v1110 = vor.u32 %v1106, %v1109
      %v1111 = vrot.slane %v1110, 4
      %v1113 = vshll.u32 %v1088, 16
      %v1115 = vrot.slane %v1113, 5
      %v1116 = vsel %vm307, %v1111, %v1115
      %v1118 = vshrl.u32 %v1089, 16
      %v1120 = vrot.slane %v1118, 4
      %v1121 = vshll.u32 %v1089, 16
      %v1123 = vrot.slane %v1121, 5
      %v1124 = vor.u32 %v1120, %v1123
      %v1125 = vrot.slane %v1124, 4
      %v1127 = vshll.u32 %v1090, 16
      %v1129 = vrot.slane %v1127, 5
      %v1130 = vsel %vm307, %v1125, %v1129
      %v1132 = vshrl.u32 %v1091, 16
      %v1134 = vrot.slane %v1132, 4
      %v1135 = vshll.u32 %v1091, 16
      %v1137 = vrot.slane %v1135, 5
      %v1138 = vor.u32 %v1134, %v1137
      %v1139 = vrot.slane %v1138, 4
      %v1141 = vshll.u32 %v1092, 16
      %v1143 = vrot.slane %v1141, 5
      %v1144 = vsel %vm307, %v1139, %v1143
      %v1146 = vshrl.u32 %v1093, 16
      %v1148 = vrot.slane %v1146, 4
      %v1149 = vshll.u32 %v1093, 16
      %v1151 = vrot.slane %v1149, 5
      %v1152 = vor.u32 %v1148, %v1151
      %v1153 = vrot.slane %v1152, 4
      %v1155 = vshll.u32 %v1094, 16
      %v1157 = vrot.slane %v1155, 5
      %v1158 = vsel %vm307, %v1153, %v1157
      %v1160 = vshrl.u32 %v1095, 16
      %v1162 = vrot.slane %v1160, 4
      %v1163 = vshll.u32 %v1095, 16
      %v1165 = vrot.slane %v1163, 5
      %v1166 = vor.u32 %v1162, %v1165
      %v1167 = vrot.slane %v1166, 4
      %v1169 = vshll.u32 %v1096, 16
      %v1171 = vrot.slane %v1169, 5
      %v1172 = vsel %vm307, %v1167, %v1171
      %v1174 = vshrl.u32 %v1097, 16
      %v1176 = vrot.slane %v1174, 4
      %v1177 = vshll.u32 %v1097, 16
      %v1179 = vrot.slane %v1177, 5
      %v1180 = vor.u32 %v1176, %v1179
      %v1181 = vrot.slane %v1180, 4
      %v1183 = vshll.u32 %v1098, 16
      %v1185 = vrot.slane %v1183, 5
      %v1186 = vsel %vm307, %v1181, %v1185
      %v1188 = vshrl.u32 %v1099, 16
      %v1190 = vrot.slane %v1188, 4
      %v1191 = vshll.u32 %v1099, 16
      %v1193 = vrot.slane %v1191, 5
      %v1194 = vor.u32 %v1190, %v1193
      %v1195 = vrot.slane %v1194, 4
      %v1197 = vshll.u32 %v1100, 16
      %v1199 = vrot.slane %v1197, 5
      %v1200 = vsel %vm307, %v1195, %v1199
      %v1202 = vshrl.u32 %v1101, 16
      %v1204 = vrot.slane %v1202, 4
      %v1205 = vshll.u32 %v1101, 16
      %v1207 = vrot.slane %v1205, 5
      %v1208 = vor.u32 %v1204, %v1207
      %v1209 = vrot.slane %v1208, 4
      %v1211 = vshll.u32 %v1102, 16
      %v1213 = vrot.slane %v1211, 5
      %v1214 = vsel %vm307, %v1209, %v1213
      %s1215 = scalar_lea.vmem %s1, 256
      %v1216 = vld [vmem:[%s1215] sm:$0xf]
      %v1217 = vld [vmem:[%s1215 + $0x4] sm:$0xf]
      %v1218 = vld [vmem:[%s1215 + $0x8] sm:$0xf]
      %v1219 = vld [vmem:[%s1215 + $0xc] sm:$0xf]
      %v1220 = vld [vmem:[%s1215 + $0x10] sm:$0xf]
      %v1221 = vld [vmem:[%s1215 + $0x14] sm:$0xf]
      %v1222 = vld [vmem:[%s1215 + $0x18] sm:$0xf]
      %v1223 = vld [vmem:[%s1215 + $0x1c] sm:$0xf]
      %v1224 = vld [vmem:[%s1215 + $0x20] sm:$0xf]
      %v1225 = vld [vmem:[%s1215 + $0x24] sm:$0xf]
      %v1226 = vld [vmem:[%s1215 + $0x28] sm:$0xf]
      %v1227 = vld [vmem:[%s1215 + $0x2c] sm:$0xf]
      %v1228 = vld [vmem:[%s1215 + $0x30] sm:$0xf]
      %v1229 = vld [vmem:[%s1215 + $0x34] sm:$0xf]
      %v1230 = vld [vmem:[%s1215 + $0x38] sm:$0xf]
      %v1231 = vld [vmem:[%s1215 + $0x3c] sm:$0xf]
      %v1232 = vunpack.c.l.b16 %v1116
      %v1233 = vunpack.c.l.b16 %v1130
      %v1234 = vunpack.c.l.b16 %v1144
      %v1235 = vunpack.c.l.b16 %v1158
      %v1236 = vunpack.c.l.b16 %v1172
      %v1237 = vunpack.c.l.b16 %v1186
      %v1238 = vunpack.c.l.b16 %v1200
      %v1239 = vunpack.c.l.b16 %v1214
      %v1240 = vpack.c.b16 %v1233, %v1232
      %v1241 = vpack.c.b16 %v1235, %v1234
      %v1242 = vpack.c.b16 %v1237, %v1236
      %v1243 = vpack.c.b16 %v1239, %v1238
      %v1264 = vunpack.c.l.b16 %v1216
      %v1265 = vunpack.c.l.b16 %v1217
      %v1266 = vunpack.c.l.b16 %v1218
      %v1267 = vunpack.c.l.b16 %v1219
      %v1268 = vunpack.c.l.b16 %v1220
      %v1269 = vunpack.c.l.b16 %v1221
      %v1270 = vunpack.c.l.b16 %v1222
      %v1271 = vunpack.c.l.b16 %v1223
      %v1272 = vunpack.c.l.b16 %v1224
      %v1273 = vunpack.c.l.b16 %v1225
      %v1274 = vunpack.c.l.b16 %v1226
      %v1275 = vunpack.c.l.b16 %v1227
      %v1276 = vunpack.c.l.b16 %v1228
      %v1277 = vunpack.c.l.b16 %v1229
      %v1278 = vunpack.c.l.b16 %v1230
      %v1279 = vunpack.c.l.b16 %v1231
      %v1280 = vpack.c.b16 %v1265, %v1264
      %v1281 = vpack.c.b16 %v1267, %v1266
      %v1282 = vpack.c.b16 %v1269, %v1268
      %v1283 = vpack.c.b16 %v1271, %v1270
      %v1284 = vpack.c.b16 %v1273, %v1272
      %v1285 = vpack.c.b16 %v1275, %v1274
      %v1286 = vpack.c.b16 %v1277, %v1276
      %v1287 = vpack.c.b16 %v1279, %v1278
      %1296 = vmatprep.subr.bf16.mxu0 0
      %1297 = vmatpush1.bf16.msra.mxu0 %v1287
      %1298 = vmatprep.subr.bf16.mxu0 0
      %1299 = vmatpush1.bf16.msra.mxu0 %v1286
      %1300 = vmatprep.subr.bf16.mxu0 0
      %1301 = vmatpush1.bf16.msra.mxu0 %v1285
      %1302 = vmatprep.subr.bf16.mxu0 0
      %1303 = vmatpush1.bf16.msra.mxu0 %v1284
      %1304 = vmatprep.subr.bf16.mxu0 0
      %1305 = vmatpush1.bf16.msra.mxu0 %v1283
      %1306 = vmatprep.subr.bf16.mxu0 0
      %1307 = vmatpush1.bf16.msra.mxu0 %v1282
      %1308 = vmatprep.subr.bf16.mxu0 0
      %1309 = vmatpush1.bf16.msra.mxu0 %v1281
      %1310 = vmatprep.subr.bf16.mxu0 0
      %1311 = vmatpush1.bf16.msra.mxu0 %v1280
      %1312 = vmatprep.subr.bf16.mxu0 0
      %1313 = vmatpush2.bf16.msra.mxu0 0
      %1314 = vmatprep.subr.bf16.mxu0 0
      %1315 = vmatpush2.bf16.msra.mxu0 0
      %1316 = vmatprep.subr.bf16.mxu0 0
      %1317 = vmatpush2.bf16.msra.mxu0 0
      %1318 = vmatprep.subr.bf16.mxu0 0
      %1319 = vmatpush2.bf16.msra.mxu0 0
      %1320 = vmatprep.subr.bf16.mxu0 0
      %1321 = vmatpush2.bf16.msra.mxu0 0
      %1322 = vmatprep.subr.bf16.mxu0 0
      %1323 = vmatpush2.bf16.msra.mxu0 0
      %1324 = vmatprep.subr.bf16.mxu0 0
      %1325 = vmatpush2.bf16.msra.mxu0 0
      %1326 = vmatprep.subr.bf16.mxu0 0
      %1327 = vmatpush2.bf16.msra.mxu0 0
      %1328 = vmatprep.mubr.bf16.mxu0 0
      %1329 = vmatmul.mubr.bf16.gmra.mxu0 %v1240
      %v1330 = vpop.f32.mrf.mxu0
      %v1331 = vadd.f32 0.0, %v1330
      %v1332 = vpop.f32.mrf.mxu0
      %v1333 = vpop.f32.mrf.mxu0
      %v1334 = vadd.f32 0.0, %v1333
      %v1335 = vpop.f32.mrf.mxu0
      %1336 = vmatprep.mubr.bf16.mxu0 0
      %1337 = vmatmul.mubr.bf16.gmra.mxu0 %v1241
      %v1338 = vpop.f32.mrf.mxu0
      %v1339 = vadd.f32 0.0, %v1338
      %v1340 = vpop.f32.mrf.mxu0
      %v1341 = vpop.f32.mrf.mxu0
      %v1342 = vadd.f32 0.0, %v1341
      %v1343 = vpop.f32.mrf.mxu0
      %1344 = vmatprep.mubr.bf16.mxu0 0
      %1345 = vmatmul.mubr.bf16.gmra.mxu0 %v1242
      %v1346 = vpop.f32.mrf.mxu0
      %v1347 = vadd.f32 0.0, %v1346
      %v1348 = vpop.f32.mrf.mxu0
      %v1349 = vpop.f32.mrf.mxu0
      %v1350 = vadd.f32 0.0, %v1349
      %v1351 = vpop.f32.mrf.mxu0
      %1352 = vmatprep.mubr.bf16.mxu0 0
      %1353 = vmatmul.mubr.bf16.gmra.mxu0 %v1243
      %v1354 = vpop.f32.mrf.mxu0
      %v1355 = vadd.f32 0.0, %v1354
      %v1356 = vpop.f32.mrf.mxu0
      %v1357 = vpop.f32.mrf.mxu0
      %v1358 = vadd.f32 0.0, %v1357
      %v1359 = vpop.f32.mrf.mxu0
      %1360 = vdwg.mxu0
      %v1361 = vadd.f32 %v1079, %v1331
      %v1362 = vadd.f32 %v1080, %v1334
      %v1363 = vadd.f32 %v1081, %v1339
      %v1364 = vadd.f32 %v1082, %v1342
      %v1365 = vadd.f32 %v1083, %v1347
      %v1366 = vadd.f32 %v1084, %v1350
      %v1367 = vadd.f32 %v1085, %v1355
      %v1368 = vadd.f32 %v1086, %v1358
      %v1369 = vld [vmem:[%s916] sm:$0xe]
      %v1370 = vld [vmem:[%s916 + $0x8] sm:$0xe]
      %v1371 = vld [vmem:[%s916 + $0x10] sm:$0xe]
      %v1372 = vld [vmem:[%s916 + $0x18] sm:$0xe]
      %v1373 = vld [vmem:[%s916 + $0x20] sm:$0xe]
      %v1374 = vld [vmem:[%s916 + $0x28] sm:$0xe]
      %v1375 = vld [vmem:[%s916 + $0x30] sm:$0xe]
      %v1376 = vld [vmem:[%s916 + $0x38] sm:$0xe]
      %v1393 = vrot.slane %v1369, 5
      %v1394 = vrot.slane %v1393, 4
      %v1395 = vrot.slane %v1088, 5
      %v1396 = vsel %vm729, %v1394, %v1395
      %v1397 = vrot.slane %v1370, 5
      %v1398 = vrot.slane %v1397, 4
      %v1399 = vrot.slane %v1090, 5
      %v1400 = vsel %vm729, %v1398, %v1399
      %v1401 = vrot.slane %v1371, 5
      %v1402 = vrot.slane %v1401, 4
      %v1403 = vrot.slane %v1092, 5
      %v1404 = vsel %vm729, %v1402, %v1403
      %v1405 = vrot.slane %v1372, 5
      %v1406 = vrot.slane %v1405, 4
      %v1407 = vrot.slane %v1094, 5
      %v1408 = vsel %vm729, %v1406, %v1407
      %v1409 = vrot.slane %v1373, 5
      %v1410 = vrot.slane %v1409, 4
      %v1411 = vrot.slane %v1096, 5
      %v1412 = vsel %vm729, %v1410, %v1411
      %v1413 = vrot.slane %v1374, 5
      %v1414 = vrot.slane %v1413, 4
      %v1415 = vrot.slane %v1098, 5
      %v1416 = vsel %vm729, %v1414, %v1415
      %v1417 = vrot.slane %v1375, 5
      %v1418 = vrot.slane %v1417, 4
      %v1419 = vrot.slane %v1100, 5
      %v1420 = vsel %vm729, %v1418, %v1419
      %v1421 = vrot.slane %v1376, 5
      %v1422 = vrot.slane %v1421, 4
      %v1423 = vrot.slane %v1102, 5
      %v1424 = vsel %vm729, %v1422, %v1423
      %s1425 = scalar_lea.vmem %s1, 320
      %v1426 = vld [vmem:[%s1425] sm:$0xf]
      %v1427 = vld [vmem:[%s1425 + $0x4] sm:$0xf]
      %v1428 = vld [vmem:[%s1425 + $0x8] sm:$0xf]
      %v1429 = vld [vmem:[%s1425 + $0xc] sm:$0xf]
      %v1430 = vld [vmem:[%s1425 + $0x10] sm:$0xf]
      %v1431 = vld [vmem:[%s1425 + $0x14] sm:$0xf]
      %v1432 = vld [vmem:[%s1425 + $0x18] sm:$0xf]
      %v1433 = vld [vmem:[%s1425 + $0x1c] sm:$0xf]
      %v1434 = vld [vmem:[%s1425 + $0x20] sm:$0xf]
      %v1435 = vld [vmem:[%s1425 + $0x24] sm:$0xf]
      %v1436 = vld [vmem:[%s1425 + $0x28] sm:$0xf]
      %v1437 = vld [vmem:[%s1425 + $0x2c] sm:$0xf]
      %v1438 = vld [vmem:[%s1425 + $0x30] sm:$0xf]
      %v1439 = vld [vmem:[%s1425 + $0x34] sm:$0xf]
      %v1440 = vld [vmem:[%s1425 + $0x38] sm:$0xf]
      %v1441 = vld [vmem:[%s1425 + $0x3c] sm:$0xf]
      %v1442 = vunpack.c.l.b16 %v1396
      %v1443 = vunpack.c.l.b16 %v1400
      %v1444 = vunpack.c.l.b16 %v1404
      %v1445 = vunpack.c.l.b16 %v1408
      %v1446 = vunpack.c.l.b16 %v1412
      %v1447 = vunpack.c.l.b16 %v1416
      %v1448 = vunpack.c.l.b16 %v1420
      %v1449 = vunpack.c.l.b16 %v1424
      %v1450 = vpack.c.b16 %v1443, %v1442
      %v1451 = vpack.c.b16 %v1445, %v1444
      %v1452 = vpack.c.b16 %v1447, %v1446
      %v1453 = vpack.c.b16 %v1449, %v1448
      %v1474 = vunpack.c.l.b16 %v1426
      %v1475 = vunpack.c.l.b16 %v1427
      %v1476 = vunpack.c.l.b16 %v1428
      %v1477 = vunpack.c.l.b16 %v1429
      %v1478 = vunpack.c.l.b16 %v1430
      %v1479 = vunpack.c.l.b16 %v1431
      %v1480 = vunpack.c.l.b16 %v1432
      %v1481 = vunpack.c.l.b16 %v1433
      %v1482 = vunpack.c.l.b16 %v1434
      %v1483 = vunpack.c.l.b16 %v1435
      %v1484 = vunpack.c.l.b16 %v1436
      %v1485 = vunpack.c.l.b16 %v1437
      %v1486 = vunpack.c.l.b16 %v1438
      %v1487 = vunpack.c.l.b16 %v1439
      %v1488 = vunpack.c.l.b16 %v1440
      %v1489 = vunpack.c.l.b16 %v1441
      %v1490 = vpack.c.b16 %v1475, %v1474
      %v1491 = vpack.c.b16 %v1477, %v1476
      %v1492 = vpack.c.b16 %v1479, %v1478
      %v1493 = vpack.c.b16 %v1481, %v1480
      %v1494 = vpack.c.b16 %v1483, %v1482
      %v1495 = vpack.c.b16 %v1485, %v1484
      %v1496 = vpack.c.b16 %v1487, %v1486
      %v1497 = vpack.c.b16 %v1489, %v1488
      %1506 = vmatprep.subr.bf16.mxu0 0
      %1507 = vmatpush1.bf16.msra.mxu0 %v1497
      %1508 = vmatprep.subr.bf16.mxu0 0
      %1509 = vmatpush1.bf16.msra.mxu0 %v1496
      %1510 = vmatprep.subr.bf16.mxu0 0
      %1511 = vmatpush1.bf16.msra.mxu0 %v1495
      %1512 = vmatprep.subr.bf16.mxu0 0
      %1513 = vmatpush1.bf16.msra.mxu0 %v1494
      %1514 = vmatprep.subr.bf16.mxu0 0
      %1515 = vmatpush1.bf16.msra.mxu0 %v1493
      %1516 = vmatprep.subr.bf16.mxu0 0
      %1517 = vmatpush1.bf16.msra.mxu0 %v1492
      %1518 = vmatprep.subr.bf16.mxu0 0
      %1519 = vmatpush1.bf16.msra.mxu0 %v1491
      %1520 = vmatprep.subr.bf16.mxu0 0
      %1521 = vmatpush1.bf16.msra.mxu0 %v1490
      %1522 = vmatprep.subr.bf16.mxu0 0
      %1523 = vmatpush2.bf16.msra.mxu0 0
      %1524 = vmatprep.subr.bf16.mxu0 0
      %1525 = vmatpush2.bf16.msra.mxu0 0
      %1526 = vmatprep.subr.bf16.mxu0 0
      %1527 = vmatpush2.bf16.msra.mxu0 0
      %1528 = vmatprep.subr.bf16.mxu0 0
      %1529 = vmatpush2.bf16.msra.mxu0 0
      %1530 = vmatprep.subr.bf16.mxu0 0
      %1531 = vmatpush2.bf16.msra.mxu0 0
      %1532 = vmatprep.subr.bf16.mxu0 0
      %1533 = vmatpush2.bf16.msra.mxu0 0
      %1534 = vmatprep.subr.bf16.mxu0 0
      %1535 = vmatpush2.bf16.msra.mxu0 0
      %1536 = vmatprep.subr.bf16.mxu0 0
      %1537 = vmatpush2.bf16.msra.mxu0 0
      %1538 = vmatprep.mubr.bf16.mxu0 0
      %1539 = vmatmul.mubr.bf16.gmra.mxu0 %v1450
      %v1540 = vpop.f32.mrf.mxu0
      %v1541 = vadd.f32 0.0, %v1540
      %v1542 = vpop.f32.mrf.mxu0
      %v1543 = vpop.f32.mrf.mxu0
      %v1544 = vadd.f32 0.0, %v1543
      %v1545 = vpop.f32.mrf.mxu0
      %1546 = vmatprep.mubr.bf16.mxu0 0
      %1547 = vmatmul.mubr.bf16.gmra.mxu0 %v1451
      %v1548 = vpop.f32.mrf.mxu0
      %v1549 = vadd.f32 0.0, %v1548
      %v1550 = vpop.f32.mrf.mxu0
      %v1551 = vpop.f32.mrf.mxu0
      %v1552 = vadd.f32 0.0, %v1551
      %v1553 = vpop.f32.mrf.mxu0
      %1554 = vmatprep.mubr.bf16.mxu0 0
      %1555 = vmatmul.mubr.bf16.gmra.mxu0 %v1452
      %v1556 = vpop.f32.mrf.mxu0
      %v1557 = vadd.f32 0.0, %v1556
      %v1558 = vpop.f32.mrf.mxu0
      %v1559 = vpop.f32.mrf.mxu0
      %v1560 = vadd.f32 0.0, %v1559
      %v1561 = vpop.f32.mrf.mxu0
      %1562 = vmatprep.mubr.bf16.mxu0 0
      %1563 = vmatmul.mubr.bf16.gmra.mxu0 %v1453
      %v1564 = vpop.f32.mrf.mxu0
      %v1565 = vadd.f32 0.0, %v1564
      %v1566 = vpop.f32.mrf.mxu0
      %v1567 = vpop.f32.mrf.mxu0
      %v1568 = vadd.f32 0.0, %v1567
      %v1569 = vpop.f32.mrf.mxu0
      %1570 = vdwg.mxu0
      %v1571 = vadd.f32 %v1361, %v1541
      %v1572 = vadd.f32 %v1362, %v1544
      %v1573 = vadd.f32 %v1363, %v1549
      %v1574 = vadd.f32 %v1364, %v1552
      %v1575 = vadd.f32 %v1365, %v1557
      %v1576 = vadd.f32 %v1366, %v1560
      %v1577 = vadd.f32 %v1367, %v1565
      %v1578 = vadd.f32 %v1368, %v1568
      %s1579 = scalar_lea.vmem %s261, 16
      %v1580 = vld [vmem:[%s1579] sm:$0xf]
      %v1581 = vld [vmem:[%s1579 + $0x8] sm:$0xf]
      %v1582 = vld [vmem:[%s1579 + $0x10] sm:$0xf]
      %v1583 = vld [vmem:[%s1579 + $0x18] sm:$0xf]
      %v1584 = vld [vmem:[%s1579 + $0x20] sm:$0xf]
      %v1585 = vld [vmem:[%s1579 + $0x28] sm:$0xf]
      %v1586 = vld [vmem:[%s1579 + $0x30] sm:$0xf]
      %v1587 = vld [vmem:[%s1579 + $0x38] sm:$0xf]
      %s1588 = scalar_lea.vmem %s1, 384
      %v1589 = vld [vmem:[%s1588] sm:$0xf]
      %v1590 = vld [vmem:[%s1588 + $0x4] sm:$0xf]
      %v1591 = vld [vmem:[%s1588 + $0x8] sm:$0xf]
      %v1592 = vld [vmem:[%s1588 + $0xc] sm:$0xf]
      %v1593 = vld [vmem:[%s1588 + $0x10] sm:$0xf]
      %v1594 = vld [vmem:[%s1588 + $0x14] sm:$0xf]
      %v1595 = vld [vmem:[%s1588 + $0x18] sm:$0xf]
      %v1596 = vld [vmem:[%s1588 + $0x1c] sm:$0xf]
      %v1597 = vld [vmem:[%s1588 + $0x20] sm:$0xf]
      %v1598 = vld [vmem:[%s1588 + $0x24] sm:$0xf]
      %v1599 = vld [vmem:[%s1588 + $0x28] sm:$0xf]
      %v1600 = vld [vmem:[%s1588 + $0x2c] sm:$0xf]
      %v1601 = vld [vmem:[%s1588 + $0x30] sm:$0xf]
      %v1602 = vld [vmem:[%s1588 + $0x34] sm:$0xf]
      %v1603 = vld [vmem:[%s1588 + $0x38] sm:$0xf]
      %v1604 = vld [vmem:[%s1588 + $0x3c] sm:$0xf]
      %v1613 = vunpack.c.l.b16 %v1580
      %v1614 = vunpack.c.l.b16 %v1581
      %v1615 = vunpack.c.l.b16 %v1582
      %v1616 = vunpack.c.l.b16 %v1583
      %v1617 = vunpack.c.l.b16 %v1584
      %v1618 = vunpack.c.l.b16 %v1585
      %v1619 = vunpack.c.l.b16 %v1586
      %v1620 = vunpack.c.l.b16 %v1587
      %v1621 = vpack.c.b16 %v1614, %v1613
      %v1622 = vpack.c.b16 %v1616, %v1615
      %v1623 = vpack.c.b16 %v1618, %v1617
      %v1624 = vpack.c.b16 %v1620, %v1619
      %v1645 = vunpack.c.l.b16 %v1589
      %v1646 = vunpack.c.l.b16 %v1590
      %v1647 = vunpack.c.l.b16 %v1591
      %v1648 = vunpack.c.l.b16 %v1592
      %v1649 = vunpack.c.l.b16 %v1593
      %v1650 = vunpack.c.l.b16 %v1594
      %v1651 = vunpack.c.l.b16 %v1595
      %v1652 = vunpack.c.l.b16 %v1596
      %v1653 = vunpack.c.l.b16 %v1597
      %v1654 = vunpack.c.l.b16 %v1598
      %v1655 = vunpack.c.l.b16 %v1599
      %v1656 = vunpack.c.l.b16 %v1600
      %v1657 = vunpack.c.l.b16 %v1601
      %v1658 = vunpack.c.l.b16 %v1602
      %v1659 = vunpack.c.l.b16 %v1603
      %v1660 = vunpack.c.l.b16 %v1604
      %v1661 = vpack.c.b16 %v1646, %v1645
      %v1662 = vpack.c.b16 %v1648, %v1647
      %v1663 = vpack.c.b16 %v1650, %v1649
      %v1664 = vpack.c.b16 %v1652, %v1651
      %v1665 = vpack.c.b16 %v1654, %v1653
      %v1666 = vpack.c.b16 %v1656, %v1655
      %v1667 = vpack.c.b16 %v1658, %v1657
      %v1668 = vpack.c.b16 %v1660, %v1659
      %1677 = vmatprep.subr.bf16.mxu0 0
      %1678 = vmatpush1.bf16.msra.mxu0 %v1668
      %1679 = vmatprep.subr.bf16.mxu0 0
      %1680 = vmatpush1.bf16.msra.mxu0 %v1667
      %1681 = vmatprep.subr.bf16.mxu0 0
      %1682 = vmatpush1.bf16.msra.mxu0 %v1666
      %1683 = vmatprep.subr.bf16.mxu0 0
      %1684 = vmatpush1.bf16.msra.mxu0 %v1665
      %1685 = vmatprep.subr.bf16.mxu0 0
      %1686 = vmatpush1.bf16.msra.mxu0 %v1664
      %1687 = vmatprep.subr.bf16.mxu0 0
      %1688 = vmatpush1.bf16.msra.mxu0 %v1663
      %1689 = vmatprep.subr.bf16.mxu0 0
      %1690 = vmatpush1.bf16.msra.mxu0 %v1662
      %1691 = vmatprep.subr.bf16.mxu0 0
      %1692 = vmatpush1.bf16.msra.mxu0 %v1661
      %1693 = vmatprep.subr.bf16.mxu0 0
      %1694 = vmatpush2.bf16.msra.mxu0 0
      %1695 = vmatprep.subr.bf16.mxu0 0
      %1696 = vmatpush2.bf16.msra.mxu0 0
      %1697 = vmatprep.subr.bf16.mxu0 0
      %1698 = vmatpush2.bf16.msra.mxu0 0
      %1699 = vmatprep.subr.bf16.mxu0 0
      %1700 = vmatpush2.bf16.msra.mxu0 0
      %1701 = vmatprep.subr.bf16.mxu0 0
      %1702 = vmatpush2.bf16.msra.mxu0 0
      %1703 = vmatprep.subr.bf16.mxu0 0
      %1704 = vmatpush2.bf16.msra.mxu0 0
      %1705 = vmatprep.subr.bf16.mxu0 0
      %1706 = vmatpush2.bf16.msra.mxu0 0
      %1707 = vmatprep.subr.bf16.mxu0 0
      %1708 = vmatpush2.bf16.msra.mxu0 0
      %1709 = vmatprep.mubr.bf16.mxu0 0
      %1710 = vmatmul.mubr.bf16.gmra.mxu0 %v1621
      %v1711 = vpop.f32.mrf.mxu0
      %v1712 = vadd.f32 0.0, %v1711
      %v1713 = vpop.f32.mrf.mxu0
      %v1714 = vpop.f32.mrf.mxu0
      %v1715 = vadd.f32 0.0, %v1714
      %v1716 = vpop.f32.mrf.mxu0
      %1717 = vmatprep.mubr.bf16.mxu0 0
      %1718 = vmatmul.mubr.bf16.gmra.mxu0 %v1622
      %v1719 = vpop.f32.mrf.mxu0
      %v1720 = vadd.f32 0.0, %v1719
      %v1721 = vpop.f32.mrf.mxu0
      %v1722 = vpop.f32.mrf.mxu0
      %v1723 = vadd.f32 0.0, %v1722
      %v1724 = vpop.f32.mrf.mxu0
      %1725 = vmatprep.mubr.bf16.mxu0 0
      %1726 = vmatmul.mubr.bf16.gmra.mxu0 %v1623
      %v1727 = vpop.f32.mrf.mxu0
      %v1728 = vadd.f32 0.0, %v1727
      %v1729 = vpop.f32.mrf.mxu0
      %v1730 = vpop.f32.mrf.mxu0
      %v1731 = vadd.f32 0.0, %v1730
      %v1732 = vpop.f32.mrf.mxu0
      %1733 = vmatprep.mubr.bf16.mxu0 0
      %1734 = vmatmul.mubr.bf16.gmra.mxu0 %v1624
      %v1735 = vpop.f32.mrf.mxu0
      %v1736 = vadd.f32 0.0, %v1735
      %v1737 = vpop.f32.mrf.mxu0
      %v1738 = vpop.f32.mrf.mxu0
      %v1739 = vadd.f32 0.0, %v1738
      %v1740 = vpop.f32.mrf.mxu0
      %1741 = vdwg.mxu0
      %v1742 = vadd.f32 %v1571, %v1712
      %v1743 = vadd.f32 %v1572, %v1715
      %v1744 = vadd.f32 %v1573, %v1720
      %v1745 = vadd.f32 %v1574, %v1723
      %v1746 = vadd.f32 %v1575, %v1728
      %v1747 = vadd.f32 %v1576, %v1731
      %v1748 = vadd.f32 %v1577, %v1736
      %v1749 = vadd.f32 %v1578, %v1739
      %v1750 = vld [vmem:[%s1579] sm:$0xf]
      %v1751 = vld [vmem:[%s1579 + $0x4] sm:$0x1]
      %v1752 = vld [vmem:[%s1579 + $0x8] sm:$0xf]
      %v1753 = vld [vmem:[%s1579 + $0xc] sm:$0x1]
      %v1754 = vld [vmem:[%s1579 + $0x10] sm:$0xf]
      %v1755 = vld [vmem:[%s1579 + $0x14] sm:$0x1]
      %v1756 = vld [vmem:[%s1579 + $0x18] sm:$0xf]
      %v1757 = vld [vmem:[%s1579 + $0x1c] sm:$0x1]
      %v1758 = vld [vmem:[%s1579 + $0x20] sm:$0xf]
      %v1759 = vld [vmem:[%s1579 + $0x24] sm:$0x1]
      %v1760 = vld [vmem:[%s1579 + $0x28] sm:$0xf]
      %v1761 = vld [vmem:[%s1579 + $0x2c] sm:$0x1]
      %v1762 = vld [vmem:[%s1579 + $0x30] sm:$0xf]
      %v1763 = vld [vmem:[%s1579 + $0x34] sm:$0x1]
      %v1764 = vld [vmem:[%s1579 + $0x38] sm:$0xf]
      %v1765 = vld [vmem:[%s1579 + $0x3c] sm:$0x1]
      %v1767 = vshrl.u32 %v1750, 16
      %v1769 = vrot.slane %v1767, 4
      %v1770 = vshll.u32 %v1750, 16
      %v1772 = vrot.slane %v1770, 5
      %v1773 = vor.u32 %v1769, %v1772
      %v1774 = vrot.slane %v1773, 4
      %v1776 = vshll.u32 %v1751, 16
      %v1778 = vrot.slane %v1776, 5
      %v1779 = vsel %vm307, %v1774, %v1778
      %v1781 = vshrl.u32 %v1752, 16
      %v1783 = vrot.slane %v1781, 4
      %v1784 = vshll.u32 %v1752, 16
      %v1786 = vrot.slane %v1784, 5
      %v1787 = vor.u32 %v1783, %v1786
      %v1788 = vrot.slane %v1787, 4
      %v1790 = vshll.u32 %v1753, 16
      %v1792 = vrot.slane %v1790, 5
      %v1793 = vsel %vm307, %v1788, %v1792
      %v1795 = vshrl.u32 %v1754, 16
      %v1797 = vrot.slane %v1795, 4
      %v1798 = vshll.u32 %v1754, 16
      %v1800 = vrot.slane %v1798, 5
      %v1801 = vor.u32 %v1797, %v1800
      %v1802 = vrot.slane %v1801, 4
      %v1804 = vshll.u32 %v1755, 16
      %v1806 = vrot.slane %v1804, 5
      %v1807 = vsel %vm307, %v1802, %v1806
      %v1809 = vshrl.u32 %v1756, 16
      %v1811 = vrot.slane %v1809, 4
      %v1812 = vshll.u32 %v1756, 16
      %v1814 = vrot.slane %v1812, 5
      %v1815 = vor.u32 %v1811, %v1814
      %v1816 = vrot.slane %v1815, 4
      %v1818 = vshll.u32 %v1757, 16
      %v1820 = vrot.slane %v1818, 5
      %v1821 = vsel %vm307, %v1816, %v1820
      %v1823 = vshrl.u32 %v1758, 16
      %v1825 = vrot.slane %v1823, 4
      %v1826 = vshll.u32 %v1758, 16
      %v1828 = vrot.slane %v1826, 5
      %v1829 = vor.u32 %v1825, %v1828
      %v1830 = vrot.slane %v1829, 4
      %v1832 = vshll.u32 %v1759, 16
      %v1834 = vrot.slane %v1832, 5
      %v1835 = vsel %vm307, %v1830, %v1834
      %v1837 = vshrl.u32 %v1760, 16
      %v1839 = vrot.slane %v1837, 4
      %v1840 = vshll.u32 %v1760, 16
      %v1842 = vrot.slane %v1840, 5
      %v1843 = vor.u32 %v1839, %v1842
      %v1844 = vrot.slane %v1843, 4
      %v1846 = vshll.u32 %v1761, 16
      %v1848 = vrot.slane %v1846, 5
      %v1849 = vsel %vm307, %v1844, %v1848
      %v1851 = vshrl.u32 %v1762, 16
      %v1853 = vrot.slane %v1851, 4
      %v1854 = vshll.u32 %v1762, 16
      %v1856 = vrot.slane %v1854, 5
      %v1857 = vor.u32 %v1853, %v1856
      %v1858 = vrot.slane %v1857, 4
      %v1860 = vshll.u32 %v1763, 16
      %v1862 = vrot.slane %v1860, 5
      %v1863 = vsel %vm307, %v1858, %v1862
      %v1865 = vshrl.u32 %v1764, 16
      %v1867 = vrot.slane %v1865, 4
      %v1868 = vshll.u32 %v1764, 16
      %v1870 = vrot.slane %v1868, 5
      %v1871 = vor.u32 %v1867, %v1870
      %v1872 = vrot.slane %v1871, 4
      %v1874 = vshll.u32 %v1765, 16
      %v1876 = vrot.slane %v1874, 5
      %v1877 = vsel %vm307, %v1872, %v1876
      %s1878 = scalar_lea.vmem %s1, 448
      %v1879 = vld [vmem:[%s1878] sm:$0xf]
      %v1880 = vld [vmem:[%s1878 + $0x4] sm:$0xf]
      %v1881 = vld [vmem:[%s1878 + $0x8] sm:$0xf]
      %v1882 = vld [vmem:[%s1878 + $0xc] sm:$0xf]
      %v1883 = vld [vmem:[%s1878 + $0x10] sm:$0xf]
      %v1884 = vld [vmem:[%s1878 + $0x14] sm:$0xf]
      %v1885 = vld [vmem:[%s1878 + $0x18] sm:$0xf]
      %v1886 = vld [vmem:[%s1878 + $0x1c] sm:$0xf]
      %v1887 = vld [vmem:[%s1878 + $0x20] sm:$0xf]
      %v1888 = vld [vmem:[%s1878 + $0x24] sm:$0xf]
      %v1889 = vld [vmem:[%s1878 + $0x28] sm:$0xf]
      %v1890 = vld [vmem:[%s1878 + $0x2c] sm:$0xf]
      %v1891 = vld [vmem:[%s1878 + $0x30] sm:$0xf]
      %v1892 = vld [vmem:[%s1878 + $0x34] sm:$0xf]
      %v1893 = vld [vmem:[%s1878 + $0x38] sm:$0xf]
      %v1894 = vld [vmem:[%s1878 + $0x3c] sm:$0xf]
      %v1895 = vunpack.c.l.b16 %v1779
      %v1896 = vunpack.c.l.b16 %v1793
      %v1897 = vunpack.c.l.b16 %v1807
      %v1898 = vunpack.c.l.b16 %v1821
      %v1899 = vunpack.c.l.b16 %v1835
      %v1900 = vunpack.c.l.b16 %v1849
      %v1901 = vunpack.c.l.b16 %v1863
      %v1902 = vunpack.c.l.b16 %v1877
      %v1903 = vpack.c.b16 %v1896, %v1895
      %v1904 = vpack.c.b16 %v1898, %v1897
      %v1905 = vpack.c.b16 %v1900, %v1899
      %v1906 = vpack.c.b16 %v1902, %v1901
      %v1927 = vunpack.c.l.b16 %v1879
      %v1928 = vunpack.c.l.b16 %v1880
      %v1929 = vunpack.c.l.b16 %v1881
      %v1930 = vunpack.c.l.b16 %v1882
      %v1931 = vunpack.c.l.b16 %v1883
      %v1932 = vunpack.c.l.b16 %v1884
      %v1933 = vunpack.c.l.b16 %v1885
      %v1934 = vunpack.c.l.b16 %v1886
      %v1935 = vunpack.c.l.b16 %v1887
      %v1936 = vunpack.c.l.b16 %v1888
      %v1937 = vunpack.c.l.b16 %v1889
      %v1938 = vunpack.c.l.b16 %v1890
      %v1939 = vunpack.c.l.b16 %v1891
      %v1940 = vunpack.c.l.b16 %v1892
      %v1941 = vunpack.c.l.b16 %v1893
      %v1942 = vunpack.c.l.b16 %v1894
      %v1943 = vpack.c.b16 %v1928, %v1927
      %v1944 = vpack.c.b16 %v1930, %v1929
      %v1945 = vpack.c.b16 %v1932, %v1931
      %v1946 = vpack.c.b16 %v1934, %v1933
      %v1947 = vpack.c.b16 %v1936, %v1935
      %v1948 = vpack.c.b16 %v1938, %v1937
      %v1949 = vpack.c.b16 %v1940, %v1939
      %v1950 = vpack.c.b16 %v1942, %v1941
      %1959 = vmatprep.subr.bf16.mxu0 0
      %1960 = vmatpush1.bf16.msra.mxu0 %v1950
      %1961 = vmatprep.subr.bf16.mxu0 0
      %1962 = vmatpush1.bf16.msra.mxu0 %v1949
      %1963 = vmatprep.subr.bf16.mxu0 0
      %1964 = vmatpush1.bf16.msra.mxu0 %v1948
      %1965 = vmatprep.subr.bf16.mxu0 0
      %1966 = vmatpush1.bf16.msra.mxu0 %v1947
      %1967 = vmatprep.subr.bf16.mxu0 0
      %1968 = vmatpush1.bf16.msra.mxu0 %v1946
      %1969 = vmatprep.subr.bf16.mxu0 0
      %1970 = vmatpush1.bf16.msra.mxu0 %v1945
      %1971 = vmatprep.subr.bf16.mxu0 0
      %1972 = vmatpush1.bf16.msra.mxu0 %v1944
      %1973 = vmatprep.subr.bf16.mxu0 0
      %1974 = vmatpush1.bf16.msra.mxu0 %v1943
      %1975 = vmatprep.subr.bf16.mxu0 0
      %1976 = vmatpush2.bf16.msra.mxu0 0
      %1977 = vmatprep.subr.bf16.mxu0 0
      %1978 = vmatpush2.bf16.msra.mxu0 0
      %1979 = vmatprep.subr.bf16.mxu0 0
      %1980 = vmatpush2.bf16.msra.mxu0 0
      %1981 = vmatprep.subr.bf16.mxu0 0
      %1982 = vmatpush2.bf16.msra.mxu0 0
      %1983 = vmatprep.subr.bf16.mxu0 0
      %1984 = vmatpush2.bf16.msra.mxu0 0
      %1985 = vmatprep.subr.bf16.mxu0 0
      %1986 = vmatpush2.bf16.msra.mxu0 0
      %1987 = vmatprep.subr.bf16.mxu0 0
      %1988 = vmatpush2.bf16.msra.mxu0 0
      %1989 = vmatprep.subr.bf16.mxu0 0
      %1990 = vmatpush2.bf16.msra.mxu0 0
      %1991 = vmatprep.mubr.bf16.mxu0 0
      %1992 = vmatmul.mubr.bf16.gmra.mxu0 %v1903
      %v1993 = vpop.f32.mrf.mxu0
      %v1994 = vadd.f32 0.0, %v1993
      %v1995 = vpop.f32.mrf.mxu0
      %v1996 = vpop.f32.mrf.mxu0
      %v1997 = vadd.f32 0.0, %v1996
      %v1998 = vpop.f32.mrf.mxu0
      %1999 = vmatprep.mubr.bf16.mxu0 0
      %2000 = vmatmul.mubr.bf16.gmra.mxu0 %v1904
      %v2001 = vpop.f32.mrf.mxu0
      %v2002 = vadd.f32 0.0, %v2001
      %v2003 = vpop.f32.mrf.mxu0
      %v2004 = vpop.f32.mrf.mxu0
      %v2005 = vadd.f32 0.0, %v2004
      %v2006 = vpop.f32.mrf.mxu0
      %2007 = vmatprep.mubr.bf16.mxu0 0
      %2008 = vmatmul.mubr.bf16.gmra.mxu0 %v1905
      %v2009 = vpop.f32.mrf.mxu0
      %v2010 = vadd.f32 0.0, %v2009
      %v2011 = vpop.f32.mrf.mxu0
      %v2012 = vpop.f32.mrf.mxu0
      %v2013 = vadd.f32 0.0, %v2012
      %v2014 = vpop.f32.mrf.mxu0
      %2015 = vmatprep.mubr.bf16.mxu0 0
      %2016 = vmatmul.mubr.bf16.gmra.mxu0 %v1906
      %v2017 = vpop.f32.mrf.mxu0
      %v2018 = vadd.f32 0.0, %v2017
      %v2019 = vpop.f32.mrf.mxu0
      %v2020 = vpop.f32.mrf.mxu0
      %v2021 = vadd.f32 0.0, %v2020
      %v2022 = vpop.f32.mrf.mxu0
      %2023 = vdwg.mxu0
      %v2024 = vadd.f32 %v1742, %v1994
      %v2025 = vadd.f32 %v1743, %v1997
      %v2026 = vadd.f32 %v1744, %v2002
      %v2027 = vadd.f32 %v1745, %v2005
      %v2028 = vadd.f32 %v1746, %v2010
      %v2029 = vadd.f32 %v1747, %v2013
      %v2030 = vadd.f32 %v1748, %v2018
      %v2031 = vadd.f32 %v1749, %v2021
      %v2032 = vld [vmem:[%s1579] sm:$0xe]
      %v2033 = vld [vmem:[%s1579 + $0x8] sm:$0xe]
      %v2034 = vld [vmem:[%s1579 + $0x10] sm:$0xe]
      %v2035 = vld [vmem:[%s1579 + $0x18] sm:$0xe]
      %v2036 = vld [vmem:[%s1579 + $0x20] sm:$0xe]
      %v2037 = vld [vmem:[%s1579 + $0x28] sm:$0xe]
      %v2038 = vld [vmem:[%s1579 + $0x30] sm:$0xe]
      %v2039 = vld [vmem:[%s1579 + $0x38] sm:$0xe]
      %v2056 = vrot.slane %v2032, 5
      %v2057 = vrot.slane %v2056, 4
      %v2058 = vrot.slane %v1751, 5
      %v2059 = vsel %vm729, %v2057, %v2058
      %v2060 = vrot.slane %v2033, 5
      %v2061 = vrot.slane %v2060, 4
      %v2062 = vrot.slane %v1753, 5
      %v2063 = vsel %vm729, %v2061, %v2062
      %v2064 = vrot.slane %v2034, 5
      %v2065 = vrot.slane %v2064, 4
      %v2066 = vrot.slane %v1755, 5
      %v2067 = vsel %vm729, %v2065, %v2066
      %v2068 = vrot.slane %v2035, 5
      %v2069 = vrot.slane %v2068, 4
      %v2070 = vrot.slane %v1757, 5
      %v2071 = vsel %vm729, %v2069, %v2070
      %v2072 = vrot.slane %v2036, 5
      %v2073 = vrot.slane %v2072, 4
      %v2074 = vrot.slane %v1759, 5
      %v2075 = vsel %vm729, %v2073, %v2074
      %v2076 = vrot.slane %v2037, 5
      %v2077 = vrot.slane %v2076, 4
      %v2078 = vrot.slane %v1761, 5
      %v2079 = vsel %vm729, %v2077, %v2078
      %v2080 = vrot.slane %v2038, 5
      %v2081 = vrot.slane %v2080, 4
      %v2082 = vrot.slane %v1763, 5
      %v2083 = vsel %vm729, %v2081, %v2082
      %v2084 = vrot.slane %v2039, 5
      %v2085 = vrot.slane %v2084, 4
      %v2086 = vrot.slane %v1765, 5
      %v2087 = vsel %vm729, %v2085, %v2086
      %s2088 = scalar_lea.vmem %s1, 512
      %v2089 = vld [vmem:[%s2088] sm:$0xf]
      %v2090 = vld [vmem:[%s2088 + $0x4] sm:$0xf]
      %v2091 = vld [vmem:[%s2088 + $0x8] sm:$0xf]
      %v2092 = vld [vmem:[%s2088 + $0xc] sm:$0xf]
      %v2093 = vld [vmem:[%s2088 + $0x10] sm:$0xf]
      %v2094 = vld [vmem:[%s2088 + $0x14] sm:$0xf]
      %v2095 = vld [vmem:[%s2088 + $0x18] sm:$0xf]
      %v2096 = vld [vmem:[%s2088 + $0x1c] sm:$0xf]
      %v2097 = vld [vmem:[%s2088 + $0x20] sm:$0xf]
      %v2098 = vld [vmem:[%s2088 + $0x24] sm:$0xf]
      %v2099 = vld [vmem:[%s2088 + $0x28] sm:$0xf]
      %v2100 = vld [vmem:[%s2088 + $0x2c] sm:$0xf]
      %v2101 = vld [vmem:[%s2088 + $0x30] sm:$0xf]
      %v2102 = vld [vmem:[%s2088 + $0x34] sm:$0xf]
      %v2103 = vld [vmem:[%s2088 + $0x38] sm:$0xf]
      %v2104 = vld [vmem:[%s2088 + $0x3c] sm:$0xf]
      %v2105 = vunpack.c.l.b16 %v2059
      %v2106 = vunpack.c.l.b16 %v2063
      %v2107 = vunpack.c.l.b16 %v2067
      %v2108 = vunpack.c.l.b16 %v2071
      %v2109 = vunpack.c.l.b16 %v2075
      %v2110 = vunpack.c.l.b16 %v2079
      %v2111 = vunpack.c.l.b16 %v2083
      %v2112 = vunpack.c.l.b16 %v2087
      %v2113 = vpack.c.b16 %v2106, %v2105
      %v2114 = vpack.c.b16 %v2108, %v2107
      %v2115 = vpack.c.b16 %v2110, %v2109
      %v2116 = vpack.c.b16 %v2112, %v2111
      %v2137 = vunpack.c.l.b16 %v2089
      %v2138 = vunpack.c.l.b16 %v2090
      %v2139 = vunpack.c.l.b16 %v2091
      %v2140 = vunpack.c.l.b16 %v2092
      %v2141 = vunpack.c.l.b16 %v2093
      %v2142 = vunpack.c.l.b16 %v2094
      %v2143 = vunpack.c.l.b16 %v2095
      %v2144 = vunpack.c.l.b16 %v2096
      %v2145 = vunpack.c.l.b16 %v2097
      %v2146 = vunpack.c.l.b16 %v2098
      %v2147 = vunpack.c.l.b16 %v2099
      %v2148 = vunpack.c.l.b16 %v2100
      %v2149 = vunpack.c.l.b16 %v2101
      %v2150 = vunpack.c.l.b16 %v2102
      %v2151 = vunpack.c.l.b16 %v2103
      %v2152 = vunpack.c.l.b16 %v2104
      %v2153 = vpack.c.b16 %v2138, %v2137
      %v2154 = vpack.c.b16 %v2140, %v2139
      %v2155 = vpack.c.b16 %v2142, %v2141
      %v2156 = vpack.c.b16 %v2144, %v2143
      %v2157 = vpack.c.b16 %v2146, %v2145
      %v2158 = vpack.c.b16 %v2148, %v2147
      %v2159 = vpack.c.b16 %v2150, %v2149
      %v2160 = vpack.c.b16 %v2152, %v2151
      %2169 = vmatprep.subr.bf16.mxu0 0
      %2170 = vmatpush1.bf16.msra.mxu0 %v2160
      %2171 = vmatprep.subr.bf16.mxu0 0
      %2172 = vmatpush1.bf16.msra.mxu0 %v2159
      %2173 = vmatprep.subr.bf16.mxu0 0
      %2174 = vmatpush1.bf16.msra.mxu0 %v2158
      %2175 = vmatprep.subr.bf16.mxu0 0
      %2176 = vmatpush1.bf16.msra.mxu0 %v2157
      %2177 = vmatprep.subr.bf16.mxu0 0
      %2178 = vmatpush1.bf16.msra.mxu0 %v2156
      %2179 = vmatprep.subr.bf16.mxu0 0
      %2180 = vmatpush1.bf16.msra.mxu0 %v2155
      %2181 = vmatprep.subr.bf16.mxu0 0
      %2182 = vmatpush1.bf16.msra.mxu0 %v2154
      %2183 = vmatprep.subr.bf16.mxu0 0
      %2184 = vmatpush1.bf16.msra.mxu0 %v2153
      %2185 = vmatprep.subr.bf16.mxu0 0
      %2186 = vmatpush2.bf16.msra.mxu0 0
      %2187 = vmatprep.subr.bf16.mxu0 0
      %2188 = vmatpush2.bf16.msra.mxu0 0
      %2189 = vmatprep.subr.bf16.mxu0 0
      %2190 = vmatpush2.bf16.msra.mxu0 0
      %2191 = vmatprep.subr.bf16.mxu0 0
      %2192 = vmatpush2.bf16.msra.mxu0 0
      %2193 = vmatprep.subr.bf16.mxu0 0
      %2194 = vmatpush2.bf16.msra.mxu0 0
      %2195 = vmatprep.subr.bf16.mxu0 0
      %2196 = vmatpush2.bf16.msra.mxu0 0
      %2197 = vmatprep.subr.bf16.mxu0 0
      %2198 = vmatpush2.bf16.msra.mxu0 0
      %2199 = vmatprep.subr.bf16.mxu0 0
      %2200 = vmatpush2.bf16.msra.mxu0 0
      %2201 = vmatprep.mubr.bf16.mxu0 0
      %2202 = vmatmul.mubr.bf16.gmra.mxu0 %v2113
      %v2203 = vpop.f32.mrf.mxu0
      %v2204 = vadd.f32 0.0, %v2203
      %v2205 = vpop.f32.mrf.mxu0
      %v2206 = vpop.f32.mrf.mxu0
      %v2207 = vadd.f32 0.0, %v2206
      %v2208 = vpop.f32.mrf.mxu0
      %2209 = vmatprep.mubr.bf16.mxu0 0
      %2210 = vmatmul.mubr.bf16.gmra.mxu0 %v2114
      %v2211 = vpop.f32.mrf.mxu0
      %v2212 = vadd.f32 0.0, %v2211
      %v2213 = vpop.f32.mrf.mxu0
      %v2214 = vpop.f32.mrf.mxu0
      %v2215 = vadd.f32 0.0, %v2214
      %v2216 = vpop.f32.mrf.mxu0
      %2217 = vmatprep.mubr.bf16.mxu0 0
      %2218 = vmatmul.mubr.bf16.gmra.mxu0 %v2115
      %v2219 = vpop.f32.mrf.mxu0
      %v2220 = vadd.f32 0.0, %v2219
      %v2221 = vpop.f32.mrf.mxu0
      %v2222 = vpop.f32.mrf.mxu0
      %v2223 = vadd.f32 0.0, %v2222
      %v2224 = vpop.f32.mrf.mxu0
      %2225 = vmatprep.mubr.bf16.mxu0 0
      %2226 = vmatmul.mubr.bf16.gmra.mxu0 %v2116
      %v2227 = vpop.f32.mrf.mxu0
      %v2228 = vadd.f32 0.0, %v2227
      %v2229 = vpop.f32.mrf.mxu0
      %v2230 = vpop.f32.mrf.mxu0
      %v2231 = vadd.f32 0.0, %v2230
      %v2232 = vpop.f32.mrf.mxu0
      %2233 = vdwg.mxu0
      %v2234 = vadd.f32 %v2024, %v2204
      %v2235 = vadd.f32 %v2025, %v2207
      %v2236 = vadd.f32 %v2026, %v2212
      %v2237 = vadd.f32 %v2027, %v2215
      %v2238 = vadd.f32 %v2028, %v2220
      %v2239 = vadd.f32 %v2029, %v2223
      %v2240 = vadd.f32 %v2030, %v2228
      %v2241 = vadd.f32 %v2031, %v2231
      %v2242 = vld [vmem:[%s2] sm:$0x1]
      %v2244 = vlaneseq
      %v2245 = vshrl.u32 %v2244, 7
      %v2246 = vsub.s32 0, %v2245
      %v2247 = vrot.slane %v2242, %v2246
      %v2249 = vadd.f32 %v2234, %v2247
      %v2250 = vadd.f32 %v2235, %v2247
      %v2251 = vadd.f32 %v2236, %v2247
      %v2252 = vadd.f32 %v2237, %v2247
      %v2253 = vadd.f32 %v2238, %v2247
      %v2254 = vadd.f32 %v2239, %v2247
      %v2255 = vadd.f32 %v2240, %v2247
      %v2256 = vadd.f32 %v2241, %v2247
      %v2257 = vld [vmem:[%s266] sm:$0xf]
      %v2258 = vld [vmem:[%s266 + $0x4] sm:$0xf]
      %v2259 = vld [vmem:[%s266 + $0x8] sm:$0xf]
      %v2260 = vld [vmem:[%s266 + $0xc] sm:$0xf]
      %v2261 = vld [vmem:[%s266 + $0x10] sm:$0xf]
      %v2262 = vld [vmem:[%s266 + $0x14] sm:$0xf]
      %v2263 = vld [vmem:[%s266 + $0x18] sm:$0xf]
      %v2264 = vld [vmem:[%s266 + $0x1c] sm:$0xf]
      %v2265 = vld [vmem:[%s4] sm:$0x3]
      %v2274 = vunpack.c.l.b16 %v2257
      %v2275 = vunpack.c.l.b16 %v2258
      %v2276 = vunpack.c.l.b16 %v2259
      %v2277 = vunpack.c.l.b16 %v2260
      %v2278 = vunpack.c.l.b16 %v2261
      %v2279 = vunpack.c.l.b16 %v2262
      %v2280 = vunpack.c.l.b16 %v2263
      %v2281 = vunpack.c.l.b16 %v2264
      %v2282 = vpack.c.b16 %v2275, %v2274
      %v2283 = vpack.c.b16 %v2277, %v2276
      %v2284 = vpack.c.b16 %v2279, %v2278
      %v2285 = vpack.c.b16 %v2281, %v2280
      %vm2286 = vcmask 31744
      %v2288 = vsel %vm2286, %v2282, 0
      %v2291 = vsel %vm2286, %v2283, 0
      %v2294 = vsel %vm2286, %v2284, 0
      %v2297 = vsel %vm2286, %v2285, 0
      %vm2299 = vcmask 1041408
      %v2301 = vsel %vm2299, %v2265, 0
      %2303 = vmatprep.subr.bf16.mxu0 0
      %2304 = vmatpush1.bf16.msra.mxu0 0
      %2305 = vmatprep.subr.bf16.mxu0 0
      %2306 = vmatpush1.bf16.msra.mxu0 0
      %2307 = vmatprep.subr.bf16.mxu0 0
      %2308 = vmatpush1.bf16.msra.mxu0 0
      %2309 = vmatprep.subr.bf16.mxu0 0
      %2310 = vmatpush1.bf16.msra.mxu0 0
      %2311 = vmatprep.subr.bf16.mxu0 0
      %2312 = vmatpush1.bf16.msra.mxu0 0
      %2313 = vmatprep.subr.bf16.mxu0 0
      %2314 = vmatpush1.bf16.msra.mxu0 0
      %2315 = vmatprep.subr.bf16.mxu0 0
      %2316 = vmatpush1.bf16.msra.mxu0 0
      %2317 = vmatprep.subr.bf16.mxu0 0
      %2318 = vmatpush1.bf16.msra.mxu0 %v2301
      %2319 = vmatprep.subr.bf16.mxu0 0
      %2320 = vmatpush2.bf16.msra.mxu0 0
      %2321 = vmatprep.subr.bf16.mxu0 0
      %2322 = vmatpush2.bf16.msra.mxu0 0
      %2323 = vmatprep.subr.bf16.mxu0 0
      %2324 = vmatpush2.bf16.msra.mxu0 0
      %2325 = vmatprep.subr.bf16.mxu0 0
      %2326 = vmatpush2.bf16.msra.mxu0 0
      %2327 = vmatprep.subr.bf16.mxu0 0
      %2328 = vmatpush2.bf16.msra.mxu0 0
      %2329 = vmatprep.subr.bf16.mxu0 0
      %2330 = vmatpush2.bf16.msra.mxu0 0
      %2331 = vmatprep.subr.bf16.mxu0 0
      %2332 = vmatpush2.bf16.msra.mxu0 0
      %2333 = vmatprep.subr.bf16.mxu0 0
      %2334 = vmatpush2.bf16.msra.mxu0 0
      %2335 = vmatprep.mubr.bf16.mxu0 0
      %2336 = vmatmul.mubr.bf16.gmra.mxu0 %v2288
      %v2337 = vpop.f32.mrf.mxu0
      %v2338 = vadd.f32 0.0, %v2337
      %v2339 = vpop.f32.mrf.mxu0
      %v2340 = vpop.f32.mrf.mxu0
      %v2341 = vadd.f32 0.0, %v2340
      %v2342 = vpop.f32.mrf.mxu0
      %2343 = vmatprep.mubr.bf16.mxu0 0
      %2344 = vmatmul.mubr.bf16.gmra.mxu0 %v2291
      %v2345 = vpop.f32.mrf.mxu0
      %v2346 = vadd.f32 0.0, %v2345
      %v2347 = vpop.f32.mrf.mxu0
      %v2348 = vpop.f32.mrf.mxu0
      %v2349 = vadd.f32 0.0, %v2348
      %v2350 = vpop.f32.mrf.mxu0
      %2351 = vmatprep.mubr.bf16.mxu0 0
      %2352 = vmatmul.mubr.bf16.gmra.mxu0 %v2294
      %v2353 = vpop.f32.mrf.mxu0
      %v2354 = vadd.f32 0.0, %v2353
      %v2355 = vpop.f32.mrf.mxu0
      %v2356 = vpop.f32.mrf.mxu0
      %v2357 = vadd.f32 0.0, %v2356
      %v2358 = vpop.f32.mrf.mxu0
      %2359 = vmatprep.mubr.bf16.mxu0 0
      %2360 = vmatmul.mubr.bf16.gmra.mxu0 %v2297
      %v2361 = vpop.f32.mrf.mxu0
      %v2362 = vadd.f32 0.0, %v2361
      %v2363 = vpop.f32.mrf.mxu0
      %v2364 = vpop.f32.mrf.mxu0
      %v2365 = vadd.f32 0.0, %v2364
      %v2366 = vpop.f32.mrf.mxu0
      %2367 = vdwg.mxu0
      %v2368 = vadd.f32 %v2249, %v2338
      %v2369 = vadd.f32 %v2250, %v2341
      %v2370 = vadd.f32 %v2251, %v2346
      %v2371 = vadd.f32 %v2252, %v2349
      %v2372 = vadd.f32 %v2253, %v2354
      %v2373 = vadd.f32 %v2254, %v2357
      %v2374 = vadd.f32 %v2255, %v2362
      %v2375 = vadd.f32 %v2256, %v2365
      %v2376 = vld [vmem:[%s5] sm:$0x1]
      %v2378 = vlaneseq
      %v2379 = vshrl.u32 %v2378, 7
      %v2380 = vsub.s32 0, %v2379
      %v2381 = vrot.slane %v2376, %v2380
      %v2383 = vadd.f32 %v2368, %v2381
      %v2384 = vadd.f32 %v2369, %v2381
      %v2385 = vadd.f32 %v2370, %v2381
      %v2386 = vadd.f32 %v2371, %v2381
      %v2387 = vadd.f32 %v2372, %v2381
      %v2388 = vadd.f32 %v2373, %v2381
      %v2389 = vadd.f32 %v2374, %v2381
      %v2390 = vadd.f32 %v2375, %v2381
      %v2391 = vmax.f32 %v2383, 0.0
      %v2392 = vmax.f32 %v2384, 0.0
      %v2393 = vmax.f32 %v2385, 0.0
      %v2394 = vmax.f32 %v2386, 0.0
      %v2395 = vmax.f32 %v2387, 0.0
      %v2396 = vmax.f32 %v2388, 0.0
      %v2397 = vmax.f32 %v2389, 0.0
      %v2398 = vmax.f32 %v2390, 0.0
      %2399 = vst [vmem:[%s271] sm:$0xff] %v2391
      %2400 = vst [vmem:[%s271 + $0x8] sm:$0xff] %v2392
      %2401 = vst [vmem:[%s271 + $0x10] sm:$0xff] %v2393
      %2402 = vst [vmem:[%s271 + $0x18] sm:$0xff] %v2394
      %2403 = vst [vmem:[%s271 + $0x20] sm:$0xff] %v2395
      %2404 = vst [vmem:[%s271 + $0x28] sm:$0xff] %v2396
      %2405 = vst [vmem:[%s271 + $0x30] sm:$0xff] %v2397
      %2406 = vst [vmem:[%s271 + $0x38] sm:$0xff] %v2398
      %p2407 = scmp.lt.s32.totalorder %s17, 1
      %s2408 = scalar_select %p2407, %s17, 1
      %s2409 = smul.addr %s2408, 8
      %s2410 = smul.addr %s2409, 8
      %s2411 = scalar_lea.vmem %s6, %s2410
      // Predicated region
      $region45: #{basic_block_forward.3} parent=43 // pred_check
        %p2412 = pneg %p171
      $region46: #{basic_block_forward.3} parent=43 // pred_check_branch
        %2414 = sbr.rel (%p2412) target = $region48
      $region47: #{basic_block_forward.3} parent=43 // pred_region
        _
      $region48: #{basic_block_forward.3} parent=43 // pred_fallthru
        _
    $region44: #{basic_block_forward.3} parent=5 // pred_fallthru
      _
    %p2415 = scmp.le.s32.totalorder 2, %s12
    // Predicated region
    $region49: #{basic_block_forward.3} parent=5 // pred_check
      %p2416 = pneg %p2415
    $region50: #{basic_block_forward.3} parent=5 // pred_check_branch
      %2418 = sbr.rel (%p2416) target = $region52
    $region51: #{basic_block_forward.3} parent=5 // pred_region
      %s2419 = ssub.s32 %s12, 2
      // Predicated region
      $region53: #{basic_block_forward.3} parent=51 // pred_check
        %p2420 = pneg %p177
      $region54: #{basic_block_forward.3} parent=51 // pred_check_branch
        %2422 = sbr.rel (%p2420) target = $region56
      $region55: #{basic_block_forward.3} parent=51 // pred_region
        %p2423 = scmp.lt.s32.totalorder %s18, 1
        %s2424 = scalar_select %p2423, %s18, 1
        %s2425 = smul.addr %s2424, 8
        %s2426 = smul.addr %s2425, 8
        %s2427 = scalar_lea.vmem %s6, %s2426
      $region56: #{basic_block_forward.3} parent=51 // pred_fallthru
        _
    $region52: #{basic_block_forward.3} parent=5 // pred_fallthru
      _
  $region6: #{basic_block_forward.3} parent=0 // loop_footer
    %s16 = sadd.s32 1, %s12
  $region7: #{basic_block_forward.3} parent=0 // loop_footer_branch
    %11 = sbr.rel target = $region3
  $region8: #{basic_block_forward.3} parent=0 // loop_exit
    _

</llo_original>
